<compile_context>
chip_gen: v5e
topology: v5e:2x2
jax: 0.10.0
libtpu: 0.0.40
codegen_flags: <defaults>
</compile_context>

<pallas_src>
import functools
import math

import jax
import jax.numpy as jnp
from jax.experimental import pallas as pl
from jax.experimental.pallas import tpu as pltpu


# ----------------------------- helpers -----------------------------

def _tile(dim, target, granularity):
    """Largest block <= target that evenly divides dim and respects (8,128) tiling.

    Falls back to the full dim (always legal) when no such divisor exists.
    """
    if dim <= target:
        return dim
    t = (target // granularity) * granularity
    while t >= granularity:
        if dim % t == 0:
            return t
        t -= granularity
    return dim


def _ln_math(x, gamma, beta, eps):
    mean = jnp.mean(x, axis=-1, keepdims=True)
    var = jnp.mean(jnp.square(x - mean), axis=-1, keepdims=True)
    return (x - mean) * jax.lax.rsqrt(var + eps) * gamma + beta


# ----------------------------- Pallas kernels -----------------------------

def _matmul_kernel(x_ref, w_ref, b_ref, o_ref, acc_ref):
    """Tiled y = x @ w + b; K is the innermost (arbitrary) grid axis."""
    @pl.when(pl.program_id(2) == 0)
    def _():
        acc_ref[...] = jnp.zeros_like(acc_ref)

    acc_ref[...] += jnp.dot(
        x_ref[...].astype(jnp.bfloat16),
        w_ref[...].astype(jnp.bfloat16),
        preferred_element_type=jnp.float32,
    )

    @pl.when(pl.program_id(2) == pl.num_programs(2) - 1)
    def _():
        o_ref[...] = (acc_ref[...] + b_ref[...]).astype(o_ref.dtype)


def pallas_linear(x, w, b, *, tm_target=256, tn_target=512, tk_target=512):
    """x: (M, K) @ w: (K, N) + b: (N,) -> (M, N).  Weights are pre-transposed."""
    M, K = x.shape
    N = w.shape[1]
    tm = _tile(M, tm_target, 8)
    tn = _tile(N, tn_target, 128)
    tk = _tile(K, tk_target, 128)
    return pl.pallas_call(
        _matmul_kernel,
        out_shape=jax.ShapeDtypeStruct((M, N), jnp.float32),
        grid=(M // tm, N // tn, K // tk),
        in_specs=[
            pl.BlockSpec((tm, tk), lambda i, j, k: (i, k)),
            pl.BlockSpec((tk, tn), lambda i, j, k: (k, j)),
            pl.BlockSpec((1, tn), lambda i, j, k: (0, j)),
        ],
        out_specs=pl.BlockSpec((tm, tn), lambda i, j, k: (i, j)),
        scratch_shapes=[pltpu.VMEM((tm, tn), jnp.float32)],
        compiler_params=pltpu.CompilerParams(
            dimension_semantics=("parallel", "parallel", "arbitrary")),
    )(x, w, b.reshape(1, N))


def _layernorm_kernel(x_ref, g_ref, b_ref, o_ref, *, eps):
    o_ref[...] = _ln_math(x_ref[...], g_ref[...], b_ref[...], eps).astype(o_ref.dtype)


def pallas_layernorm(x, gamma, beta, eps=1e-5, tm_target=512):
    """Row-wise LayerNorm over the last dim (nn.LayerNorm semantics)."""
    M, E = x.shape
    tm = _tile(M, tm_target, 8)
    kern = functools.partial(_layernorm_kernel, eps=eps)
    return pl.pallas_call(
        kern,
        out_shape=jax.ShapeDtypeStruct((M, E), jnp.float32),
        grid=(M // tm,),
        in_specs=[
            pl.BlockSpec((tm, E), lambda i: (i, 0)),
            pl.BlockSpec((1, E), lambda i: (0, 0)),
            pl.BlockSpec((1, E), lambda i: (0, 0)),
        ],
        out_specs=pl.BlockSpec((tm, E), lambda i: (i, 0)),
        compiler_params=pltpu.CompilerParams(dimension_semantics=("parallel",)),
    )(x, gamma.reshape(1, E), beta.reshape(1, E))


def _proj_add_ln_kernel(a_ref, w_ref, b_ref, r_ref, g_ref, bb_ref, o_ref, *, eps):
    """Fused: out = LayerNorm(residual + a @ w + b)."""
    y = jnp.dot(
        a_ref[...].astype(jnp.bfloat16),
        w_ref[...].astype(jnp.bfloat16),
        preferred_element_type=jnp.float32,
    ) + b_ref[...]
    o_ref[...] = _ln_math(r_ref[...] + y, g_ref[...], bb_ref[...], eps).astype(o_ref.dtype)


def pallas_proj_add_ln(a, w, b, residual, gamma, beta, eps=1e-5, tm_target=256):
    M, K = a.shape
    E = w.shape[1]
    tm = _tile(M, tm_target, 8)
    kern = functools.partial(_proj_add_ln_kernel, eps=eps)
    return pl.pallas_call(
        kern,
        out_shape=jax.ShapeDtypeStruct((M, E), jnp.float32),
        grid=(M // tm,),
        in_specs=[
            pl.BlockSpec((tm, K), lambda i: (i, 0)),
            pl.BlockSpec((K, E), lambda i: (0, 0)),
            pl.BlockSpec((1, E), lambda i: (0, 0)),
            pl.BlockSpec((tm, E), lambda i: (i, 0)),
            pl.BlockSpec((1, E), lambda i: (0, 0)),
            pl.BlockSpec((1, E), lambda i: (0, 0)),
        ],
        out_specs=pl.BlockSpec((tm, E), lambda i: (i, 0)),
        compiler_params=pltpu.CompilerParams(dimension_semantics=("parallel",)),
    )(a, w, b.reshape(1, E), residual, gamma.reshape(1, E), beta.reshape(1, E))


def _ffn_add_ln_kernel(x_ref, w1_ref, b1_ref, w2_ref, b2_ref, g_ref, bb_ref, o_ref, *, eps):
    """Fused FFN: out = LayerNorm(x + relu(x@w1+b1) @ w2 + b2)."""
    x = x_ref[...]
    h = jnp.dot(
        x.astype(jnp.bfloat16),
        w1_ref[...].astype(jnp.bfloat16),
        preferred_element_type=jnp.float32,
    ) + b1_ref[...]
    h = jnp.maximum(h, 0.0)
    y = jnp.dot(
        h.astype(jnp.bfloat16),
        w2_ref[...].astype(jnp.bfloat16),
        preferred_element_type=jnp.float32,
    ) + b2_ref[...]
    o_ref[...] = _ln_math(x + y, g_ref[...], bb_ref[...], eps).astype(o_ref.dtype)


def pallas_ffn_add_ln(x, w1, b1, w2, b2, gamma, beta, eps=1e-5, tm_target=256):
    M, E = x.shape
    H = w1.shape[1]
    tm = _tile(M, tm_target, 8)
    kern = functools.partial(_ffn_add_ln_kernel, eps=eps)
    return pl.pallas_call(
        kern,
        out_shape=jax.ShapeDtypeStruct((M, E), jnp.float32),
        grid=(M // tm,),
        in_specs=[
            pl.BlockSpec((tm, E), lambda i: (i, 0)),
            pl.BlockSpec((E, H), lambda i: (0, 0)),
            pl.BlockSpec((1, H), lambda i: (0, 0)),
            pl.BlockSpec((H, E), lambda i: (0, 0)),
            pl.BlockSpec((1, E), lambda i: (0, 0)),
            pl.BlockSpec((1, E), lambda i: (0, 0)),
            pl.BlockSpec((1, E), lambda i: (0, 0)),
        ],
        out_specs=pl.BlockSpec((tm, E), lambda i: (i, 0)),
        compiler_params=pltpu.CompilerParams(dimension_semantics=("parallel",)),
    )(x, w1, b1.reshape(1, H), w2, b2.reshape(1, E),
      gamma.reshape(1, E), beta.reshape(1, E))


def _attention_kernel(q_ref, k_ref, v_ref, o_ref):
    """Per head-block attention.  q is already pre-scaled by 1/sqrt(hd) (folded
    into the q-projection weights at init)."""
    q = q_ref[...]
    k = k_ref[...]
    v = v_ref[...]
    s = jnp.einsum("bqd,bkd->bqk",
                   q.astype(jnp.bfloat16), k.astype(jnp.bfloat16),
                   preferred_element_type=jnp.float32)
    m = jnp.max(s, axis=-1, keepdims=True)
    p = jnp.exp(s - m)
    denom = jnp.sum(p, axis=-1, keepdims=True)
    p = p * pl.reciprocal(denom, approx=True)
    o = jnp.einsum("bqk,bkd->bqd",
                   p.astype(jnp.bfloat16), v.astype(jnp.bfloat16),
                   preferred_element_type=jnp.float32)
    o_ref[...] = o.astype(o_ref.dtype)


def pallas_attention(q, k, v, hb_target=16):
    """q: (BH, L, hd), k/v: (BH, S, hd) -> softmax(q k^T) v : (BH, L, hd)."""
    BH, L, hd = q.shape
    S = k.shape[1]
    hb = _tile(BH, hb_target, 1)
    return pl.pallas_call(
        _attention_kernel,
        out_shape=jax.ShapeDtypeStruct((BH, L, hd), jnp.float32),
        grid=(BH // hb,),
        in_specs=[
            pl.BlockSpec((hb, L, hd), lambda i: (i, 0, 0)),
            pl.BlockSpec((hb, S, hd), lambda i: (i, 0, 0)),
            pl.BlockSpec((hb, S, hd), lambda i: (i, 0, 0)),
        ],
        out_specs=pl.BlockSpec((hb, L, hd), lambda i: (i, 0, 0)),
        compiler_params=pltpu.CompilerParams(dimension_semantics=("parallel",)),
    )(q, k, v)


# ------------------------- Model (glue in plain JAX) -------------------------

def pos_encoding(num_tokens, n_dim):
    positions = jnp.arange(num_tokens, dtype=jnp.float32)[:, None]
    div_term = jnp.exp(jnp.arange(0, n_dim, 2, dtype=jnp.float32)
                       * -(jnp.log(10000.0) / n_dim))
    pe = jnp.zeros((num_tokens, n_dim), jnp.float32)
    pe = pe.at[:, 0::2].set(jnp.sin(positions * div_term))
    pe = pe.at[:, 1::2].set(jnp.cos(positions * div_term))
    return pe


def _split_heads(x2d, seq, batch, num_heads, hd):
    # (seq*batch, E) -> (batch*heads, seq, hd)   [PyTorch MHA head layout]
    return x2d.reshape(seq, batch * num_heads, hd).transpose(1, 0, 2)


def decoder_layer_forward(x, memory, p, num_heads):
    """nn.TransformerDecoderLayer, norm_first=False, ReLU FFN, dropout=identity."""
    L, N, E = x.shape
    S = memory.shape[0]
    hd = E // num_heads
    x2 = x.reshape(L * N, E)
    mem2 = memory.reshape(S * N, E)

    # ---------------- self-attention (fused QKV projection) ----------------
    qkv = pallas_linear(x2, p["sa_w_qkv"], p["sa_b_qkv"])          # (L*N, 3E)
    qkv = qkv.reshape(L, N, 3 * E)
    q = _split_heads(qkv[..., :E], L, N, num_heads, hd)
    k = _split_heads(qkv[..., E:2 * E], L, N, num_heads, hd)
    v = _split_heads(qkv[..., 2 * E:], L, N, num_heads, hd)
    attn = pallas_attention(q, k, v)                                # (N*H, L, hd)
    a2 = attn.transpose(1, 0, 2).reshape(L * N, E)
    x2 = pallas_proj_add_ln(a2, p["sa_w_o"], p["sa_b_o"], x2,
                            p["norm1_w"], p["norm1_b"])

    # ------------- cross-attention (memory = tgt), fused KV proj -------------
    qc = pallas_linear(x2, p["ca_w_q"], p["ca_b_q"])                # (L*N, E)
    kvc = pallas_linear(mem2, p["ca_w_kv"], p["ca_b_kv"])           # (S*N, 2E)
    kvc = kvc.reshape(S, N, 2 * E)
    q = _split_heads(qc, L, N, num_heads, hd)
    k = _split_heads(kvc[..., :E], S, N, num_heads, hd)
    v = _split_heads(kvc[..., E:], S, N, num_heads, hd)
    attn = pallas_attention(q, k, v)
    a2 = attn.transpose(1, 0, 2).reshape(L * N, E)
    x2 = pallas_proj_add_ln(a2, p["ca_w_o"], p["ca_b_o"], x2,
                            p["norm2_w"], p["norm2_b"])

    # --------- FFN (linear1 + ReLU + linear2) fused with residual + norm3 ---------
    x2 = pallas_ffn_add_ln(x2, p["linear1_w"], p["linear1_b"],
                           p["linear2_w"], p["linear2_b"],
                           p["norm3_w"], p["norm3_b"])
    return x2.reshape(L, N, E)


def transformer_decoder_model(tokens, params, num_heads):
    B, S = tokens.shape
    E = params["embedding"].shape[1]
    # Embedding gather + positional encoding along axis 1 (= tgt.size(1)), as in
    # the PyTorch forward.  (Gather kept in XLA glue.)
    x = params["embedding"][tokens] + params["pos_encoding"][:S]    # (B, S, E)
    x = pallas_layernorm(x.reshape(B * S, E),
                         params["ln_w"], params["ln_b"]).reshape(B, S, E)
    memory = x  # forward() passes memory=tgt
    # nn.TransformerDecoder default batch_first=False => dim 0 is the attention axis.
    for lp in params["layers"]:
        x = decoder_layer_forward(x, memory, lp, num_heads)
    logits = pallas_linear(x.reshape(B * S, E),
                           params["fc_out_w"], params["fc_out_b"])
    return logits.reshape(B, S, -1)


# ------------------------------ Param init ------------------------------

def init_params(key, vocab_size, E, hidden, num_layers, num_heads):
    """Weights stored pre-transposed as (K, N); QKV / KV concatenated; the
    1/sqrt(head_dim) attention scale folded into the q-projection at init."""
    hd = E // num_heads
    q_scale = 1.0 / math.sqrt(hd)
    keys = jax.random.split(key, 128)
    it = iter(keys)

    def nrm(shape, scale=0.02):
        return (scale * jax.random.normal(next(it), shape)).astype(jnp.float32)

    def attn_self():
        wq, wk, wv = nrm((E, E)), nrm((E, E)), nrm((E, E))
        bq, bk, bv = nrm((E,)), nrm((E,)), nrm((E,))
        return {
            "sa_w_qkv": jnp.concatenate([wq * q_scale, wk, wv], axis=1),  # (E, 3E)
            "sa_b_qkv": jnp.concatenate([bq * q_scale, bk, bv]),          # (3E,)
            "sa_w_o": nrm((E, E)),
            "sa_b_o": nrm((E,)),
        }

    def attn_cross():
        wq, wk, wv = nrm((E, E)), nrm((E, E)), nrm((E, E))
        bq, bk, bv = nrm((E,)), nrm((E,)), nrm((E,))
        return {
            "ca_w_q": wq * q_scale,
            "ca_b_q": bq * q_scale,
            "ca_w_kv": jnp.concatenate([wk, wv], axis=1),                 # (E, 2E)
            "ca_b_kv": jnp.concatenate([bk, bv]),                         # (2E,)
            "ca_w_o": nrm((E, E)),
            "ca_b_o": nrm((E,)),
        }

    params = {
        "embedding": nrm((vocab_size, E), scale=1.0),  # frozen pretrained embedding
        "pos_encoding": pos_encoding(1000, E),
        "ln_w": jnp.ones((E,), jnp.float32),
        "ln_b": jnp.zeros((E,), jnp.float32),
        "fc_out_w": nrm((E, vocab_size)),              # pre-transposed (K, N)
        "fc_out_b": nrm((vocab_size,)),
        "layers": [],
    }
    for _ in range(num_layers):
        lp = {}
        lp.update(attn_self())
        lp.update(attn_cross())
        lp.update({
            "linear1_w": nrm((E, hidden)),             # pre-transposed
            "linear1_b": nrm((hidden,)),
            "linear2_w": nrm((hidden, E)),             # pre-transposed
            "linear2_b": nrm((E,)),
            "norm1_w": jnp.ones((E,), jnp.float32),
            "norm1_b": jnp.zeros((E,), jnp.float32),
            "norm2_w": jnp.ones((E,), jnp.float32),
            "norm2_b": jnp.zeros((E,), jnp.float32),
            "norm3_w": jnp.ones((E,), jnp.float32),
            "norm3_b": jnp.zeros((E,), jnp.float32),
        })
        params["layers"].append(lp)
    return params


# --------------------------------- main ---------------------------------

if __name__ == "__main__":
    # Small, lane-dense shapes consistent with the module (E divisible by num_heads).
    vocab_size = 512
    embedding_dim = 128
    hidden_dim = 256
    num_heads = 4
    num_layers = 2
    B, S = 2, 16

    root = jax.random.PRNGKey(0)
    k_params, k_tok = jax.random.split(root)
    params = init_params(k_params, vocab_size, embedding_dim, hidden_dim,
                         num_layers, num_heads)
    tokens = jax.random.randint(k_tok, (B, S), 0, vocab_size, dtype=jnp.int32)

    fwd = jax.jit(functools.partial(transformer_decoder_model, num_heads=num_heads))
    logits = fwd(tokens, params)
    jax.block_until_ready(logits)
    assert logits.shape == (B, S, vocab_size)
    assert logits.dtype == jnp.float32
    assert bool(jnp.all(jnp.isfinite(logits)))
    print("KERNEL_OK")
</pallas_src>

<mosaic_0001>
module attributes {stable_mosaic.version = 11 : i64} {
  func.func @_layernorm_kernel(%arg0: i32, %arg1: memref<32x128xf32, #tpu.memory_space<vmem>>, %arg2: memref<1x128xf32, #tpu.memory_space<vmem>>, %arg3: memref<1x128xf32, #tpu.memory_space<vmem>>, %arg4: memref<32x128xf32, #tpu.memory_space<vmem>>) attributes {dimension_semantics = [#tpu.dimension_semantics<parallel>], iteration_bounds = array<i64: 1>, scalar_prefetch = 0 : i64, scratch_operands = 0 : i64, tpu.core_type = #tpu.core_type<tc>, window_params = [{transform_indices = @transform_0, window_bounds = array<i64: 32, 128>}, {pipeline_mode = #tpu.pipeline_mode<synchronous>, transform_indices = @transform_1, window_bounds = array<i64: 1, 128>}, {pipeline_mode = #tpu.pipeline_mode<synchronous>, transform_indices = @transform_2, window_bounds = array<i64: 1, 128>}, {transform_indices = @transform_3, window_bounds = array<i64: 32, 128>}]} {
    %c0 = arith.constant 0 : index
    %c0_0 = arith.constant 0 : index
    %0 = vector.load %arg1[%c0, %c0_0] : memref<32x128xf32, #tpu.memory_space<vmem>>, vector<32x128xf32>
    %c0_1 = arith.constant 0 : index
    %c0_2 = arith.constant 0 : index
    %1 = vector.load %arg2[%c0_1, %c0_2] : memref<1x128xf32, #tpu.memory_space<vmem>>, vector<1x128xf32>
    %c0_3 = arith.constant 0 : index
    %c0_4 = arith.constant 0 : index
    %2 = vector.load %arg3[%c0_3, %c0_4] : memref<1x128xf32, #tpu.memory_space<vmem>>, vector<1x128xf32>
    %cst = arith.constant dense<0.000000e+00> : vector<32xf32>
    %3 = vector.multi_reduction <add>, %0, %cst [1] : vector<32x128xf32> to vector<32xf32>
    %4 = vector.shape_cast %3 : vector<32xf32> to vector<32x1xf32>
    %cst_5 = arith.constant 1.280000e+02 : f32
    %5 = vector.broadcast %cst_5 : f32 to vector<32x1xf32>
    %6 = arith.divf %4, %5 : vector<32x1xf32>
    %7 = vector.broadcast %6 : vector<32x1xf32> to vector<32x128xf32>
    %8 = arith.subf %0, %7 : vector<32x128xf32>
    %9 = arith.mulf %8, %8 : vector<32x128xf32>
    %cst_6 = arith.constant dense<0.000000e+00> : vector<32xf32>
    %10 = vector.multi_reduction <add>, %9, %cst_6 [1] : vector<32x128xf32> to vector<32xf32>
    %11 = vector.shape_cast %10 : vector<32xf32> to vector<32x1xf32>
    %cst_7 = arith.constant 1.280000e+02 : f32
    %12 = vector.broadcast %cst_7 : f32 to vector<32x1xf32>
    %13 = arith.divf %11, %12 : vector<32x1xf32>
    %14 = vector.broadcast %6 : vector<32x1xf32> to vector<32x128xf32>
    %15 = arith.subf %0, %14 : vector<32x128xf32>
    %cst_8 = arith.constant 9.99999974E-6 : f32
    %16 = vector.broadcast %cst_8 : f32 to vector<32x1xf32>
    %17 = arith.addf %13, %16 : vector<32x1xf32>
    %18 = math.rsqrt %17 : vector<32x1xf32>
    %19 = vector.broadcast %18 : vector<32x1xf32> to vector<32x128xf32>
    %20 = arith.mulf %15, %19 : vector<32x128xf32>
    %21 = vector.broadcast %1 : vector<1x128xf32> to vector<32x128xf32>
    %22 = arith.mulf %20, %21 : vector<32x128xf32>
    %23 = vector.broadcast %2 : vector<1x128xf32> to vector<32x128xf32>
    %24 = arith.addf %22, %23 : vector<32x128xf32>
    %c0_9 = arith.constant 0 : index
    %c0_10 = arith.constant 0 : index
    %25 = vector.load %arg4[%c0_9, %c0_10] : memref<32x128xf32, #tpu.memory_space<vmem>>, vector<32x128xf32>
    tpu.vector_store %arg4[%c0_9, %c0_10], %24 {strides = array<i32>} : memref<32x128xf32, #tpu.memory_space<vmem>>, vector<32x128xf32>,
    return
  }
  func.func @transform_0(%arg0: i32) -> (i32, i32) {
    %c0_i32 = arith.constant 0 : i32
    %c0_i32_0 = arith.constant 0 : i32
    return %arg0, %c0_i32 : i32, i32
  }
  func.func @transform_1(%arg0: i32) -> (i32, i32) {
    %c0_i32 = arith.constant 0 : i32
    %c0_i32_0 = arith.constant 0 : i32
    %c0_i32_1 = arith.constant 0 : i32
    return %c0_i32, %c0_i32_0 : i32, i32
  }
  func.func @transform_2(%arg0: i32) -> (i32, i32) {
    %c0_i32 = arith.constant 0 : i32
    %c0_i32_0 = arith.constant 0 : i32
    %c0_i32_1 = arith.constant 0 : i32
    return %c0_i32, %c0_i32_0 : i32, i32
  }
  func.func @transform_3(%arg0: i32) -> (i32, i32) {
    %c0_i32 = arith.constant 0 : i32
    %c0_i32_0 = arith.constant 0 : i32
    return %arg0, %c0_i32 : i32, i32
  }
}

module attributes {stable_mosaic.version = 11 : i64} {
  func.func @_matmul_kernel(%arg0: i32, %arg1: i32, %arg2: i32, %arg3: memref<32x128xf32, #tpu.memory_space<vmem>>, %arg4: memref<128x384xf32, #tpu.memory_space<vmem>>, %arg5: memref<1x384xf32, #tpu.memory_space<vmem>>, %arg6: memref<32x384xf32, #tpu.memory_space<vmem>>, %arg7: memref<32x384xf32, #tpu.memory_space<vmem>>) attributes {dimension_semantics = [#tpu.dimension_semantics<parallel>, #tpu.dimension_semantics<parallel>, #tpu.dimension_semantics<arbitrary>], iteration_bounds = array<i64: 1, 1, 1>, scalar_prefetch = 0 : i64, scratch_operands = 1 : i64, tpu.core_type = #tpu.core_type<tc>, window_params = [{transform_indices = @transform_0, window_bounds = array<i64: 32, 128>}, {transform_indices = @transform_1, window_bounds = array<i64: 128, 384>}, {transform_indices = @transform_2, window_bounds = array<i64: 1, 384>}, {transform_indices = @transform_3, window_bounds = array<i64: 32, 384>}]} {
    %c0_i32 = arith.constant 0 : i32
    %0 = arith.cmpi eq, %arg2, %c0_i32 : i32
    %1 = arith.extui %0 : i1 to i32
    %c0_i32_0 = arith.constant 0 : i32
    %2 = arith.cmpi ne, %1, %c0_i32_0 : i32
    scf.if %2 {
      %cst_10 = arith.constant 0.000000e+00 : f32
      %14 = vector.broadcast %cst_10 : f32 to vector<32x384xf32>
      %c0_11 = arith.constant 0 : index
      %c0_12 = arith.constant 0 : index
      %15 = vector.load %arg7[%c0_11, %c0_12] : memref<32x384xf32, #tpu.memory_space<vmem>>, vector<32x384xf32>
      tpu.vector_store %arg7[%c0_11, %c0_12], %14 {strides = array<i32>} : memref<32x384xf32, #tpu.memory_space<vmem>>, vector<32x384xf32>,
    } else {
    }
    %c0 = arith.constant 0 : index
    %c0_1 = arith.constant 0 : index
    %3 = vector.load %arg7[%c0, %c0_1] : memref<32x384xf32, #tpu.memory_space<vmem>>, vector<32x384xf32>
    %c0_2 = arith.constant 0 : index
    %c0_3 = arith.constant 0 : index
    %4 = vector.load %arg3[%c0_2, %c0_3] : memref<32x128xf32, #tpu.memory_space<vmem>>, vector<32x128xf32>
    %5 = arith.truncf %4 : vector<32x128xf32> to vector<32x128xbf16>
    %c0_4 = arith.constant 0 : index
    %c0_5 = arith.constant 0 : index
    %6 = vector.load %arg4[%c0_4, %c0_5] : memref<128x384xf32, #tpu.memory_space<vmem>>, vector<128x384xf32>
    %7 = arith.truncf %6 : vector<128x384xf32> to vector<128x384xbf16>
    %cst = arith.constant dense<0.000000e+00> : vector<32x384xf32>
    %8 = tpu.matmul %5, %7, %cst {dimension_numbers = #tpu.dot_dimension_numbers<[1], [0], [0], [1], [0, 0, 1, 1], [], []>} : vector<32x128xbf16>, vector<128x384xbf16>, vector<32x384xf32> -> vector<32x384xf32>
    %9 = arith.addf %3, %8 : vector<32x384xf32>
    %c0_6 = arith.constant 0 : index
    %c0_7 = arith.constant 0 : index
    %10 = vector.load %arg7[%c0_6, %c0_7] : memref<32x384xf32, #tpu.memory_space<vmem>>, vector<32x384xf32>
    tpu.vector_store %arg7[%c0_6, %c0_7], %9 {strides = array<i32>} : memref<32x384xf32, #tpu.memory_space<vmem>>, vector<32x384xf32>,
    %c0_i32_8 = arith.constant 0 : i32
    %11 = arith.cmpi eq, %arg2, %c0_i32_8 : i32
    %12 = arith.extui %11 : i1 to i32
    %c0_i32_9 = arith.constant 0 : i32
    %13 = arith.cmpi ne, %12, %c0_i32_9 : i32
    scf.if %13 {
      %c0_10 = arith.constant 0 : index
      %c0_11 = arith.constant 0 : index
      %14 = vector.load %arg7[%c0_10, %c0_11] : memref<32x384xf32, #tpu.memory_space<vmem>>, vector<32x384xf32>
      %c0_12 = arith.constant 0 : index
      %c0_13 = arith.constant 0 : index
      %15 = vector.load %arg5[%c0_12, %c0_13] : memref<1x384xf32, #tpu.memory_space<vmem>>, vector<1x384xf32>
      %16 = vector.broadcast %15 : vector<1x384xf32> to vector<32x384xf32>
      %17 = arith.addf %14, %16 : vector<32x384xf32>
      %c0_14 = arith.constant 0 : index
      %c0_15 = arith.constant 0 : index
      %18 = vector.load %arg6[%c0_14, %c0_15] : memref<32x384xf32, #tpu.memory_space<vmem>>, vector<32x384xf32>
      tpu.vector_store %arg6[%c0_14, %c0_15], %17 {strides = array<i32>} : memref<32x384xf32, #tpu.memory_space<vmem>>, vector<32x384xf32>,
    } else {
    }
    return
  }
  func.func @transform_0(%arg0: i32, %arg1: i32, %arg2: i32) -> (i32, i32) {
    %c0_i32 = arith.constant 0 : i32
    return %arg0, %arg2 : i32, i32
  }
  func.func @transform_1(%arg0: i32, %arg1: i32, %arg2: i32) -> (i32, i32) {
    %c0_i32 = arith.constant 0 : i32
    return %arg2, %arg1 : i32, i32
  }
  func.func @transform_2(%arg0: i32, %arg1: i32, %arg2: i32) -> (i32, i32) {
    %c0_i32 = arith.constant 0 : i32
    %c0_i32_0 = arith.constant 0 : i32
    return %c0_i32, %arg1 : i32, i32
  }
  func.func @transform_3(%arg0: i32, %arg1: i32, %arg2: i32) -> (i32, i32) {
    %c0_i32 = arith.constant 0 : i32
    return %arg0, %arg1 : i32, i32
  }
}

module attributes {stable_mosaic.version = 11 : i64} {
  func.func @_attention_kernel(%arg0: i32, %arg1: memref<16x2x32xf32, #tpu.memory_space<vmem>>, %arg2: memref<16x2x32xf32, #tpu.memory_space<vmem>>, %arg3: memref<16x2x32xf32, #tpu.memory_space<vmem>>, %arg4: memref<16x2x32xf32, #tpu.memory_space<vmem>>) attributes {dimension_semantics = [#tpu.dimension_semantics<parallel>], iteration_bounds = array<i64: 4>, scalar_prefetch = 0 : i64, scratch_operands = 0 : i64, tpu.core_type = #tpu.core_type<tc>, window_params = [{transform_indices = @transform_0, window_bounds = array<i64: 16, 2, 32>}, {transform_indices = @transform_1, window_bounds = array<i64: 16, 2, 32>}, {transform_indices = @transform_2, window_bounds = array<i64: 16, 2, 32>}, {transform_indices = @transform_3, window_bounds = array<i64: 16, 2, 32>}]} {
    %c0 = arith.constant 0 : index
    %c0_0 = arith.constant 0 : index
    %c0_1 = arith.constant 0 : index
    %0 = vector.load %arg1[%c0, %c0_0, %c0_1] : memref<16x2x32xf32, #tpu.memory_space<vmem>>, vector<16x2x32xf32>
    %c0_2 = arith.constant 0 : index
    %c0_3 = arith.constant 0 : index
    %c0_4 = arith.constant 0 : index
    %1 = vector.load %arg2[%c0_2, %c0_3, %c0_4] : memref<16x2x32xf32, #tpu.memory_space<vmem>>, vector<16x2x32xf32>
    %c0_5 = arith.constant 0 : index
    %c0_6 = arith.constant 0 : index
    %c0_7 = arith.constant 0 : index
    %2 = vector.load %arg3[%c0_5, %c0_6, %c0_7] : memref<16x2x32xf32, #tpu.memory_space<vmem>>, vector<16x2x32xf32>
    %3 = arith.truncf %0 : vector<16x2x32xf32> to vector<16x2x32xbf16>
    %4 = arith.truncf %1 : vector<16x2x32xf32> to vector<16x2x32xbf16>
    "tpu.trace_start"() <{level = 10 : i32, message = "bqd,bkd->bqk"}> : () -> ()
    %cst = arith.constant dense<0.000000e+00> : vector<16x2x2xf32>
    %5 = tpu.matmul %3, %4, %cst {dimension_numbers = #tpu.dot_dimension_numbers<[2], [2], [1], [1], [0, 0, 0, 1, 1, 1], [0], [0]>} : vector<16x2x32xbf16>, vector<16x2x32xbf16>, vector<16x2x2xf32> -> vector<16x2x2xf32>
    "tpu.trace_stop"() : () -> ()
    %cst_8 = arith.constant dense<0xFF800000> : vector<16x2xf32>
    %6 = vector.multi_reduction <maximumf>, %5, %cst_8 [2] : vector<16x2x2xf32> to vector<16x2xf32>
    %7 = vector.shape_cast %6 : vector<16x2xf32> to vector<16x2x1xf32>
    %8 = vector.broadcast %7 : vector<16x2x1xf32> to vector<16x2x2xf32>
    %9 = arith.subf %5, %8 : vector<16x2x2xf32>
    %10 = math.exp %9 : vector<16x2x2xf32>
    %cst_9 = arith.constant dense<0.000000e+00> : vector<16x2xf32>
    %11 = vector.multi_reduction <add>, %10, %cst_9 [2] : vector<16x2x2xf32> to vector<16x2xf32>
    %12 = vector.shape_cast %11 : vector<16x2xf32> to vector<16x2x1xf32>
    %13 = tpu.reciprocal %12 {approx = true} : vector<16x2x1xf32> -> vector<16x2x1xf32>
    %14 = vector.broadcast %13 : vector<16x2x1xf32> to vector<16x2x2xf32>
    %15 = arith.mulf %10, %14 : vector<16x2x2xf32>
    %16 = arith.truncf %15 : vector<16x2x2xf32> to vector<16x2x2xbf16>
    %17 = arith.truncf %2 : vector<16x2x32xf32> to vector<16x2x32xbf16>
    "tpu.trace_start"() <{level = 10 : i32, message = "bqk,bkd->bqd"}> : () -> ()
    %cst_10 = arith.constant dense<0.000000e+00> : vector<16x2x32xf32>
    %18 = tpu.matmul %16, %17, %cst_10 {dimension_numbers = #tpu.dot_dimension_numbers<[2], [1], [1], [2], [0, 0, 0, 1, 1, 2], [0], [0]>} : vector<16x2x2xbf16>, vector<16x2x32xbf16>, vector<16x2x32xf32> -> vector<16x2x32xf32>
    "tpu.trace_stop"() : () -> ()
    %c0_11 = arith.constant 0 : index
    %c0_12 = arith.constant 0 : index
    %c0_13 = arith.constant 0 : index
    %19 = vector.load %arg4[%c0_11, %c0_12, %c0_13] : memref<16x2x32xf32, #tpu.memory_space<vmem>>, vector<16x2x32xf32>
    tpu.vector_store %arg4[%c0_11, %c0_12, %c0_13], %18 {strides = array<i32>} : memref<16x2x32xf32, #tpu.memory_space<vmem>>, vector<16x2x32xf32>,
    return
  }
  func.func @transform_0(%arg0: i32) -> (i32, i32, i32) {
    %c0_i32 = arith.constant 0 : i32
    %c0_i32_0 = arith.constant 0 : i32
    %c0_i32_1 = arith.constant 0 : i32
    return %arg0, %c0_i32, %c0_i32_0 : i32, i32, i32
  }
  func.func @transform_1(%arg0: i32) -> (i32, i32, i32) {
    %c0_i32 = arith.constant 0 : i32
    %c0_i32_0 = arith.constant 0 : i32
    %c0_i32_1 = arith.constant 0 : i32
    return %arg0, %c0_i32, %c0_i32_0 : i32, i32, i32
  }
  func.func @transform_2(%arg0: i32) -> (i32, i32, i32) {
    %c0_i32 = arith.constant 0 : i32
    %c0_i32_0 = arith.constant 0 : i32
    %c0_i32_1 = arith.constant 0 : i32
    return %arg0, %c0_i32, %c0_i32_0 : i32, i32, i32
  }
  func.func @transform_3(%arg0: i32) -> (i32, i32, i32) {
    %c0_i32 = arith.constant 0 : i32
    %c0_i32_0 = arith.constant 0 : i32
    %c0_i32_1 = arith.constant 0 : i32
    return %arg0, %c0_i32, %c0_i32_0 : i32, i32, i32
  }
}

module attributes {stable_mosaic.version = 11 : i64} {
  func.func @_proj_add_ln_kernel(%arg0: i32, %arg1: memref<32x128xf32, #tpu.memory_space<vmem>>, %arg2: memref<128x128xf32, #tpu.memory_space<vmem>>, %arg3: memref<1x128xf32, #tpu.memory_space<vmem>>, %arg4: memref<32x128xf32, #tpu.memory_space<vmem>>, %arg5: memref<1x128xf32, #tpu.memory_space<vmem>>, %arg6: memref<1x128xf32, #tpu.memory_space<vmem>>, %arg7: memref<32x128xf32, #tpu.memory_space<vmem>>) attributes {dimension_semantics = [#tpu.dimension_semantics<parallel>], iteration_bounds = array<i64: 1>, scalar_prefetch = 0 : i64, scratch_operands = 0 : i64, tpu.core_type = #tpu.core_type<tc>, window_params = [{transform_indices = @transform_0, window_bounds = array<i64: 32, 128>}, {pipeline_mode = #tpu.pipeline_mode<synchronous>, transform_indices = @transform_1, window_bounds = array<i64: 128, 128>}, {pipeline_mode = #tpu.pipeline_mode<synchronous>, transform_indices = @transform_2, window_bounds = array<i64: 1, 128>}, {transform_indices = @transform_3, window_bounds = array<i64: 32, 128>}, {pipeline_mode = #tpu.pipeline_mode<synchronous>, transform_indices = @transform_4, window_bounds = array<i64: 1, 128>}, {pipeline_mode = #tpu.pipeline_mode<synchronous>, transform_indices = @transform_5, window_bounds = array<i64: 1, 128>}, {transform_indices = @transform_6, window_bounds = array<i64: 32, 128>}]} {
    %c0 = arith.constant 0 : index
    %c0_0 = arith.constant 0 : index
    %0 = vector.load %arg1[%c0, %c0_0] : memref<32x128xf32, #tpu.memory_space<vmem>>, vector<32x128xf32>
    %1 = arith.truncf %0 : vector<32x128xf32> to vector<32x128xbf16>
    %c0_1 = arith.constant 0 : index
    %c0_2 = arith.constant 0 : index
    %2 = vector.load %arg2[%c0_1, %c0_2] : memref<128x128xf32, #tpu.memory_space<vmem>>, vector<128x128xf32>
    %3 = arith.truncf %2 : vector<128x128xf32> to vector<128x128xbf16>
    %cst = arith.constant dense<0.000000e+00> : vector<32x128xf32>
    %4 = tpu.matmul %1, %3, %cst {dimension_numbers = #tpu.dot_dimension_numbers<[1], [0], [0], [1], [0, 0, 1, 1], [], []>} : vector<32x128xbf16>, vector<128x128xbf16>, vector<32x128xf32> -> vector<32x128xf32>
    %c0_3 = arith.constant 0 : index
    %c0_4 = arith.constant 0 : index
    %5 = vector.load %arg3[%c0_3, %c0_4] : memref<1x128xf32, #tpu.memory_space<vmem>>, vector<1x128xf32>
    %6 = vector.broadcast %5 : vector<1x128xf32> to vector<32x128xf32>
    %7 = arith.addf %4, %6 : vector<32x128xf32>
    %c0_5 = arith.constant 0 : index
    %c0_6 = arith.constant 0 : index
    %8 = vector.load %arg4[%c0_5, %c0_6] : memref<32x128xf32, #tpu.memory_space<vmem>>, vector<32x128xf32>
    %9 = arith.addf %8, %7 : vector<32x128xf32>
    %c0_7 = arith.constant 0 : index
    %c0_8 = arith.constant 0 : index
    %10 = vector.load %arg5[%c0_7, %c0_8] : memref<1x128xf32, #tpu.memory_space<vmem>>, vector<1x128xf32>
    %c0_9 = arith.constant 0 : index
    %c0_10 = arith.constant 0 : index
    %11 = vector.load %arg6[%c0_9, %c0_10] : memref<1x128xf32, #tpu.memory_space<vmem>>, vector<1x128xf32>
    %cst_11 = arith.constant dense<0.000000e+00> : vector<32xf32>
    %12 = vector.multi_reduction <add>, %9, %cst_11 [1] : vector<32x128xf32> to vector<32xf32>
    %13 = vector.shape_cast %12 : vector<32xf32> to vector<32x1xf32>
    %cst_12 = arith.constant 1.280000e+02 : f32
    %14 = vector.broadcast %cst_12 : f32 to vector<32x1xf32>
    %15 = arith.divf %13, %14 : vector<32x1xf32>
    %16 = vector.broadcast %15 : vector<32x1xf32> to vector<32x128xf32>
    %17 = arith.subf %9, %16 : vector<32x128xf32>
    %18 = arith.mulf %17, %17 : vector<32x128xf32>
    %cst_13 = arith.constant dense<0.000000e+00> : vector<32xf32>
    %19 = vector.multi_reduction <add>, %18, %cst_13 [1] : vector<32x128xf32> to vector<32xf32>
    %20 = vector.shape_cast %19 : vector<32xf32> to vector<32x1xf32>
    %cst_14 = arith.constant 1.280000e+02 : f32
    %21 = vector.broadcast %cst_14 : f32 to vector<32x1xf32>
    %22 = arith.divf %20, %21 : vector<32x1xf32>
    %23 = vector.broadcast %15 : vector<32x1xf32> to vector<32x128xf32>
    %24 = arith.subf %9, %23 : vector<32x128xf32>
    %cst_15 = arith.constant 9.99999974E-6 : f32
    %25 = vector.broadcast %cst_15 : f32 to vector<32x1xf32>
    %26 = arith.addf %22, %25 : vector<32x1xf32>
    %27 = math.rsqrt %26 : vector<32x1xf32>
    %28 = vector.broadcast %27 : vector<32x1xf32> to vector<32x128xf32>
    %29 = arith.mulf %24, %28 : vector<32x128xf32>
    %30 = vector.broadcast %10 : vector<1x128xf32> to vector<32x128xf32>
    %31 = arith.mulf %29, %30 : vector<32x128xf32>
    %32 = vector.broadcast %11 : vector<1x128xf32> to vector<32x128xf32>
    %33 = arith.addf %31, %32 : vector<32x128xf32>
    %c0_16 = arith.constant 0 : index
    %c0_17 = arith.constant 0 : index
    %34 = vector.load %arg7[%c0_16, %c0_17] : memref<32x128xf32, #tpu.memory_space<vmem>>, vector<32x128xf32>
    tpu.vector_store %arg7[%c0_16, %c0_17], %33 {strides = array<i32>} : memref<32x128xf32, #tpu.memory_space<vmem>>, vector<32x128xf32>,
    return
  }
  func.func @transform_0(%arg0: i32) -> (i32, i32) {
    %c0_i32 = arith.constant 0 : i32
    %c0_i32_0 = arith.constant 0 : i32
    return %arg0, %c0_i32 : i32, i32
  }
  func.func @transform_1(%arg0: i32) -> (i32, i32) {
    %c0_i32 = arith.constant 0 : i32
    %c0_i32_0 = arith.constant 0 : i32
    %c0_i32_1 = arith.constant 0 : i32
    return %c0_i32, %c0_i32_0 : i32, i32
  }
  func.func @transform_2(%arg0: i32) -> (i32, i32) {
    %c0_i32 = arith.constant 0 : i32
    %c0_i32_0 = arith.constant 0 : i32
    %c0_i32_1 = arith.constant 0 : i32
    return %c0_i32, %c0_i32_0 : i32, i32
  }
  func.func @transform_3(%arg0: i32) -> (i32, i32) {
    %c0_i32 = arith.constant 0 : i32
    %c0_i32_0 = arith.constant 0 : i32
    return %arg0, %c0_i32 : i32, i32
  }
  func.func @transform_4(%arg0: i32) -> (i32, i32) {
    %c0_i32 = arith.constant 0 : i32
    %c0_i32_0 = arith.constant 0 : i32
    %c0_i32_1 = arith.constant 0 : i32
    return %c0_i32, %c0_i32_0 : i32, i32
  }
  func.func @transform_5(%arg0: i32) -> (i32, i32) {
    %c0_i32 = arith.constant 0 : i32
    %c0_i32_0 = arith.constant 0 : i32
    %c0_i32_1 = arith.constant 0 : i32
    return %c0_i32, %c0_i32_0 : i32, i32
  }
  func.func @transform_6(%arg0: i32) -> (i32, i32) {
    %c0_i32 = arith.constant 0 : i32
    %c0_i32_0 = arith.constant 0 : i32
    return %arg0, %c0_i32 : i32, i32
  }
}

module attributes {stable_mosaic.version = 11 : i64} {
  func.func @_matmul_kernel(%arg0: i32, %arg1: i32, %arg2: i32, %arg3: memref<32x128xf32, #tpu.memory_space<vmem>>, %arg4: memref<128x256xf32, #tpu.memory_space<vmem>>, %arg5: memref<1x256xf32, #tpu.memory_space<vmem>>, %arg6: memref<32x256xf32, #tpu.memory_space<vmem>>, %arg7: memref<32x256xf32, #tpu.memory_space<vmem>>) attributes {dimension_semantics = [#tpu.dimension_semantics<parallel>, #tpu.dimension_semantics<parallel>, #tpu.dimension_semantics<arbitrary>], iteration_bounds = array<i64: 1, 1, 1>, scalar_prefetch = 0 : i64, scratch_operands = 1 : i64, tpu.core_type = #tpu.core_type<tc>, window_params = [{transform_indices = @transform_0, window_bounds = array<i64: 32, 128>}, {transform_indices = @transform_1, window_bounds = array<i64: 128, 256>}, {transform_indices = @transform_2, window_bounds = array<i64: 1, 256>}, {transform_indices = @transform_3, window_bounds = array<i64: 32, 256>}]} {
    %c0_i32 = arith.constant 0 : i32
    %0 = arith.cmpi eq, %arg2, %c0_i32 : i32
    %1 = arith.extui %0 : i1 to i32
    %c0_i32_0 = arith.constant 0 : i32
    %2 = arith.cmpi ne, %1, %c0_i32_0 : i32
    scf.if %2 {
      %cst_10 = arith.constant 0.000000e+00 : f32
      %14 = vector.broadcast %cst_10 : f32 to vector<32x256xf32>
      %c0_11 = arith.constant 0 : index
      %c0_12 = arith.constant 0 : index
      %15 = vector.load %arg7[%c0_11, %c0_12] : memref<32x256xf32, #tpu.memory_space<vmem>>, vector<32x256xf32>
      tpu.vector_store %arg7[%c0_11, %c0_12], %14 {strides = array<i32>} : memref<32x256xf32, #tpu.memory_space<vmem>>, vector<32x256xf32>,
    } else {
    }
    %c0 = arith.constant 0 : index
    %c0_1 = arith.constant 0 : index
    %3 = vector.load %arg7[%c0, %c0_1] : memref<32x256xf32, #tpu.memory_space<vmem>>, vector<32x256xf32>
    %c0_2 = arith.constant 0 : index
    %c0_3 = arith.constant 0 : index
    %4 = vector.load %arg3[%c0_2, %c0_3] : memref<32x128xf32, #tpu.memory_space<vmem>>, vector<32x128xf32>
    %5 = arith.truncf %4 : vector<32x128xf32> to vector<32x128xbf16>
    %c0_4 = arith.constant 0 : index
    %c0_5 = arith.constant 0 : index
    %6 = vector.load %arg4[%c0_4, %c0_5] : memref<128x256xf32, #tpu.memory_space<vmem>>, vector<128x256xf32>
    %7 = arith.truncf %6 : vector<128x256xf32> to vector<128x256xbf16>
    %cst = arith.constant dense<0.000000e+00> : vector<32x256xf32>
    %8 = tpu.matmul %5, %7, %cst {dimension_numbers = #tpu.dot_dimension_numbers<[1], [0], [0], [1], [0, 0, 1, 1], [], []>} : vector<32x128xbf16>, vector<128x256xbf16>, vector<32x256xf32> -> vector<32x256xf32>
    %9 = arith.addf %3, %8 : vector<32x256xf32>
    %c0_6 = arith.constant 0 : index
    %c0_7 = arith.constant 0 : index
    %10 = vector.load %arg7[%c0_6, %c0_7] : memref<32x256xf32, #tpu.memory_space<vmem>>, vector<32x256xf32>
    tpu.vector_store %arg7[%c0_6, %c0_7], %9 {strides = array<i32>} : memref<32x256xf32, #tpu.memory_space<vmem>>, vector<32x256xf32>,
    %c0_i32_8 = arith.constant 0 : i32
    %11 = arith.cmpi eq, %arg2, %c0_i32_8 : i32
    %12 = arith.extui %11 : i1 to i32
    %c0_i32_9 = arith.constant 0 : i32
    %13 = arith.cmpi ne, %12, %c0_i32_9 : i32
    scf.if %13 {
      %c0_10 = arith.constant 0 : index
      %c0_11 = arith.constant 0 : index
      %14 = vector.load %arg7[%c0_10, %c0_11] : memref<32x256xf32, #tpu.memory_space<vmem>>, vector<32x256xf32>
      %c0_12 = arith.constant 0 : index
      %c0_13 = arith.constant 0 : index
      %15 = vector.load %arg5[%c0_12, %c0_13] : memref<1x256xf32, #tpu.memory_space<vmem>>, vector<1x256xf32>
      %16 = vector.broadcast %15 : vector<1x256xf32> to vector<32x256xf32>
      %17 = arith.addf %14, %16 : vector<32x256xf32>
      %c0_14 = arith.constant 0 : index
      %c0_15 = arith.constant 0 : index
      %18 = vector.load %arg6[%c0_14, %c0_15] : memref<32x256xf32, #tpu.memory_space<vmem>>, vector<32x256xf32>
      tpu.vector_store %arg6[%c0_14, %c0_15], %17 {strides = array<i32>} : memref<32x256xf32, #tpu.memory_space<vmem>>, vector<32x256xf32>,
    } else {
    }
    return
  }
  func.func @transform_0(%arg0: i32, %arg1: i32, %arg2: i32) -> (i32, i32) {
    %c0_i32 = arith.constant 0 : i32
    return %arg0, %arg2 : i32, i32
  }
  func.func @transform_1(%arg0: i32, %arg1: i32, %arg2: i32) -> (i32, i32) {
    %c0_i32 = arith.constant 0 : i32
    return %arg2, %arg1 : i32, i32
  }
  func.func @transform_2(%arg0: i32, %arg1: i32, %arg2: i32) -> (i32, i32) {
    %c0_i32 = arith.constant 0 : i32
    %c0_i32_0 = arith.constant 0 : i32
    return %c0_i32, %arg1 : i32, i32
  }
  func.func @transform_3(%arg0: i32, %arg1: i32, %arg2: i32) -> (i32, i32) {
    %c0_i32 = arith.constant 0 : i32
    return %arg0, %arg1 : i32, i32
  }
}

module attributes {stable_mosaic.version = 11 : i64} {
  func.func @_matmul_kernel(%arg0: i32, %arg1: i32, %arg2: i32, %arg3: memref<32x128xf32, #tpu.memory_space<vmem>>, %arg4: memref<128x128xf32, #tpu.memory_space<vmem>>, %arg5: memref<1x128xf32, #tpu.memory_space<vmem>>, %arg6: memref<32x128xf32, #tpu.memory_space<vmem>>, %arg7: memref<32x128xf32, #tpu.memory_space<vmem>>) attributes {dimension_semantics = [#tpu.dimension_semantics<parallel>, #tpu.dimension_semantics<parallel>, #tpu.dimension_semantics<arbitrary>], iteration_bounds = array<i64: 1, 1, 1>, scalar_prefetch = 0 : i64, scratch_operands = 1 : i64, tpu.core_type = #tpu.core_type<tc>, window_params = [{transform_indices = @transform_0, window_bounds = array<i64: 32, 128>}, {transform_indices = @transform_1, window_bounds = array<i64: 128, 128>}, {transform_indices = @transform_2, window_bounds = array<i64: 1, 128>}, {transform_indices = @transform_3, window_bounds = array<i64: 32, 128>}]} {
    %c0_i32 = arith.constant 0 : i32
    %0 = arith.cmpi eq, %arg2, %c0_i32 : i32
    %1 = arith.extui %0 : i1 to i32
    %c0_i32_0 = arith.constant 0 : i32
    %2 = arith.cmpi ne, %1, %c0_i32_0 : i32
    scf.if %2 {
      %cst_10 = arith.constant 0.000000e+00 : f32
      %14 = vector.broadcast %cst_10 : f32 to vector<32x128xf32>
      %c0_11 = arith.constant 0 : index
      %c0_12 = arith.constant 0 : index
      %15 = vector.load %arg7[%c0_11, %c0_12] : memref<32x128xf32, #tpu.memory_space<vmem>>, vector<32x128xf32>
      tpu.vector_store %arg7[%c0_11, %c0_12], %14 {strides = array<i32>} : memref<32x128xf32, #tpu.memory_space<vmem>>, vector<32x128xf32>,
    } else {
    }
    %c0 = arith.constant 0 : index
    %c0_1 = arith.constant 0 : index
    %3 = vector.load %arg7[%c0, %c0_1] : memref<32x128xf32, #tpu.memory_space<vmem>>, vector<32x128xf32>
    %c0_2 = arith.constant 0 : index
    %c0_3 = arith.constant 0 : index
    %4 = vector.load %arg3[%c0_2, %c0_3] : memref<32x128xf32, #tpu.memory_space<vmem>>, vector<32x128xf32>
    %5 = arith.truncf %4 : vector<32x128xf32> to vector<32x128xbf16>
    %c0_4 = arith.constant 0 : index
    %c0_5 = arith.constant 0 : index
    %6 = vector.load %arg4[%c0_4, %c0_5] : memref<128x128xf32, #tpu.memory_space<vmem>>, vector<128x128xf32>
    %7 = arith.truncf %6 : vector<128x128xf32> to vector<128x128xbf16>
    %cst = arith.constant dense<0.000000e+00> : vector<32x128xf32>
    %8 = tpu.matmul %5, %7, %cst {dimension_numbers = #tpu.dot_dimension_numbers<[1], [0], [0], [1], [0, 0, 1, 1], [], []>} : vector<32x128xbf16>, vector<128x128xbf16>, vector<32x128xf32> -> vector<32x128xf32>
    %9 = arith.addf %3, %8 : vector<32x128xf32>
    %c0_6 = arith.constant 0 : index
    %c0_7 = arith.constant 0 : index
    %10 = vector.load %arg7[%c0_6, %c0_7] : memref<32x128xf32, #tpu.memory_space<vmem>>, vector<32x128xf32>
    tpu.vector_store %arg7[%c0_6, %c0_7], %9 {strides = array<i32>} : memref<32x128xf32, #tpu.memory_space<vmem>>, vector<32x128xf32>,
    %c0_i32_8 = arith.constant 0 : i32
    %11 = arith.cmpi eq, %arg2, %c0_i32_8 : i32
    %12 = arith.extui %11 : i1 to i32
    %c0_i32_9 = arith.constant 0 : i32
    %13 = arith.cmpi ne, %12, %c0_i32_9 : i32
    scf.if %13 {
      %c0_10 = arith.constant 0 : index
      %c0_11 = arith.constant 0 : index
      %14 = vector.load %arg7[%c0_10, %c0_11] : memref<32x128xf32, #tpu.memory_space<vmem>>, vector<32x128xf32>
      %c0_12 = arith.constant 0 : index
      %c0_13 = arith.constant 0 : index
      %15 = vector.load %arg5[%c0_12, %c0_13] : memref<1x128xf32, #tpu.memory_space<vmem>>, vector<1x128xf32>
      %16 = vector.broadcast %15 : vector<1x128xf32> to vector<32x128xf32>
      %17 = arith.addf %14, %16 : vector<32x128xf32>
      %c0_14 = arith.constant 0 : index
      %c0_15 = arith.constant 0 : index
      %18 = vector.load %arg6[%c0_14, %c0_15] : memref<32x128xf32, #tpu.memory_space<vmem>>, vector<32x128xf32>
      tpu.vector_store %arg6[%c0_14, %c0_15], %17 {strides = array<i32>} : memref<32x128xf32, #tpu.memory_space<vmem>>, vector<32x128xf32>,
    } else {
    }
    return
  }
  func.func @transform_0(%arg0: i32, %arg1: i32, %arg2: i32) -> (i32, i32) {
    %c0_i32 = arith.constant 0 : i32
    return %arg0, %arg2 : i32, i32
  }
  func.func @transform_1(%arg0: i32, %arg1: i32, %arg2: i32) -> (i32, i32) {
    %c0_i32 = arith.constant 0 : i32
    return %arg2, %arg1 : i32, i32
  }
  func.func @transform_2(%arg0: i32, %arg1: i32, %arg2: i32) -> (i32, i32) {
    %c0_i32 = arith.constant 0 : i32
    %c0_i32_0 = arith.constant 0 : i32
    return %c0_i32, %arg1 : i32, i32
  }
  func.func @transform_3(%arg0: i32, %arg1: i32, %arg2: i32) -> (i32, i32) {
    %c0_i32 = arith.constant 0 : i32
    return %arg0, %arg1 : i32, i32
  }
}

module attributes {stable_mosaic.version = 11 : i64} {
  func.func @_ffn_add_ln_kernel(%arg0: i32, %arg1: memref<32x128xf32, #tpu.memory_space<vmem>>, %arg2: memref<128x256xf32, #tpu.memory_space<vmem>>, %arg3: memref<1x256xf32, #tpu.memory_space<vmem>>, %arg4: memref<256x128xf32, #tpu.memory_space<vmem>>, %arg5: memref<1x128xf32, #tpu.memory_space<vmem>>, %arg6: memref<1x128xf32, #tpu.memory_space<vmem>>, %arg7: memref<1x128xf32, #tpu.memory_space<vmem>>, %arg8: memref<32x128xf32, #tpu.memory_space<vmem>>) attributes {dimension_semantics = [#tpu.dimension_semantics<parallel>], iteration_bounds = array<i64: 1>, scalar_prefetch = 0 : i64, scratch_operands = 0 : i64, tpu.core_type = #tpu.core_type<tc>, window_params = [{transform_indices = @transform_0, window_bounds = array<i64: 32, 128>}, {pipeline_mode = #tpu.pipeline_mode<synchronous>, transform_indices = @transform_1, window_bounds = array<i64: 128, 256>}, {pipeline_mode = #tpu.pipeline_mode<synchronous>, transform_indices = @transform_2, window_bounds = array<i64: 1, 256>}, {pipeline_mode = #tpu.pipeline_mode<synchronous>, transform_indices = @transform_3, window_bounds = array<i64: 256, 128>}, {pipeline_mode = #tpu.pipeline_mode<synchronous>, transform_indices = @transform_4, window_bounds = array<i64: 1, 128>}, {pipeline_mode = #tpu.pipeline_mode<synchronous>, transform_indices = @transform_5, window_bounds = array<i64: 1, 128>}, {pipeline_mode = #tpu.pipeline_mode<synchronous>, transform_indices = @transform_6, window_bounds = array<i64: 1, 128>}, {transform_indices = @transform_7, window_bounds = array<i64: 32, 128>}]} {
    %c0 = arith.constant 0 : index
    %c0_0 = arith.constant 0 : index
    %0 = vector.load %arg1[%c0, %c0_0] : memref<32x128xf32, #tpu.memory_space<vmem>>, vector<32x128xf32>
    %1 = arith.truncf %0 : vector<32x128xf32> to vector<32x128xbf16>
    %c0_1 = arith.constant 0 : index
    %c0_2 = arith.constant 0 : index
    %2 = vector.load %arg2[%c0_1, %c0_2] : memref<128x256xf32, #tpu.memory_space<vmem>>, vector<128x256xf32>
    %3 = arith.truncf %2 : vector<128x256xf32> to vector<128x256xbf16>
    %cst = arith.constant dense<0.000000e+00> : vector<32x256xf32>
    %4 = tpu.matmul %1, %3, %cst {dimension_numbers = #tpu.dot_dimension_numbers<[1], [0], [0], [1], [0, 0, 1, 1], [], []>} : vector<32x128xbf16>, vector<128x256xbf16>, vector<32x256xf32> -> vector<32x256xf32>
    %c0_3 = arith.constant 0 : index
    %c0_4 = arith.constant 0 : index
    %5 = vector.load %arg3[%c0_3, %c0_4] : memref<1x256xf32, #tpu.memory_space<vmem>>, vector<1x256xf32>
    %6 = vector.broadcast %5 : vector<1x256xf32> to vector<32x256xf32>
    %7 = arith.addf %4, %6 : vector<32x256xf32>
    %cst_5 = arith.constant 0.000000e+00 : f32
    %8 = vector.broadcast %cst_5 : f32 to vector<32x256xf32>
    %9 = arith.maximumf %7, %8 : vector<32x256xf32>
    %10 = arith.truncf %9 : vector<32x256xf32> to vector<32x256xbf16>
    %c0_6 = arith.constant 0 : index
    %c0_7 = arith.constant 0 : index
    %11 = vector.load %arg4[%c0_6, %c0_7] : memref<256x128xf32, #tpu.memory_space<vmem>>, vector<256x128xf32>
    %12 = arith.truncf %11 : vector<256x128xf32> to vector<256x128xbf16>
    %cst_8 = arith.constant dense<0.000000e+00> : vector<32x128xf32>
    %13 = tpu.matmul %10, %12, %cst_8 {dimension_numbers = #tpu.dot_dimension_numbers<[1], [0], [0], [1], [0, 0, 1, 1], [], []>} : vector<32x256xbf16>, vector<256x128xbf16>, vector<32x128xf32> -> vector<32x128xf32>
    %c0_9 = arith.constant 0 : index
    %c0_10 = arith.constant 0 : index
    %14 = vector.load %arg5[%c0_9, %c0_10] : memref<1x128xf32, #tpu.memory_space<vmem>>, vector<1x128xf32>
    %15 = vector.broadcast %14 : vector<1x128xf32> to vector<32x128xf32>
    %16 = arith.addf %13, %15 : vector<32x128xf32>
    %17 = arith.addf %0, %16 : vector<32x128xf32>
    %c0_11 = arith.constant 0 : index
    %c0_12 = arith.constant 0 : index
    %18 = vector.load %arg6[%c0_11, %c0_12] : memref<1x128xf32, #tpu.memory_space<vmem>>, vector<1x128xf32>
    %c0_13 = arith.constant 0 : index
    %c0_14 = arith.constant 0 : index
    %19 = vector.load %arg7[%c0_13, %c0_14] : memref<1x128xf32, #tpu.memory_space<vmem>>, vector<1x128xf32>
    %cst_15 = arith.constant dense<0.000000e+00> : vector<32xf32>
    %20 = vector.multi_reduction <add>, %17, %cst_15 [1] : vector<32x128xf32> to vector<32xf32>
    %21 = vector.shape_cast %20 : vector<32xf32> to vector<32x1xf32>
    %cst_16 = arith.constant 1.280000e+02 : f32
    %22 = vector.broadcast %cst_16 : f32 to vector<32x1xf32>
    %23 = arith.divf %21, %22 : vector<32x1xf32>
    %24 = vector.broadcast %23 : vector<32x1xf32> to vector<32x128xf32>
    %25 = arith.subf %17, %24 : vector<32x128xf32>
    %26 = arith.mulf %25, %25 : vector<32x128xf32>
    %cst_17 = arith.constant dense<0.000000e+00> : vector<32xf32>
    %27 = vector.multi_reduction <add>, %26, %cst_17 [1] : vector<32x128xf32> to vector<32xf32>
    %28 = vector.shape_cast %27 : vector<32xf32> to vector<32x1xf32>
    %cst_18 = arith.constant 1.280000e+02 : f32
    %29 = vector.broadcast %cst_18 : f32 to vector<32x1xf32>
    %30 = arith.divf %28, %29 : vector<32x1xf32>
    %31 = vector.broadcast %23 : vector<32x1xf32> to vector<32x128xf32>
    %32 = arith.subf %17, %31 : vector<32x128xf32>
    %cst_19 = arith.constant 9.99999974E-6 : f32
    %33 = vector.broadcast %cst_19 : f32 to vector<32x1xf32>
    %34 = arith.addf %30, %33 : vector<32x1xf32>
    %35 = math.rsqrt %34 : vector<32x1xf32>
    %36 = vector.broadcast %35 : vector<32x1xf32> to vector<32x128xf32>
    %37 = arith.mulf %32, %36 : vector<32x128xf32>
    %38 = vector.broadcast %18 : vector<1x128xf32> to vector<32x128xf32>
    %39 = arith.mulf %37, %38 : vector<32x128xf32>
    %40 = vector.broadcast %19 : vector<1x128xf32> to vector<32x128xf32>
    %41 = arith.addf %39, %40 : vector<32x128xf32>
    %c0_20 = arith.constant 0 : index
    %c0_21 = arith.constant 0 : index
    %42 = vector.load %arg8[%c0_20, %c0_21] : memref<32x128xf32, #tpu.memory_space<vmem>>, vector<32x128xf32>
    tpu.vector_store %arg8[%c0_20, %c0_21], %41 {strides = array<i32>} : memref<32x128xf32, #tpu.memory_space<vmem>>, vector<32x128xf32>,
    return
  }
  func.func @transform_0(%arg0: i32) -> (i32, i32) {
    %c0_i32 = arith.constant 0 : i32
    %c0_i32_0 = arith.constant 0 : i32
    return %arg0, %c0_i32 : i32, i32
  }
  func.func @transform_1(%arg0: i32) -> (i32, i32) {
    %c0_i32 = arith.constant 0 : i32
    %c0_i32_0 = arith.constant 0 : i32
    %c0_i32_1 = arith.constant 0 : i32
    return %c0_i32, %c0_i32_0 : i32, i32
  }
  func.func @transform_2(%arg0: i32) -> (i32, i32) {
    %c0_i32 = arith.constant 0 : i32
    %c0_i32_0 = arith.constant 0 : i32
    %c0_i32_1 = arith.constant 0 : i32
    return %c0_i32, %c0_i32_0 : i32, i32
  }
  func.func @transform_3(%arg0: i32) -> (i32, i32) {
    %c0_i32 = arith.constant 0 : i32
    %c0_i32_0 = arith.constant 0 : i32
    %c0_i32_1 = arith.constant 0 : i32
    return %c0_i32, %c0_i32_0 : i32, i32
  }
  func.func @transform_4(%arg0: i32) -> (i32, i32) {
    %c0_i32 = arith.constant 0 : i32
    %c0_i32_0 = arith.constant 0 : i32
    %c0_i32_1 = arith.constant 0 : i32
    return %c0_i32, %c0_i32_0 : i32, i32
  }
  func.func @transform_5(%arg0: i32) -> (i32, i32) {
    %c0_i32 = arith.constant 0 : i32
    %c0_i32_0 = arith.constant 0 : i32
    %c0_i32_1 = arith.constant 0 : i32
    return %c0_i32, %c0_i32_0 : i32, i32
  }
  func.func @transform_6(%arg0: i32) -> (i32, i32) {
    %c0_i32 = arith.constant 0 : i32
    %c0_i32_0 = arith.constant 0 : i32
    %c0_i32_1 = arith.constant 0 : i32
    return %c0_i32, %c0_i32_0 : i32, i32
  }
  func.func @transform_7(%arg0: i32) -> (i32, i32) {
    %c0_i32 = arith.constant 0 : i32
    %c0_i32_0 = arith.constant 0 : i32
    return %arg0, %c0_i32 : i32, i32
  }
}

module attributes {stable_mosaic.version = 11 : i64} {
  func.func @_matmul_kernel(%arg0: i32, %arg1: i32, %arg2: i32, %arg3: memref<32x128xf32, #tpu.memory_space<vmem>>, %arg4: memref<128x512xf32, #tpu.memory_space<vmem>>, %arg5: memref<1x512xf32, #tpu.memory_space<vmem>>, %arg6: memref<32x512xf32, #tpu.memory_space<vmem>>, %arg7: memref<32x512xf32, #tpu.memory_space<vmem>>) attributes {dimension_semantics = [#tpu.dimension_semantics<parallel>, #tpu.dimension_semantics<parallel>, #tpu.dimension_semantics<arbitrary>], iteration_bounds = array<i64: 1, 1, 1>, scalar_prefetch = 0 : i64, scratch_operands = 1 : i64, tpu.core_type = #tpu.core_type<tc>, window_params = [{transform_indices = @transform_0, window_bounds = array<i64: 32, 128>}, {transform_indices = @transform_1, window_bounds = array<i64: 128, 512>}, {transform_indices = @transform_2, window_bounds = array<i64: 1, 512>}, {transform_indices = @transform_3, window_bounds = array<i64: 32, 512>}]} {
    %c0_i32 = arith.constant 0 : i32
    %0 = arith.cmpi eq, %arg2, %c0_i32 : i32
    %1 = arith.extui %0 : i1 to i32
    %c0_i32_0 = arith.constant 0 : i32
    %2 = arith.cmpi ne, %1, %c0_i32_0 : i32
    scf.if %2 {
      %cst_10 = arith.constant 0.000000e+00 : f32
      %14 = vector.broadcast %cst_10 : f32 to vector<32x512xf32>
      %c0_11 = arith.constant 0 : index
      %c0_12 = arith.constant 0 : index
      %15 = vector.load %arg7[%c0_11, %c0_12] : memref<32x512xf32, #tpu.memory_space<vmem>>, vector<32x512xf32>
      tpu.vector_store %arg7[%c0_11, %c0_12], %14 {strides = array<i32>} : memref<32x512xf32, #tpu.memory_space<vmem>>, vector<32x512xf32>,
    } else {
    }
    %c0 = arith.constant 0 : index
    %c0_1 = arith.constant 0 : index
    %3 = vector.load %arg7[%c0, %c0_1] : memref<32x512xf32, #tpu.memory_space<vmem>>, vector<32x512xf32>
    %c0_2 = arith.constant 0 : index
    %c0_3 = arith.constant 0 : index
    %4 = vector.load %arg3[%c0_2, %c0_3] : memref<32x128xf32, #tpu.memory_space<vmem>>, vector<32x128xf32>
    %5 = arith.truncf %4 : vector<32x128xf32> to vector<32x128xbf16>
    %c0_4 = arith.constant 0 : index
    %c0_5 = arith.constant 0 : index
    %6 = vector.load %arg4[%c0_4, %c0_5] : memref<128x512xf32, #tpu.memory_space<vmem>>, vector<128x512xf32>
    %7 = arith.truncf %6 : vector<128x512xf32> to vector<128x512xbf16>
    %cst = arith.constant dense<0.000000e+00> : vector<32x512xf32>
    %8 = tpu.matmul %5, %7, %cst {dimension_numbers = #tpu.dot_dimension_numbers<[1], [0], [0], [1], [0, 0, 1, 1], [], []>} : vector<32x128xbf16>, vector<128x512xbf16>, vector<32x512xf32> -> vector<32x512xf32>
    %9 = arith.addf %3, %8 : vector<32x512xf32>
    %c0_6 = arith.constant 0 : index
    %c0_7 = arith.constant 0 : index
    %10 = vector.load %arg7[%c0_6, %c0_7] : memref<32x512xf32, #tpu.memory_space<vmem>>, vector<32x512xf32>
    tpu.vector_store %arg7[%c0_6, %c0_7], %9 {strides = array<i32>} : memref<32x512xf32, #tpu.memory_space<vmem>>, vector<32x512xf32>,
    %c0_i32_8 = arith.constant 0 : i32
    %11 = arith.cmpi eq, %arg2, %c0_i32_8 : i32
    %12 = arith.extui %11 : i1 to i32
    %c0_i32_9 = arith.constant 0 : i32
    %13 = arith.cmpi ne, %12, %c0_i32_9 : i32
    scf.if %13 {
      %c0_10 = arith.constant 0 : index
      %c0_11 = arith.constant 0 : index
      %14 = vector.load %arg7[%c0_10, %c0_11] : memref<32x512xf32, #tpu.memory_space<vmem>>, vector<32x512xf32>
      %c0_12 = arith.constant 0 : index
      %c0_13 = arith.constant 0 : index
      %15 = vector.load %arg5[%c0_12, %c0_13] : memref<1x512xf32, #tpu.memory_space<vmem>>, vector<1x512xf32>
      %16 = vector.broadcast %15 : vector<1x512xf32> to vector<32x512xf32>
      %17 = arith.addf %14, %16 : vector<32x512xf32>
      %c0_14 = arith.constant 0 : index
      %c0_15 = arith.constant 0 : index
      %18 = vector.load %arg6[%c0_14, %c0_15] : memref<32x512xf32, #tpu.memory_space<vmem>>, vector<32x512xf32>
      tpu.vector_store %arg6[%c0_14, %c0_15], %17 {strides = array<i32>} : memref<32x512xf32, #tpu.memory_space<vmem>>, vector<32x512xf32>,
    } else {
    }
    return
  }
  func.func @transform_0(%arg0: i32, %arg1: i32, %arg2: i32) -> (i32, i32) {
    %c0_i32 = arith.constant 0 : i32
    return %arg0, %arg2 : i32, i32
  }
  func.func @transform_1(%arg0: i32, %arg1: i32, %arg2: i32) -> (i32, i32) {
    %c0_i32 = arith.constant 0 : i32
    return %arg2, %arg1 : i32, i32
  }
  func.func @transform_2(%arg0: i32, %arg1: i32, %arg2: i32) -> (i32, i32) {
    %c0_i32 = arith.constant 0 : i32
    %c0_i32_0 = arith.constant 0 : i32
    return %c0_i32, %arg1 : i32, i32
  }
  func.func @transform_3(%arg0: i32, %arg1: i32, %arg2: i32) -> (i32, i32) {
    %c0_i32 = arith.constant 0 : i32
    return %arg0, %arg1 : i32, i32
  }
}

module attributes {stable_mosaic.version = 11 : i64} {
  func.func @_matmul_kernel(%arg0: i32, %arg1: i32, %arg2: i32, %arg3: memref<32x128xf32, #tpu.memory_space<vmem>>, %arg4: memref<128x384xf32, #tpu.memory_space<vmem>>, %arg5: memref<1x384xf32, #tpu.memory_space<vmem>>, %arg6: memref<32x384xf32, #tpu.memory_space<vmem>>, %arg7: memref<32x384xf32, #tpu.memory_space<vmem>>) attributes {dimension_semantics = [#tpu.dimension_semantics<parallel>, #tpu.dimension_semantics<parallel>, #tpu.dimension_semantics<arbitrary>], iteration_bounds = array<i64: 1, 1, 1>, scalar_prefetch = 0 : i64, scratch_operands = 1 : i64, tpu.core_type = #tpu.core_type<tc>, window_params = [{transform_indices = @transform_0, window_bounds = array<i64: 32, 128>}, {transform_indices = @transform_1, window_bounds = array<i64: 128, 384>}, {transform_indices = @transform_2, window_bounds = array<i64: 1, 384>}, {transform_indices = @transform_3, window_bounds = array<i64: 32, 384>}]} {
    %c0_i32 = arith.constant 0 : i32
    %0 = arith.cmpi eq, %arg2, %c0_i32 : i32
    %1 = arith.extui %0 : i1 to i32
    %c0_i32_0 = arith.constant 0 : i32
    %2 = arith.cmpi ne, %1, %c0_i32_0 : i32
    scf.if %2 {
      %cst_10 = arith.constant 0.000000e+00 : f32
      %14 = vector.broadcast %cst_10 : f32 to vector<32x384xf32>
      %c0_11 = arith.constant 0 : index
      %c0_12 = arith.constant 0 : index
      %15 = vector.load %arg7[%c0_11, %c0_12] : memref<32x384xf32, #tpu.memory_space<vmem>>, vector<32x384xf32>
      tpu.vector_store %arg7[%c0_11, %c0_12], %14 {strides = array<i32>} : memref<32x384xf32, #tpu.memory_space<vmem>>, vector<32x384xf32>,
    } else {
    }
    %c0 = arith.constant 0 : index
    %c0_1 = arith.constant 0 : index
    %3 = vector.load %arg7[%c0, %c0_1] : memref<32x384xf32, #tpu.memory_space<vmem>>, vector<32x384xf32>
    %c0_2 = arith.constant 0 : index
    %c0_3 = arith.constant 0 : index
    %4 = vector.load %arg3[%c0_2, %c0_3] : memref<32x128xf32, #tpu.memory_space<vmem>>, vector<32x128xf32>
    %5 = arith.truncf %4 : vector<32x128xf32> to vector<32x128xbf16>
    %c0_4 = arith.constant 0 : index
    %c0_5 = arith.constant 0 : index
    %6 = vector.load %arg4[%c0_4, %c0_5] : memref<128x384xf32, #tpu.memory_space<vmem>>, vector<128x384xf32>
    %7 = arith.truncf %6 : vector<128x384xf32> to vector<128x384xbf16>
    %cst = arith.constant dense<0.000000e+00> : vector<32x384xf32>
    %8 = tpu.matmul %5, %7, %cst {dimension_numbers = #tpu.dot_dimension_numbers<[1], [0], [0], [1], [0, 0, 1, 1], [], []>} : vector<32x128xbf16>, vector<128x384xbf16>, vector<32x384xf32> -> vector<32x384xf32>
    %9 = arith.addf %3, %8 : vector<32x384xf32>
    %c0_6 = arith.constant 0 : index
    %c0_7 = arith.constant 0 : index
    %10 = vector.load %arg7[%c0_6, %c0_7] : memref<32x384xf32, #tpu.memory_space<vmem>>, vector<32x384xf32>
    tpu.vector_store %arg7[%c0_6, %c0_7], %9 {strides = array<i32>} : memref<32x384xf32, #tpu.memory_space<vmem>>, vector<32x384xf32>,
    %c0_i32_8 = arith.constant 0 : i32
    %11 = arith.cmpi eq, %arg2, %c0_i32_8 : i32
    %12 = arith.extui %11 : i1 to i32
    %c0_i32_9 = arith.constant 0 : i32
    %13 = arith.cmpi ne, %12, %c0_i32_9 : i32
    scf.if %13 {
      %c0_10 = arith.constant 0 : index
      %c0_11 = arith.constant 0 : index
      %14 = vector.load %arg7[%c0_10, %c0_11] : memref<32x384xf32, #tpu.memory_space<vmem>>, vector<32x384xf32>
      %c0_12 = arith.constant 0 : index
      %c0_13 = arith.constant 0 : index
      %15 = vector.load %arg5[%c0_12, %c0_13] : memref<1x384xf32, #tpu.memory_space<vmem>>, vector<1x384xf32>
      %16 = vector.broadcast %15 : vector<1x384xf32> to vector<32x384xf32>
      %17 = arith.addf %14, %16 : vector<32x384xf32>
      %c0_14 = arith.constant 0 : index
      %c0_15 = arith.constant 0 : index
      %18 = vector.load %arg6[%c0_14, %c0_15] : memref<32x384xf32, #tpu.memory_space<vmem>>, vector<32x384xf32>
      tpu.vector_store %arg6[%c0_14, %c0_15], %17 {strides = array<i32>} : memref<32x384xf32, #tpu.memory_space<vmem>>, vector<32x384xf32>,
    } else {
    }
    return
  }
  func.func @transform_0(%arg0: i32, %arg1: i32, %arg2: i32) -> (i32, i32) {
    %c0_i32 = arith.constant 0 : i32
    return %arg0, %arg2 : i32, i32
  }
  func.func @transform_1(%arg0: i32, %arg1: i32, %arg2: i32) -> (i32, i32) {
    %c0_i32 = arith.constant 0 : i32
    return %arg2, %arg1 : i32, i32
  }
  func.func @transform_2(%arg0: i32, %arg1: i32, %arg2: i32) -> (i32, i32) {
    %c0_i32 = arith.constant 0 : i32
    %c0_i32_0 = arith.constant 0 : i32
    return %c0_i32, %arg1 : i32, i32
  }
  func.func @transform_3(%arg0: i32, %arg1: i32, %arg2: i32) -> (i32, i32) {
    %c0_i32 = arith.constant 0 : i32
    return %arg0, %arg1 : i32, i32
  }
}

</mosaic_0001>

<llo_original>
// kernel: transformer_decoder_model.21
$region0: #{transformer_decoder_model.21}
  #allocation0 [shape = 'u32[]', space=smem, size = 0x4, offset = 0x4, fixed_abs, tag = 'smem constant byte address 0x4 - core index']
  #allocation1 [shape = 'u32[72,128]{1,0:T(1,128)}', space=vmem, size = 0x9000, scoped, tag = 'internal scratch']
  %s0 = inlined_call_operand.vmem [shape: f32[32,128], index: 0, kind: input, shape index: {}]
  %s1 = inlined_call_operand.vmem [shape: f32[128,128], index: 1, kind: input, shape index: {}]
  %s2 = inlined_call_operand.vmem [shape: f32[1,128], index: 2, kind: input, shape index: {}]
  %s3 = inlined_call_operand.vmem [shape: f32[32,128], index: 3, kind: input, shape index: {}]
  %s4 = inlined_call_operand.vmem [shape: f32[1,128], index: 4, kind: input, shape index: {}]
  %s5 = inlined_call_operand.vmem [shape: f32[1,128], index: 5, kind: input, shape index: {}]
  %s6 = inlined_call_operand.vmem [shape: f32[32,128], index: 6, kind: output, shape index: {}]
  %s7 = sld [smem:[#allocation0]]
  $region34: #{transformer_decoder_model.21} parent=0
    _
  %s9 = ssub.s32 1, %s7
  %s10 = scalar_select 0, %s9, %s7
  // Predicated region
  $region2: #{transformer_decoder_model.21} parent=0 // pred_check
    _
  $region3: #{transformer_decoder_model.21} parent=0 // pred_check_branch
    %12 = sbr.rel (0) target = $region5
  $region4: #{transformer_decoder_model.21} parent=0 // pred_region
    _
  $region5: #{transformer_decoder_model.21} parent=0 // pred_fallthru
    _
  // Predicated region
  $region6: #{transformer_decoder_model.21} parent=0 // pred_check
    _
  $region7: #{transformer_decoder_model.21} parent=0 // pred_check_branch
    %14 = sbr.rel (0) target = $region9
  $region8: #{transformer_decoder_model.21} parent=0 // pred_region
    _
  $region9: #{transformer_decoder_model.21} parent=0 // pred_fallthru
    _
  // Predicated region
  $region10: #{transformer_decoder_model.21} parent=0 // pred_check
    _
  $region11: #{transformer_decoder_model.21} parent=0 // pred_check_branch
    %16 = sbr.rel (0) target = $region13
  $region12: #{transformer_decoder_model.21} parent=0 // pred_region
    _
  $region13: #{transformer_decoder_model.21} parent=0 // pred_fallthru
    _
  // Predicated region
  $region14: #{transformer_decoder_model.21} parent=0 // pred_check
    _
  $region15: #{transformer_decoder_model.21} parent=0 // pred_check_branch
    %18 = sbr.rel (0) target = $region17
  $region16: #{transformer_decoder_model.21} parent=0 // pred_region
    _
  $region17: #{transformer_decoder_model.21} parent=0 // pred_fallthru
    _
  // Predicated region
  $region18: #{transformer_decoder_model.21} parent=0 // pred_check
    _
  $region19: #{transformer_decoder_model.21} parent=0 // pred_check_branch
    %20 = sbr.rel (0) target = $region21
  $region20: #{transformer_decoder_model.21} parent=0 // pred_region
    _
  $region21: #{transformer_decoder_model.21} parent=0 // pred_fallthru
    _
  // Predicated region
  $region22: #{transformer_decoder_model.21} parent=0 // pred_check
    _
  $region23: #{transformer_decoder_model.21} parent=0 // pred_check_branch
    %22 = sbr.rel (0) target = $region25
  $region24: #{transformer_decoder_model.21} parent=0 // pred_region
    _
  $region25: #{transformer_decoder_model.21} parent=0 // pred_fallthru
    _
  %v23 = vld [vmem:[%s0] sm:$0xff]
  %v24 = vld [vmem:[%s0 + $0x8] sm:$0xff]
  %v25 = vld [vmem:[%s0 + $0x10] sm:$0xff]
  %v26 = vld [vmem:[%s0 + $0x18] sm:$0xff]
  %v27 = vpack.c.bf16 %v24, %v23
  %v28 = vpack.c.bf16 %v26, %v25
  %v29 = vld [vmem:[%s1] sm:$0xff]
  %v30 = vld [vmem:[%s1 + $0x8] sm:$0xff]
  %v31 = vld [vmem:[%s1 + $0x10] sm:$0xff]
  %v32 = vld [vmem:[%s1 + $0x18] sm:$0xff]
  %v33 = vld [vmem:[%s1 + $0x20] sm:$0xff]
  %v34 = vld [vmem:[%s1 + $0x28] sm:$0xff]
  %v35 = vld [vmem:[%s1 + $0x30] sm:$0xff]
  %v36 = vld [vmem:[%s1 + $0x38] sm:$0xff]
  %v37 = vld [vmem:[%s1 + $0x40] sm:$0xff]
  %v38 = vld [vmem:[%s1 + $0x48] sm:$0xff]
  %v39 = vld [vmem:[%s1 + $0x50] sm:$0xff]
  %v40 = vld [vmem:[%s1 + $0x58] sm:$0xff]
  %v41 = vld [vmem:[%s1 + $0x60] sm:$0xff]
  %v42 = vld [vmem:[%s1 + $0x68] sm:$0xff]
  %v43 = vld [vmem:[%s1 + $0x70] sm:$0xff]
  %v44 = vld [vmem:[%s1 + $0x78] sm:$0xff]
  %v45 = vpack.c.bf16 %v30, %v29
  %v46 = vpack.c.bf16 %v32, %v31
  %v47 = vpack.c.bf16 %v34, %v33
  %v48 = vpack.c.bf16 %v36, %v35
  %v49 = vpack.c.bf16 %v38, %v37
  %v50 = vpack.c.bf16 %v40, %v39
  %v51 = vpack.c.bf16 %v42, %v41
  %v52 = vpack.c.bf16 %v44, %v43
  %v53 = vld [vmem:[%s2] sm:$0x1]
  %v55 = vperm.slane %v53, 0
  %57 = vmatpush.bf16.msra.mxu0 %v52
  %58 = vmatpush.bf16.msra.mxu0 %v51
  %59 = vmatpush.bf16.msra.mxu0 %v50
  %60 = vmatpush.bf16.msra.mxu0 %v49
  %61 = vmatpush.bf16.msra.mxu0 %v48
  %62 = vmatpush.bf16.msra.mxu0 %v47
  %63 = vmatpush.bf16.msra.mxu0 %v46
  %64 = vmatpush.bf16.msra.mxu0 %v45
  %65 = vmatmul.bf16.gmra.mxu0 %v27
  %v66 = vpop.f32.mrf.mxu0
  %v67 = vadd.f32 %v55, %v66
  %v68 = vpop.f32.mrf.mxu0
  %v69 = vadd.f32 %v55, %v68
  %70 = vmatmul.bf16.gmra.mxu0 %v28
  %v71 = vpop.f32.mrf.mxu0
  %v72 = vadd.f32 %v55, %v71
  %v73 = vpop.f32.mrf.mxu0
  %v74 = vadd.f32 %v55, %v73
  %75 = vdwg.mxu0
  %v76 = vld [vmem:[%s3] sm:$0xff]
  %v77 = vld [vmem:[%s3 + $0x8] sm:$0xff]
  %v78 = vld [vmem:[%s3 + $0x10] sm:$0xff]
  %v79 = vld [vmem:[%s3 + $0x18] sm:$0xff]
  %v80 = vadd.f32 %v76, %v67
  %v81 = vadd.f32 %v77, %v69
  %v82 = vadd.f32 %v78, %v72
  %v83 = vadd.f32 %v79, %v74
  %v84 = vld [vmem:[%s4] sm:$0x1]
  %v85 = vld [vmem:[%s5] sm:$0x1]
  %86 = vadd.xlane.f32.xlu0 %v80
  %v87 = vpop.xlane.xlu0 %86
  %88 = vadd.xlane.f32.xlu0 %v81
  %v89 = vpop.xlane.xlu0 %88
  %90 = vadd.xlane.f32.xlu0 %v82
  %v91 = vpop.xlane.xlu0 %90
  %92 = vadd.xlane.f32.xlu0 %v83
  %v93 = vpop.xlane.xlu0 %92
  %v94 = vrcp.pop 128.0
  %v95 = vmul.f32 128.0, %v94
  %v96 = vsub.f32 1.0, %v95
  %v97 = vmul.f32 %v94, %v96
  %v98 = vadd.f32 %v94, %v97
  %vm99 = vweird.f32 %v94
  %v100 = vsel %vm99, %v94, %v98
  %v101 = vmul.f32 %v87, %v100
  %v102 = vmul.f32 %v89, %v100
  %v103 = vmul.f32 %v91, %v100
  %v104 = vmul.f32 %v93, %v100
  %v105 = vsub.f32 %v80, %v101
  %v106 = vsub.f32 %v81, %v102
  %v107 = vsub.f32 %v82, %v103
  %v108 = vsub.f32 %v83, %v104
  %v109 = vmul.f32 %v105, %v105
  %v110 = vmul.f32 %v106, %v106
  %v111 = vmul.f32 %v107, %v107
  %v112 = vmul.f32 %v108, %v108
  %113 = vadd.xlane.f32.xlu0 %v109
  %v114 = vpop.xlane.xlu0 %113
  %115 = vadd.xlane.f32.xlu0 %v110
  %v116 = vpop.xlane.xlu0 %115
  %117 = vadd.xlane.f32.xlu0 %v111
  %v118 = vpop.xlane.xlu0 %117
  %119 = vadd.xlane.f32.xlu0 %v112
  %v120 = vpop.xlane.xlu0 %119
  %v121 = vmul.f32 %v114, %v100
  %v122 = vmul.f32 %v116, %v100
  %v123 = vmul.f32 %v118, %v100
  %v124 = vmul.f32 %v120, %v100
  %v125 = vadd.f32 %v121, 1e-05
  %v126 = vadd.f32 %v122, 1e-05
  %v127 = vadd.f32 %v123, 1e-05
  %v128 = vadd.f32 %v124, 1e-05
  %v129 = vrsqrt.pop %v125
  %v130 = vmul.f32 %v129, %v125
  %v131 = vmul.f32 %v130, %v129
  %v132 = vmul.f32 0.5, %v131
  %v133 = vsub.f32 1.5, %v132
  %v134 = vmul.f32 %v129, %v133
  %vm135 = vweird.f32 %v125
  %vm136 = vweird.f32 %v129
  %vm137 = vmor %vm135, %vm136
  %v138 = vsel %vm137, %v129, %v134
  %v139 = vrsqrt.pop %v126
  %v140 = vmul.f32 %v139, %v126
  %v141 = vmul.f32 %v140, %v139
  %v142 = vmul.f32 0.5, %v141
  %v143 = vsub.f32 1.5, %v142
  %v144 = vmul.f32 %v139, %v143
  %vm145 = vweird.f32 %v126
  %vm146 = vweird.f32 %v139
  %vm147 = vmor %vm145, %vm146
  %v148 = vsel %vm147, %v139, %v144
  %v149 = vrsqrt.pop %v127
  %v150 = vmul.f32 %v149, %v127
  %v151 = vmul.f32 %v150, %v149
  %v152 = vmul.f32 0.5, %v151
  %v153 = vsub.f32 1.5, %v152
  %v154 = vmul.f32 %v149, %v153
  %vm155 = vweird.f32 %v127
  %vm156 = vweird.f32 %v149
  %vm157 = vmor %vm155, %vm156
  %v158 = vsel %vm157, %v149, %v154
  %v159 = vrsqrt.pop %v128
  %v160 = vmul.f32 %v159, %v128
  %v161 = vmul.f32 %v160, %v159
  %v162 = vmul.f32 0.5, %v161
  %v163 = vsub.f32 1.5, %v162
  %v164 = vmul.f32 %v159, %v163
  %vm165 = vweird.f32 %v128
  %vm166 = vweird.f32 %v159
  %vm167 = vmor %vm165, %vm166
  %v168 = vsel %vm167, %v159, %v164
  %v169 = vmul.f32 %v105, %v138
  %v170 = vmul.f32 %v106, %v148
  %v171 = vmul.f32 %v107, %v158
  %v172 = vmul.f32 %v108, %v168
  %v174 = vperm.slane %v84, 0
  %v176 = vmul.f32 %v169, %v174
  %v177 = vmul.f32 %v170, %v174
  %v178 = vmul.f32 %v171, %v174
  %v179 = vmul.f32 %v172, %v174
  %v181 = vperm.slane %v85, 0
  %v183 = vadd.f32 %v176, %v181
  %v184 = vadd.f32 %v177, %v181
  %v185 = vadd.f32 %v178, %v181
  %v186 = vadd.f32 %v179, %v181
  %187 = vst [vmem:[%s6] sm:$0xff] %v183
  %188 = vst [vmem:[%s6 + $0x8] sm:$0xff] %v184
  %189 = vst [vmem:[%s6 + $0x10] sm:$0xff] %v185
  %190 = vst [vmem:[%s6 + $0x18] sm:$0xff] %v186
  // Predicated region
  $region26: #{transformer_decoder_model.21} parent=0 // pred_check
    _
  $region27: #{transformer_decoder_model.21} parent=0 // pred_check_branch
    %192 = sbr.rel (0) target = $region29
  $region28: #{transformer_decoder_model.21} parent=0 // pred_region
    _
  $region29: #{transformer_decoder_model.21} parent=0 // pred_fallthru
    _
  // Predicated region
  $region30: #{transformer_decoder_model.21} parent=0 // pred_check
    _
  $region31: #{transformer_decoder_model.21} parent=0 // pred_check_branch
    %194 = sbr.rel (0) target = $region33
  $region32: #{transformer_decoder_model.21} parent=0 // pred_region
    _
  $region33: #{transformer_decoder_model.21} parent=0 // pred_fallthru
    _

// kernel: transformer_decoder_model.18
$region0: #{transformer_decoder_model.18}
  #allocation0 [shape = 'u32[]', space=smem, size = 0x4, offset = 0x4, fixed_abs, tag = 'smem constant byte address 0x4 - core index']
  #allocation1 [shape = 'u32[72,128]{1,0:T(1,128)}', space=vmem, size = 0x9000, scoped, tag = 'internal scratch']
  %s0 = inlined_call_operand.vmem [shape: f32[32,128], index: 0, kind: input, shape index: {}]
  %s1 = inlined_call_operand.vmem [shape: f32[1,128], index: 1, kind: input, shape index: {}]
  %s2 = inlined_call_operand.vmem [shape: f32[1,128], index: 2, kind: input, shape index: {}]
  %s3 = inlined_call_operand.vmem [shape: f32[32,128], index: 3, kind: output, shape index: {}]
  %s4 = sld [smem:[#allocation0]]
  $region22: #{transformer_decoder_model.18} parent=0
    _
  %s6 = ssub.s32 1, %s4
  %s7 = scalar_select 0, %s6, %s4
  // Predicated region
  $region2: #{transformer_decoder_model.18} parent=0 // pred_check
    _
  $region3: #{transformer_decoder_model.18} parent=0 // pred_check_branch
    %9 = sbr.rel (0) target = $region5
  $region4: #{transformer_decoder_model.18} parent=0 // pred_region
    _
  $region5: #{transformer_decoder_model.18} parent=0 // pred_fallthru
    _
  // Predicated region
  $region6: #{transformer_decoder_model.18} parent=0 // pred_check
    _
  $region7: #{transformer_decoder_model.18} parent=0 // pred_check_branch
    %11 = sbr.rel (0) target = $region9
  $region8: #{transformer_decoder_model.18} parent=0 // pred_region
    _
  $region9: #{transformer_decoder_model.18} parent=0 // pred_fallthru
    _
  // Predicated region
  $region10: #{transformer_decoder_model.18} parent=0 // pred_check
    _
  $region11: #{transformer_decoder_model.18} parent=0 // pred_check_branch
    %13 = sbr.rel (0) target = $region13
  $region12: #{transformer_decoder_model.18} parent=0 // pred_region
    _
  $region13: #{transformer_decoder_model.18} parent=0 // pred_fallthru
    _
  %v14 = vld [vmem:[%s0] sm:$0xff]
  %v15 = vld [vmem:[%s0 + $0x8] sm:$0xff]
  %v16 = vld [vmem:[%s0 + $0x10] sm:$0xff]
  %v17 = vld [vmem:[%s0 + $0x18] sm:$0xff]
  %v18 = vld [vmem:[%s1] sm:$0x1]
  %v19 = vld [vmem:[%s2] sm:$0x1]
  %20 = vadd.xlane.f32.xlu0 %v14
  %v21 = vpop.xlane.xlu0 %20
  %22 = vadd.xlane.f32.xlu0 %v15
  %v23 = vpop.xlane.xlu0 %22
  %24 = vadd.xlane.f32.xlu0 %v16
  %v25 = vpop.xlane.xlu0 %24
  %26 = vadd.xlane.f32.xlu0 %v17
  %v27 = vpop.xlane.xlu0 %26
  %v28 = vrcp.pop 128.0
  %v29 = vmul.f32 128.0, %v28
  %v30 = vsub.f32 1.0, %v29
  %v31 = vmul.f32 %v28, %v30
  %v32 = vadd.f32 %v28, %v31
  %vm33 = vweird.f32 %v28
  %v34 = vsel %vm33, %v28, %v32
  %v35 = vmul.f32 %v21, %v34
  %v36 = vmul.f32 %v23, %v34
  %v37 = vmul.f32 %v25, %v34
  %v38 = vmul.f32 %v27, %v34
  %v39 = vsub.f32 %v14, %v35
  %v40 = vsub.f32 %v15, %v36
  %v41 = vsub.f32 %v16, %v37
  %v42 = vsub.f32 %v17, %v38
  %v43 = vmul.f32 %v39, %v39
  %v44 = vmul.f32 %v40, %v40
  %v45 = vmul.f32 %v41, %v41
  %v46 = vmul.f32 %v42, %v42
  %47 = vadd.xlane.f32.xlu0 %v43
  %v48 = vpop.xlane.xlu0 %47
  %49 = vadd.xlane.f32.xlu0 %v44
  %v50 = vpop.xlane.xlu0 %49
  %51 = vadd.xlane.f32.xlu0 %v45
  %v52 = vpop.xlane.xlu0 %51
  %53 = vadd.xlane.f32.xlu0 %v46
  %v54 = vpop.xlane.xlu0 %53
  %v55 = vmul.f32 %v48, %v34
  %v56 = vmul.f32 %v50, %v34
  %v57 = vmul.f32 %v52, %v34
  %v58 = vmul.f32 %v54, %v34
  %v59 = vadd.f32 %v55, 1e-05
  %v60 = vadd.f32 %v56, 1e-05
  %v61 = vadd.f32 %v57, 1e-05
  %v62 = vadd.f32 %v58, 1e-05
  %v63 = vrsqrt.pop %v59
  %v64 = vmul.f32 %v63, %v59
  %v65 = vmul.f32 %v64, %v63
  %v66 = vmul.f32 0.5, %v65
  %v67 = vsub.f32 1.5, %v66
  %v68 = vmul.f32 %v63, %v67
  %vm69 = vweird.f32 %v59
  %vm70 = vweird.f32 %v63
  %vm71 = vmor %vm69, %vm70
  %v72 = vsel %vm71, %v63, %v68
  %v73 = vrsqrt.pop %v60
  %v74 = vmul.f32 %v73, %v60
  %v75 = vmul.f32 %v74, %v73
  %v76 = vmul.f32 0.5, %v75
  %v77 = vsub.f32 1.5, %v76
  %v78 = vmul.f32 %v73, %v77
  %vm79 = vweird.f32 %v60
  %vm80 = vweird.f32 %v73
  %vm81 = vmor %vm79, %vm80
  %v82 = vsel %vm81, %v73, %v78
  %v83 = vrsqrt.pop %v61
  %v84 = vmul.f32 %v83, %v61
  %v85 = vmul.f32 %v84, %v83
  %v86 = vmul.f32 0.5, %v85
  %v87 = vsub.f32 1.5, %v86
  %v88 = vmul.f32 %v83, %v87
  %vm89 = vweird.f32 %v61
  %vm90 = vweird.f32 %v83
  %vm91 = vmor %vm89, %vm90
  %v92 = vsel %vm91, %v83, %v88
  %v93 = vrsqrt.pop %v62
  %v94 = vmul.f32 %v93, %v62
  %v95 = vmul.f32 %v94, %v93
  %v96 = vmul.f32 0.5, %v95
  %v97 = vsub.f32 1.5, %v96
  %v98 = vmul.f32 %v93, %v97
  %vm99 = vweird.f32 %v62
  %vm100 = vweird.f32 %v93
  %vm101 = vmor %vm99, %vm100
  %v102 = vsel %vm101, %v93, %v98
  %v103 = vmul.f32 %v39, %v72
  %v104 = vmul.f32 %v40, %v82
  %v105 = vmul.f32 %v41, %v92
  %v106 = vmul.f32 %v42, %v102
  %v108 = vperm.slane %v18, 0
  %v110 = vmul.f32 %v103, %v108
  %v111 = vmul.f32 %v104, %v108
  %v112 = vmul.f32 %v105, %v108
  %v113 = vmul.f32 %v106, %v108
  %v115 = vperm.slane %v19, 0
  %v117 = vadd.f32 %v110, %v115
  %v118 = vadd.f32 %v111, %v115
  %v119 = vadd.f32 %v112, %v115
  %v120 = vadd.f32 %v113, %v115
  %121 = vst [vmem:[%s3] sm:$0xff] %v117
  %122 = vst [vmem:[%s3 + $0x8] sm:$0xff] %v118
  %123 = vst [vmem:[%s3 + $0x10] sm:$0xff] %v119
  %124 = vst [vmem:[%s3 + $0x18] sm:$0xff] %v120
  // Predicated region
  $region14: #{transformer_decoder_model.18} parent=0 // pred_check
    _
  $region15: #{transformer_decoder_model.18} parent=0 // pred_check_branch
    %126 = sbr.rel (0) target = $region17
  $region16: #{transformer_decoder_model.18} parent=0 // pred_region
    _
  $region17: #{transformer_decoder_model.18} parent=0 // pred_fallthru
    _
  // Predicated region
  $region18: #{transformer_decoder_model.18} parent=0 // pred_check
    _
  $region19: #{transformer_decoder_model.18} parent=0 // pred_check_branch
    %128 = sbr.rel (0) target = $region21
  $region20: #{transformer_decoder_model.18} parent=0 // pred_region
    _
  $region21: #{transformer_decoder_model.18} parent=0 // pred_fallthru
    _

// kernel: transformer_decoder_model.19
$region0: #{transformer_decoder_model.19}
  #allocation0 [shape = 'u32[]', space=smem, size = 0x4, offset = 0x4, fixed_abs, tag = 'smem constant byte address 0x4 - core index']
  #allocation1 [shape = 'u32[72,128]{1,0:T(1,128)}', space=vmem, size = 0x9000, scoped, tag = 'internal scratch']
  #allocation2 [shape = 'f32[32,384]{1,0:T(8,128)}', space=vmem, size = 0xc000, scoped, tag = 'scratch operand']
  %s0 = inlined_call_operand.vmem [shape: f32[32,128], index: 0, kind: input, shape index: {}]
  %s1 = inlined_call_operand.hbm [shape: f32[128,384], index: 1, kind: input, shape index: {}]
  %s2 = inlined_call_operand.vmem [shape: f32[1,384], index: 2, kind: input, shape index: {}]
  %s3 = inlined_call_operand.vmem [shape: f32[32,384], index: 3, kind: output, shape index: {}]
  %s4 = sld [smem:[#allocation0]]
  $region34: #{transformer_decoder_model.19} parent=0
    _
  %s6 = ssub.s32 1, %s4
  %s7 = scalar_select 0, %s6, %s4
  $region1: #{transformer_decoder_model.19} parent=0
    #allocation3 [shape = 'u8[196608]{0}', space=vmem, size = 0x30000, scoped, tag = 'input window, operand 1, single buffered']
    #allocation4 [shape = 's32[1]{0}', space=sflag, size = 0x4, scoped, tag = 'scoped memory for transformer_decoder_model.19']
    %8 = vsyncpa [#allocation4], 0
    // Predicated region
    $region2: #{transformer_decoder_model.19} parent=1 // pred_check
      _
    $region3: #{transformer_decoder_model.19} parent=1 // pred_check_branch
      %10 = sbr.rel (0) target = $region5
    $region4: #{transformer_decoder_model.19} parent=1 // pred_region
      _
    $region5: #{transformer_decoder_model.19} parent=1 // pred_fallthru
      _
    // Predicated region
    $region6: #{transformer_decoder_model.19} parent=1 // pred_check
      _
    $region7: #{transformer_decoder_model.19} parent=1 // pred_check_branch
      %12 = sbr.rel (0) target = $region9
    $region8: #{transformer_decoder_model.19} parent=1 // pred_region
      %14 = vsyncadd [#allocation4], 0
      %s15 = sshll.u32 %s1, 4
      %s16 = int_to_ptr.hbm [resolvable:$true] %s15
      %s17 = sshll.u32 [#allocation3], 4
      %s18 = int_to_ptr.vmem [resolvable:$true] %s17
      %23 = dma.hbm_to_vmem [thread:$0]  %s16, 6144, %s18, [#allocation4], 384, 384, 24
    $region9: #{transformer_decoder_model.19} parent=1 // pred_fallthru
      _
    // Predicated region
    $region10: #{transformer_decoder_model.19} parent=1 // pred_check
      _
    $region11: #{transformer_decoder_model.19} parent=1 // pred_check_branch
      %25 = sbr.rel (0) target = $region13
    $region12: #{transformer_decoder_model.19} parent=1 // pred_region
      _
    $region13: #{transformer_decoder_model.19} parent=1 // pred_fallthru
      _
    // Predicated region
    $region14: #{transformer_decoder_model.19} parent=1 // pred_check
      _
    $region15: #{transformer_decoder_model.19} parent=1 // pred_check_branch
      %27 = sbr.rel (0) target = $region17
    $region16: #{transformer_decoder_model.19} parent=1 // pred_region
      %29 = dma.done [#allocation4], 6144
    $region17: #{transformer_decoder_model.19} parent=1 // pred_fallthru
      _
    %p30 = scmp.eq.s32.totalorder 0, 0
    // Predicated region
    $region18: #{transformer_decoder_model.19} parent=1 // pred_check
      %p31 = pneg %p30
    $region19: #{transformer_decoder_model.19} parent=1 // pred_check_branch
      %33 = sbr.rel (%p31) target = $region21
    $region20: #{transformer_decoder_model.19} parent=1 // pred_region
      %34 = vst [vmem:[#allocation2] sm:$0xff] 0.0
      %35 = vst [vmem:[#allocation2 + $0x8] sm:$0xff] 0.0
      %36 = vst [vmem:[#allocation2 + $0x10] sm:$0xff] 0.0
      %37 = vst [vmem:[#allocation2 + $0x18] sm:$0xff] 0.0
      %38 = vst [vmem:[#allocation2 + $0x20] sm:$0xff] 0.0
      %39 = vst [vmem:[#allocation2 + $0x28] sm:$0xff] 0.0
      %40 = vst [vmem:[#allocation2 + $0x30] sm:$0xff] 0.0
      %41 = vst [vmem:[#allocation2 + $0x38] sm:$0xff] 0.0
      %42 = vst [vmem:[#allocation2 + $0x40] sm:$0xff] 0.0
      %43 = vst [vmem:[#allocation2 + $0x48] sm:$0xff] 0.0
      %44 = vst [vmem:[#allocation2 + $0x50] sm:$0xff] 0.0
      %45 = vst [vmem:[#allocation2 + $0x58] sm:$0xff] 0.0
    $region21: #{transformer_decoder_model.19} parent=1 // pred_fallthru
      _
    %v46 = vld [vmem:[#allocation2] sm:$0xff]
    %v47 = vld [vmem:[#allocation2 + $0x8] sm:$0xff]
    %v48 = vld [vmem:[#allocation2 + $0x10] sm:$0xff]
    %v49 = vld [vmem:[#allocation2 + $0x18] sm:$0xff]
    %v50 = vld [vmem:[#allocation2 + $0x20] sm:$0xff]
    %v51 = vld [vmem:[#allocation2 + $0x28] sm:$0xff]
    %v52 = vld [vmem:[#allocation2 + $0x30] sm:$0xff]
    %v53 = vld [vmem:[#allocation2 + $0x38] sm:$0xff]
    %v54 = vld [vmem:[#allocation2 + $0x40] sm:$0xff]
    %v55 = vld [vmem:[#allocation2 + $0x48] sm:$0xff]
    %v56 = vld [vmem:[#allocation2 + $0x50] sm:$0xff]
    %v57 = vld [vmem:[#allocation2 + $0x58] sm:$0xff]
    %v58 = vld [vmem:[%s0] sm:$0xff]
    %v59 = vld [vmem:[%s0 + $0x8] sm:$0xff]
    %v60 = vld [vmem:[%s0 + $0x10] sm:$0xff]
    %v61 = vld [vmem:[%s0 + $0x18] sm:$0xff]
    %v62 = vpack.c.bf16 %v59, %v58
    %v63 = vpack.c.bf16 %v61, %v60
    %v64 = vld [vmem:[#allocation3] sm:$0xff]
    %v65 = vld [vmem:[#allocation3 + $0x8] sm:$0xff]
    %v66 = vld [vmem:[#allocation3 + $0x10] sm:$0xff]
    %v67 = vld [vmem:[#allocation3 + $0x18] sm:$0xff]
    %v68 = vld [vmem:[#allocation3 + $0x20] sm:$0xff]
    %v69 = vld [vmem:[#allocation3 + $0x28] sm:$0xff]
    %v70 = vld [vmem:[#allocation3 + $0x30] sm:$0xff]
    %v71 = vld [vmem:[#allocation3 + $0x38] sm:$0xff]
    %v72 = vld [vmem:[#allocation3 + $0x40] sm:$0xff]
    %v73 = vld [vmem:[#allocation3 + $0x48] sm:$0xff]
    %v74 = vld [vmem:[#allocation3 + $0x50] sm:$0xff]
    %v75 = vld [vmem:[#allocation3 + $0x58] sm:$0xff]
    %v76 = vld [vmem:[#allocation3 + $0x60] sm:$0xff]
    %v77 = vld [vmem:[#allocation3 + $0x68] sm:$0xff]
    %v78 = vld [vmem:[#allocation3 + $0x70] sm:$0xff]
    %v79 = vld [vmem:[#allocation3 + $0x78] sm:$0xff]
    %v80 = vld [vmem:[#allocation3 + $0x80] sm:$0xff]
    %v81 = vld [vmem:[#allocation3 + $0x88] sm:$0xff]
    %v82 = vld [vmem:[#allocation3 + $0x90] sm:$0xff]
    %v83 = vld [vmem:[#allocation3 + $0x98] sm:$0xff]
    %v84 = vld [vmem:[#allocation3 + $0xa0] sm:$0xff]
    %v85 = vld [vmem:[#allocation3 + $0xa8] sm:$0xff]
    %v86 = vld [vmem:[#allocation3 + $0xb0] sm:$0xff]
    %v87 = vld [vmem:[#allocation3 + $0xb8] sm:$0xff]
    %v88 = vld [vmem:[#allocation3 + $0xc0] sm:$0xff]
    %v89 = vld [vmem:[#allocation3 + $0xc8] sm:$0xff]
    %v90 = vld [vmem:[#allocation3 + $0xd0] sm:$0xff]
    %v91 = vld [vmem:[#allocation3 + $0xd8] sm:$0xff]
    %v92 = vld [vmem:[#allocation3 + $0xe0] sm:$0xff]
    %v93 = vld [vmem:[#allocation3 + $0xe8] sm:$0xff]
    %v94 = vld [vmem:[#allocation3 + $0xf0] sm:$0xff]
    %v95 = vld [vmem:[#allocation3 + $0xf8] sm:$0xff]
    %v96 = vld [vmem:[#allocation3 + $0x100] sm:$0xff]
    %v97 = vld [vmem:[#allocation3 + $0x108] sm:$0xff]
    %v98 = vld [vmem:[#allocation3 + $0x110] sm:$0xff]
    %v99 = vld [vmem:[#allocation3 + $0x118] sm:$0xff]
    %v100 = vld [vmem:[#allocation3 + $0x120] sm:$0xff]
    %v101 = vld [vmem:[#allocation3 + $0x128] sm:$0xff]
    %v102 = vld [vmem:[#allocation3 + $0x130] sm:$0xff]
    %v103 = vld [vmem:[#allocation3 + $0x138] sm:$0xff]
    %v104 = vld [vmem:[#allocation3 + $0x140] sm:$0xff]
    %v105 = vld [vmem:[#allocation3 + $0x148] sm:$0xff]
    %v106 = vld [vmem:[#allocation3 + $0x150] sm:$0xff]
    %v107 = vld [vmem:[#allocation3 + $0x158] sm:$0xff]
    %v108 = vld [vmem:[#allocation3 + $0x160] sm:$0xff]
    %v109 = vld [vmem:[#allocation3 + $0x168] sm:$0xff]
    %v110 = vld [vmem:[#allocation3 + $0x170] sm:$0xff]
    %v111 = vld [vmem:[#allocation3 + $0x178] sm:$0xff]
    %v112 = vpack.c.bf16 %v67, %v64
    %v113 = vpack.c.bf16 %v68, %v65
    %v114 = vpack.c.bf16 %v69, %v66
    %v115 = vpack.c.bf16 %v73, %v70
    %v116 = vpack.c.bf16 %v74, %v71
    %v117 = vpack.c.bf16 %v75, %v72
    %v118 = vpack.c.bf16 %v79, %v76
    %v119 = vpack.c.bf16 %v80, %v77
    %v120 = vpack.c.bf16 %v81, %v78
    %v121 = vpack.c.bf16 %v85, %v82
    %v122 = vpack.c.bf16 %v86, %v83
    %v123 = vpack.c.bf16 %v87, %v84
    %v124 = vpack.c.bf16 %v91, %v88
    %v125 = vpack.c.bf16 %v92, %v89
    %v126 = vpack.c.bf16 %v93, %v90
    %v127 = vpack.c.bf16 %v97, %v94
    %v128 = vpack.c.bf16 %v98, %v95
    %v129 = vpack.c.bf16 %v99, %v96
    %v130 = vpack.c.bf16 %v103, %v100
    %v131 = vpack.c.bf16 %v104, %v101
    %v132 = vpack.c.bf16 %v105, %v102
    %v133 = vpack.c.bf16 %v109, %v106
    %v134 = vpack.c.bf16 %v110, %v107
    %v135 = vpack.c.bf16 %v111, %v108
    %136 = vmatpush.bf16.msra.mxu0 %v133
    %137 = vmatpush.bf16.msra.mxu0 %v130
    %138 = vmatpush.bf16.msra.mxu0 %v127
    %139 = vmatpush.bf16.msra.mxu0 %v124
    %140 = vmatpush.bf16.msra.mxu0 %v121
    %141 = vmatpush.bf16.msra.mxu0 %v118
    %142 = vmatpush.bf16.msra.mxu0 %v115
    %143 = vmatpush.bf16.msra.mxu0 %v112
    %144 = vmatmul.bf16.gmra.mxu0 %v62
    %v145 = vpop.f32.mrf.mxu0
    %v146 = vadd.f32 0.0, %v145
    %v147 = vpop.f32.mrf.mxu0
    %v148 = vadd.f32 0.0, %v147
    %149 = vmatmul.bf16.gmra.mxu0 %v63
    %v150 = vpop.f32.mrf.mxu0
    %v151 = vadd.f32 0.0, %v150
    %v152 = vpop.f32.mrf.mxu0
    %v153 = vadd.f32 0.0, %v152
    %154 = vdwg.mxu0
    %155 = vmatpush.bf16.msra.mxu0 %v134
    %156 = vmatpush.bf16.msra.mxu0 %v131
    %157 = vmatpush.bf16.msra.mxu0 %v128
    %158 = vmatpush.bf16.msra.mxu0 %v125
    %159 = vmatpush.bf16.msra.mxu0 %v122
    %160 = vmatpush.bf16.msra.mxu0 %v119
    %161 = vmatpush.bf16.msra.mxu0 %v116
    %162 = vmatpush.bf16.msra.mxu0 %v113
    %163 = vmatmul.bf16.gmra.mxu0 %v62
    %v164 = vpop.f32.mrf.mxu0
    %v165 = vadd.f32 0.0, %v164
    %v166 = vpop.f32.mrf.mxu0
    %v167 = vadd.f32 0.0, %v166
    %168 = vmatmul.bf16.gmra.mxu0 %v63
    %v169 = vpop.f32.mrf.mxu0
    %v170 = vadd.f32 0.0, %v169
    %v171 = vpop.f32.mrf.mxu0
    %v172 = vadd.f32 0.0, %v171
    %173 = vdwg.mxu0
    %174 = vmatpush.bf16.msra.mxu0 %v135
    %175 = vmatpush.bf16.msra.mxu0 %v132
    %176 = vmatpush.bf16.msra.mxu0 %v129
    %177 = vmatpush.bf16.msra.mxu0 %v126
    %178 = vmatpush.bf16.msra.mxu0 %v123
    %179 = vmatpush.bf16.msra.mxu0 %v120
    %180 = vmatpush.bf16.msra.mxu0 %v117
    %181 = vmatpush.bf16.msra.mxu0 %v114
    %182 = vmatmul.bf16.gmra.mxu0 %v62
    %v183 = vpop.f32.mrf.mxu0
    %v184 = vadd.f32 0.0, %v183
    %v185 = vpop.f32.mrf.mxu0
    %v186 = vadd.f32 0.0, %v185
    %187 = vmatmul.bf16.gmra.mxu0 %v63
    %v188 = vpop.f32.mrf.mxu0
    %v189 = vadd.f32 0.0, %v188
    %v190 = vpop.f32.mrf.mxu0
    %v191 = vadd.f32 0.0, %v190
    %192 = vdwg.mxu0
    %v193 = vadd.f32 %v46, %v146
    %v194 = vadd.f32 %v47, %v165
    %v195 = vadd.f32 %v48, %v184
    %v196 = vadd.f32 %v49, %v148
    %v197 = vadd.f32 %v50, %v167
    %v198 = vadd.f32 %v51, %v186
    %v199 = vadd.f32 %v52, %v151
    %v200 = vadd.f32 %v53, %v170
    %v201 = vadd.f32 %v54, %v189
    %v202 = vadd.f32 %v55, %v153
    %v203 = vadd.f32 %v56, %v172
    %v204 = vadd.f32 %v57, %v191
    %205 = vst [vmem:[#allocation2] sm:$0xff] %v193
    %206 = vst [vmem:[#allocation2 + $0x8] sm:$0xff] %v194
    %207 = vst [vmem:[#allocation2 + $0x10] sm:$0xff] %v195
    %208 = vst [vmem:[#allocation2 + $0x18] sm:$0xff] %v196
    %209 = vst [vmem:[#allocation2 + $0x20] sm:$0xff] %v197
    %210 = vst [vmem:[#allocation2 + $0x28] sm:$0xff] %v198
    %211 = vst [vmem:[#allocation2 + $0x30] sm:$0xff] %v199
    %212 = vst [vmem:[#allocation2 + $0x38] sm:$0xff] %v200
    %213 = vst [vmem:[#allocation2 + $0x40] sm:$0xff] %v201
    %214 = vst [vmem:[#allocation2 + $0x48] sm:$0xff] %v202
    %215 = vst [vmem:[#allocation2 + $0x50] sm:$0xff] %v203
    %216 = vst [vmem:[#allocation2 + $0x58] sm:$0xff] %v204
    // Predicated region
    $region22: #{transformer_decoder_model.19} parent=1 // pred_check
      %p217 = pneg %p30
    $region23: #{transformer_decoder_model.19} parent=1 // pred_check_branch
      %219 = sbr.rel (%p217) target = $region25
    $region24: #{transformer_decoder_model.19} parent=1 // pred_region
      %v220 = vld [vmem:[#allocation2] sm:$0xff]
      %v221 = vld [vmem:[#allocation2 + $0x8] sm:$0xff]
      %v222 = vld [vmem:[#allocation2 + $0x10] sm:$0xff]
      %v223 = vld [vmem:[#allocation2 + $0x18] sm:$0xff]
      %v224 = vld [vmem:[#allocation2 + $0x20] sm:$0xff]
      %v225 = vld [vmem:[#allocation2 + $0x28] sm:$0xff]
      %v226 = vld [vmem:[#allocation2 + $0x30] sm:$0xff]
      %v227 = vld [vmem:[#allocation2 + $0x38] sm:$0xff]
      %v228 = vld [vmem:[#allocation2 + $0x40] sm:$0xff]
      %v229 = vld [vmem:[#allocation2 + $0x48] sm:$0xff]
      %v230 = vld [vmem:[#allocation2 + $0x50] sm:$0xff]
      %v231 = vld [vmem:[#allocation2 + $0x58] sm:$0xff]
      %v232 = vld [vmem:[%s2] sm:$0x7]
      %v234 = vperm.slane %v232, 0
      %v235 = vperm.slane %v232, 1
      %v236 = vperm.slane %v232, 2
      %v240 = vadd.f32 %v220, %v234
      %v241 = vadd.f32 %v221, %v235
      %v242 = vadd.f32 %v222, %v236
      %v243 = vadd.f32 %v223, %v234
      %v244 = vadd.f32 %v224, %v235
      %v245 = vadd.f32 %v225, %v236
      %v246 = vadd.f32 %v226, %v234
      %v247 = vadd.f32 %v227, %v235
      %v248 = vadd.f32 %v228, %v236
      %v249 = vadd.f32 %v229, %v234
      %v250 = vadd.f32 %v230, %v235
      %v251 = vadd.f32 %v231, %v236
      %252 = vst [vmem:[%s3] sm:$0xff] %v240
      %253 = vst [vmem:[%s3 + $0x8] sm:$0xff] %v241
      %254 = vst [vmem:[%s3 + $0x10] sm:$0xff] %v242
      %255 = vst [vmem:[%s3 + $0x18] sm:$0xff] %v243
      %256 = vst [vmem:[%s3 + $0x20] sm:$0xff] %v244
      %257 = vst [vmem:[%s3 + $0x28] sm:$0xff] %v245
      %258 = vst [vmem:[%s3 + $0x30] sm:$0xff] %v246
      %259 = vst [vmem:[%s3 + $0x38] sm:$0xff] %v247
      %260 = vst [vmem:[%s3 + $0x40] sm:$0xff] %v248
      %261 = vst [vmem:[%s3 + $0x48] sm:$0xff] %v249
      %262 = vst [vmem:[%s3 + $0x50] sm:$0xff] %v250
      %263 = vst [vmem:[%s3 + $0x58] sm:$0xff] %v251
    $region25: #{transformer_decoder_model.19} parent=1 // pred_fallthru
      _
    // Predicated region
    $region26: #{transformer_decoder_model.19} parent=1 // pred_check
      _
    $region27: #{transformer_decoder_model.19} parent=1 // pred_check_branch
      %265 = sbr.rel (0) target = $region29
    $region28: #{transformer_decoder_model.19} parent=1 // pred_region
      _
    $region29: #{transformer_decoder_model.19} parent=1 // pred_fallthru
      _
    // Predicated region
    $region30: #{transformer_decoder_model.19} parent=1 // pred_check
      _
    $region31: #{transformer_decoder_model.19} parent=1 // pred_check_branch
      %267 = sbr.rel (0) target = $region33
    $region32: #{transformer_decoder_model.19} parent=1 // pred_region
      _
    $region33: #{transformer_decoder_model.19} parent=1 // pred_fallthru
      _
    %268 = vsyncpa [#allocation4], 1

// kernel: transformer_decoder_model.20
$region0: #{transformer_decoder_model.20}
  #allocation0 [shape = 'u32[]', space=smem, size = 0x4, offset = 0x4, fixed_abs, tag = 'smem constant byte address 0x4 - core index']
  #allocation1 [shape = 'u32[72,128]{1,0:T(1,128)}', space=vmem, size = 0x9000, scoped, tag = 'internal scratch']
  %s0 = inlined_call_operand.vmem [shape: f32[64,2,32], index: 0, kind: input, shape index: {}]
  %s1 = inlined_call_operand.vmem [shape: f32[64,2,32], index: 1, kind: input, shape index: {}]
  %s2 = inlined_call_operand.vmem [shape: f32[64,2,32], index: 2, kind: input, shape index: {}]
  %s3 = inlined_call_operand.vmem [shape: f32[64,2,32], index: 3, kind: output, shape index: {}]
  %s4 = sld [smem:[#allocation0]]
  $region45: #{transformer_decoder_model.20} parent=0
    _
  %s6 = ssub.s32 1, %s4
  %s7 = scalar_select 0, %s6, %s4
  loop: start=0, step=1, limit=6
  $region2: #{transformer_decoder_model.20} parent=0 // loop_pre_header
    _
  $region3: #{transformer_decoder_model.20} parent=0 // loop_header
    %s9 = sphi 0, %s13
    %p10 = scmp.ge.s32.totalorder %s9, 6
    %s19 = sphi 0, %s21
    %s22 = sphi 0, %s19
    %s23 = sphi 0, %s22
    %s39 = sphi 0, %s23
    %s45 = sphi 0, %s47
    %s48 = sphi 0, %s45
    %s49 = sphi 0, %s48
    %s65 = sphi 0, %s49
    %s71 = sphi 0, %s73
    %s74 = sphi 0, %s71
    %s75 = sphi 0, %s74
    %s91 = sphi 0, %s75
    %s97 = sphi 0, %s99
    %s100 = sphi 0, %s97
    %s101 = sphi 0, %s100
    %s117 = sphi 0, %s101
  $region4: #{transformer_decoder_model.20} parent=0 // loop_header_branch
    %12 = sbr.rel (%p10) target = $region8
  $region5: #{transformer_decoder_model.20} parent=0 // loop_body
    %s14 = ssub.s32 %s9, 1
    %s15 = ssub.s32 %s9, 2
    %s16 = sadd.s32 %s9, 1
    %s17 = ssub.s32 %s9, %s16
    %p18 = scmp.eq.s32.totalorder %s17, 0
    %s20 = sadd.s32 %s19, 1
    %s21 = scalar_select %p18, %s19, %s20
    %p24 = pneg %p18
    %p25 = scmp.eq.s32.totalorder %s9, 3
    %p26 = por %p24, %p25
    %p27 = scmp.ne.s32.totalorder %s19, %s22
    %p28 = scmp.eq.s32.totalorder %s9, 0
    %p29 = por %p27, %p28
    %p30 = scmp.ne.s32.totalorder %s19, %s22
    %p31 = scmp.eq.s32.totalorder %s14, 3
    %p32 = por %p30, %p31
    %p33 = scmp.ne.s32.totalorder %s22, %s23
    %p34 = scmp.eq.s32.totalorder %s14, 0
    %p35 = por %p33, %p34
    %p36 = scmp.ne.s32.totalorder %s22, %s23
    %p37 = scmp.eq.s32.totalorder %s15, 3
    %p38 = por %p36, %p37
    %p40 = scmp.ne.s32.totalorder %s23, %s39
    %p41 = scmp.eq.s32.totalorder %s15, 0
    %p42 = por %p40, %p41
    %s43 = ssub.s32 %s9, %s16
    %p44 = scmp.eq.s32.totalorder %s43, 0
    %s46 = sadd.s32 %s45, 1
    %s47 = scalar_select %p44, %s45, %s46
    %p50 = pneg %p44
    %p51 = scmp.eq.s32.totalorder %s9, 3
    %p52 = por %p50, %p51
    %p53 = scmp.ne.s32.totalorder %s45, %s48
    %p54 = scmp.eq.s32.totalorder %s9, 0
    %p55 = por %p53, %p54
    %p56 = scmp.ne.s32.totalorder %s45, %s48
    %p57 = scmp.eq.s32.totalorder %s14, 3
    %p58 = por %p56, %p57
    %p59 = scmp.ne.s32.totalorder %s48, %s49
    %p60 = scmp.eq.s32.totalorder %s14, 0
    %p61 = por %p59, %p60
    %p62 = scmp.ne.s32.totalorder %s48, %s49
    %p63 = scmp.eq.s32.totalorder %s15, 3
    %p64 = por %p62, %p63
    %p66 = scmp.ne.s32.totalorder %s49, %s65
    %p67 = scmp.eq.s32.totalorder %s15, 0
    %p68 = por %p66, %p67
    %s69 = ssub.s32 %s9, %s16
    %p70 = scmp.eq.s32.totalorder %s69, 0
    %s72 = sadd.s32 %s71, 1
    %s73 = scalar_select %p70, %s71, %s72
    %p76 = pneg %p70
    %p77 = scmp.eq.s32.totalorder %s9, 3
    %p78 = por %p76, %p77
    %p79 = scmp.ne.s32.totalorder %s71, %s74
    %p80 = scmp.eq.s32.totalorder %s9, 0
    %p81 = por %p79, %p80
    %p82 = scmp.ne.s32.totalorder %s71, %s74
    %p83 = scmp.eq.s32.totalorder %s14, 3
    %p84 = por %p82, %p83
    %p85 = scmp.ne.s32.totalorder %s74, %s75
    %p86 = scmp.eq.s32.totalorder %s14, 0
    %p87 = por %p85, %p86
    %p88 = scmp.ne.s32.totalorder %s74, %s75
    %p89 = scmp.eq.s32.totalorder %s15, 3
    %p90 = por %p88, %p89
    %p92 = scmp.ne.s32.totalorder %s75, %s91
    %p93 = scmp.eq.s32.totalorder %s15, 0
    %p94 = por %p92, %p93
    %s95 = ssub.s32 %s9, %s16
    %p96 = scmp.eq.s32.totalorder %s95, 0
    %s98 = sadd.s32 %s97, 1
    %s99 = scalar_select %p96, %s97, %s98
    %p102 = pneg %p96
    %p103 = scmp.eq.s32.totalorder %s9, 3
    %p104 = por %p102, %p103
    %p105 = scmp.ne.s32.totalorder %s97, %s100
    %p106 = scmp.eq.s32.totalorder %s9, 0
    %p107 = por %p105, %p106
    %p108 = scmp.ne.s32.totalorder %s97, %s100
    %p109 = scmp.eq.s32.totalorder %s14, 3
    %p110 = por %p108, %p109
    %p111 = scmp.ne.s32.totalorder %s100, %s101
    %p112 = scmp.eq.s32.totalorder %s14, 0
    %p113 = por %p111, %p112
    %p114 = scmp.ne.s32.totalorder %s100, %s101
    %p115 = scmp.eq.s32.totalorder %s15, 3
    %p116 = por %p114, %p115
    %p118 = scmp.ne.s32.totalorder %s101, %s117
    %p119 = scmp.eq.s32.totalorder %s15, 0
    %p120 = por %p118, %p119
    %p121 = scmp.le.s32.totalorder 1, %s9
    %p122 = scmp.lt.s32.totalorder %s9, 5
    %p123 = pnand %p121, %p122
    %p124 = pneg %p123
    // Predicated region
    $region9: #{transformer_decoder_model.20} parent=5 // pred_check
      _
    $region10: #{transformer_decoder_model.20} parent=5 // pred_check_branch
      %126 = sbr.rel (%p123) target = $region12
    $region11: #{transformer_decoder_model.20} parent=5 // pred_region
      %s127 = ssub.s32 %s9, 1
    $region12: #{transformer_decoder_model.20} parent=5 // pred_fallthru
      _
    %p128 = scmp.lt.s32.totalorder %s9, 4
    // Predicated region
    $region13: #{transformer_decoder_model.20} parent=5 // pred_check
      %p129 = pneg %p128
    $region14: #{transformer_decoder_model.20} parent=5 // pred_check_branch
      %131 = sbr.rel (%p129) target = $region16
    $region15: #{transformer_decoder_model.20} parent=5 // pred_region
      // Predicated region
      $region17: #{transformer_decoder_model.20} parent=15 // pred_check
        %p132 = pneg %p29
      $region18: #{transformer_decoder_model.20} parent=15 // pred_check_branch
        %134 = sbr.rel (%p132) target = $region20
      $region19: #{transformer_decoder_model.20} parent=15 // pred_region
        %s135 = smul.u32 16, %s9
        %p136 = scmp.lt.s32.totalorder %s135, 63
        %s137 = scalar_select %p136, %s135, 63
        %s138 = smul.addr %s137, 2
        %s139 = scalar_lea.vmem %s0, %s138
        %s140 = smul.u32 16, %s9
      $region20: #{transformer_decoder_model.20} parent=15 // pred_fallthru
        _
      // Predicated region
      $region21: #{transformer_decoder_model.20} parent=15 // pred_check
        %p141 = pneg %p55
      $region22: #{transformer_decoder_model.20} parent=15 // pred_check_branch
        %143 = sbr.rel (%p141) target = $region24
      $region23: #{transformer_decoder_model.20} parent=15 // pred_region
        %s144 = smul.u32 16, %s9
        %p145 = scmp.lt.s32.totalorder %s144, 63
        %s146 = scalar_select %p145, %s144, 63
        %s147 = smul.addr %s146, 2
        %s148 = scalar_lea.vmem %s1, %s147
        %s149 = smul.u32 16, %s9
      $region24: #{transformer_decoder_model.20} parent=15 // pred_fallthru
        _
      // Predicated region
      $region25: #{transformer_decoder_model.20} parent=15 // pred_check
        %p150 = pneg %p81
      $region26: #{transformer_decoder_model.20} parent=15 // pred_check_branch
        %152 = sbr.rel (%p150) target = $region28
      $region27: #{transformer_decoder_model.20} parent=15 // pred_region
        %s153 = smul.u32 16, %s9
        %p154 = scmp.lt.s32.totalorder %s153, 63
        %s155 = scalar_select %p154, %s153, 63
        %s156 = smul.addr %s155, 2
        %s157 = scalar_lea.vmem %s2, %s156
        %s158 = smul.u32 16, %s9
      $region28: #{transformer_decoder_model.20} parent=15 // pred_fallthru
        _
    $region16: #{transformer_decoder_model.20} parent=5 // pred_fallthru
      _
    %p159 = scmp.le.s32.totalorder 1, %s9
    %p160 = scmp.lt.s32.totalorder %s9, 5
    %p161 = pnand %p159, %p160
    %p162 = pneg %p161
    // Predicated region
    $region29: #{transformer_decoder_model.20} parent=5 // pred_check
      _
    $region30: #{transformer_decoder_model.20} parent=5 // pred_check_branch
      %164 = sbr.rel (%p161) target = $region32
    $region31: #{transformer_decoder_model.20} parent=5 // pred_region
      %s165 = ssub.s32 %s9, 1
      %s166 = smul.u32 16, %s14
      %p167 = scmp.lt.s32.totalorder %s166, 63
      %s168 = scalar_select %p167, %s166, 63
      %s169 = smul.addr %s168, 2
      %s170 = scalar_lea.vmem %s0, %s169
      %p171 = pneg %p35
      %p172 = pneg %p32
      %s173 = smul.u32 16, %s14
      %p174 = scmp.lt.s32.totalorder %s173, 63
      %s175 = scalar_select %p174, %s173, 63
      %s176 = smul.addr %s175, 2
      %s177 = scalar_lea.vmem %s1, %s176
      %p178 = pneg %p61
      %p179 = pneg %p58
      %s180 = smul.u32 16, %s14
      %p181 = scmp.lt.s32.totalorder %s180, 63
      %s182 = scalar_select %p181, %s180, 63
      %s183 = smul.addr %s182, 2
      %s184 = scalar_lea.vmem %s2, %s183
      %p185 = pneg %p87
      %p186 = pneg %p84
      %p187 = pneg %p113
      %p188 = pneg %p110
      %s189 = smul.u32 16, %s14
      %p190 = scmp.lt.s32.totalorder %s189, 63
      %s191 = scalar_select %p190, %s189, 63
      %s192 = smul.addr %s191, 2
      %s193 = scalar_lea.vmem %s3, %s192
      %s194 = smul.u32 16, %s14
      %p195 = scmp.lt.s32.totalorder %s194, 63
      %s196 = scalar_select %p195, %s194, 63
      %s197 = smul.addr %s196, 2
      %s198 = scalar_lea.vmem %s0, %s197
      %s199 = smul.u32 16, %s14
      %s200 = smul.u32 16, %s14
      %p201 = scmp.lt.s32.totalorder %s200, 63
      %s202 = scalar_select %p201, %s200, 63
      %s203 = smul.addr %s202, 2
      %s204 = scalar_lea.vmem %s1, %s203
      %s205 = smul.u32 16, %s14
      %s206 = smul.u32 16, %s14
      %p207 = scmp.lt.s32.totalorder %s206, 63
      %s208 = scalar_select %p207, %s206, 63
      %s209 = smul.addr %s208, 2
      %s210 = scalar_lea.vmem %s2, %s209
      %s211 = smul.u32 16, %s14
      %s212 = smul.u32 16, %s14
      %p213 = scmp.lt.s32.totalorder %s212, 63
      %s214 = scalar_select %p213, %s212, 63
      %s215 = smul.addr %s214, 2
      %s216 = scalar_lea.vmem %s3, %s215
      %s217 = smul.u32 16, %s14
      %v219 = vld [vmem:[%s198] sm:$0x3]
      %v220 = vld [vmem:[%s198 + $0x2] sm:$0x3]
      %v221 = vld [vmem:[%s198 + $0x4] sm:$0x3]
      %v222 = vld [vmem:[%s198 + $0x6] sm:$0x3]
      %v223 = vld [vmem:[%s198 + $0x8] sm:$0x3]
      %v224 = vld [vmem:[%s198 + $0xa] sm:$0x3]
      %v225 = vld [vmem:[%s198 + $0xc] sm:$0x3]
      %v226 = vld [vmem:[%s198 + $0xe] sm:$0x3]
      %v227 = vld [vmem:[%s198 + $0x10] sm:$0x3]
      %v228 = vld [vmem:[%s198 + $0x12] sm:$0x3]
      %v229 = vld [vmem:[%s198 + $0x14] sm:$0x3]
      %v230 = vld [vmem:[%s198 + $0x16] sm:$0x3]
      %v231 = vld [vmem:[%s198 + $0x18] sm:$0x3]
      %v232 = vld [vmem:[%s198 + $0x1a] sm:$0x3]
      %v233 = vld [vmem:[%s198 + $0x1c] sm:$0x3]
      %v234 = vld [vmem:[%s198 + $0x1e] sm:$0x3]
      %v235 = vld [vmem:[%s204] sm:$0x3]
      %v236 = vld [vmem:[%s204 + $0x2] sm:$0x3]
      %v237 = vld [vmem:[%s204 + $0x4] sm:$0x3]
      %v238 = vld [vmem:[%s204 + $0x6] sm:$0x3]
      %v239 = vld [vmem:[%s204 + $0x8] sm:$0x3]
      %v240 = vld [vmem:[%s204 + $0xa] sm:$0x3]
      %v241 = vld [vmem:[%s204 + $0xc] sm:$0x3]
      %v242 = vld [vmem:[%s204 + $0xe] sm:$0x3]
      %v243 = vld [vmem:[%s204 + $0x10] sm:$0x3]
      %v244 = vld [vmem:[%s204 + $0x12] sm:$0x3]
      %v245 = vld [vmem:[%s204 + $0x14] sm:$0x3]
      %v246 = vld [vmem:[%s204 + $0x16] sm:$0x3]
      %v247 = vld [vmem:[%s204 + $0x18] sm:$0x3]
      %v248 = vld [vmem:[%s204 + $0x1a] sm:$0x3]
      %v249 = vld [vmem:[%s204 + $0x1c] sm:$0x3]
      %v250 = vld [vmem:[%s204 + $0x1e] sm:$0x3]
      %v251 = vld [vmem:[%s210] sm:$0x3]
      %v252 = vld [vmem:[%s210 + $0x2] sm:$0x3]
      %v253 = vld [vmem:[%s210 + $0x4] sm:$0x3]
      %v254 = vld [vmem:[%s210 + $0x6] sm:$0x3]
      %v255 = vld [vmem:[%s210 + $0x8] sm:$0x3]
      %v256 = vld [vmem:[%s210 + $0xa] sm:$0x3]
      %v257 = vld [vmem:[%s210 + $0xc] sm:$0x3]
      %v258 = vld [vmem:[%s210 + $0xe] sm:$0x3]
      %v259 = vld [vmem:[%s210 + $0x10] sm:$0x3]
      %v260 = vld [vmem:[%s210 + $0x12] sm:$0x3]
      %v261 = vld [vmem:[%s210 + $0x14] sm:$0x3]
      %v262 = vld [vmem:[%s210 + $0x16] sm:$0x3]
      %v263 = vld [vmem:[%s210 + $0x18] sm:$0x3]
      %v264 = vld [vmem:[%s210 + $0x1a] sm:$0x3]
      %v265 = vld [vmem:[%s210 + $0x1c] sm:$0x3]
      %v266 = vld [vmem:[%s210 + $0x1e] sm:$0x3]
      %v267 = vpack.c.bf16 %v219, %v219
      %v268 = vpack.c.bf16 %v220, %v220
      %v269 = vpack.c.bf16 %v221, %v221
      %v270 = vpack.c.bf16 %v222, %v222
      %v271 = vpack.c.bf16 %v223, %v223
      %v272 = vpack.c.bf16 %v224, %v224
      %v273 = vpack.c.bf16 %v225, %v225
      %v274 = vpack.c.bf16 %v226, %v226
      %v275 = vpack.c.bf16 %v227, %v227
      %v276 = vpack.c.bf16 %v228, %v228
      %v277 = vpack.c.bf16 %v229, %v229
      %v278 = vpack.c.bf16 %v230, %v230
      %v279 = vpack.c.bf16 %v231, %v231
      %v280 = vpack.c.bf16 %v232, %v232
      %v281 = vpack.c.bf16 %v233, %v233
      %v282 = vpack.c.bf16 %v234, %v234
      %v283 = vpack.c.bf16 %v235, %v235
      %v284 = vpack.c.bf16 %v236, %v236
      %v285 = vpack.c.bf16 %v237, %v237
      %v286 = vpack.c.bf16 %v238, %v238
      %v287 = vpack.c.bf16 %v239, %v239
      %v288 = vpack.c.bf16 %v240, %v240
      %v289 = vpack.c.bf16 %v241, %v241
      %v290 = vpack.c.bf16 %v242, %v242
      %v291 = vpack.c.bf16 %v243, %v243
      %v292 = vpack.c.bf16 %v244, %v244
      %v293 = vpack.c.bf16 %v245, %v245
      %v294 = vpack.c.bf16 %v246, %v246
      %v295 = vpack.c.bf16 %v247, %v247
      %v296 = vpack.c.bf16 %v248, %v248
      %v297 = vpack.c.bf16 %v249, %v249
      %v298 = vpack.c.bf16 %v250, %v250
      %vm299 = vcmask 261120
      %v301 = vsel %vm299, %v267, 0
      %v304 = vsel %vm299, %v283, 0
      %306 = vmatpush.bf16.xpose.msra.mxu0 0
      %307 = vmatpush.bf16.xpose.msra.mxu0 0
      %308 = vmatpush.bf16.xpose.msra.mxu0 0
      %309 = vmatpush.bf16.xpose.msra.mxu0 0
      %310 = vmatpush.bf16.xpose.msra.mxu0 0
      %311 = vmatpush.bf16.xpose.msra.mxu0 0
      %312 = vmatpush.bf16.xpose.msra.mxu0 0
      %313 = vmatpush.bf16.xpose.msra.mxu0 %v304
      %314 = vmatmul.bf16.gmra.mxu0 %v301
      %v315 = vpop.f32.mrf.mxu0
      %v316 = vadd.f32 0.0, %v315
      %v317 = vpop.f32.mrf.mxu0
      %318 = vdwg.mxu0
      %v320 = vsel %vm299, %v268, 0
      %v323 = vsel %vm299, %v284, 0
      %325 = vmatpush.bf16.xpose.msra.mxu0 0
      %326 = vmatpush.bf16.xpose.msra.mxu0 0
      %327 = vmatpush.bf16.xpose.msra.mxu0 0
      %328 = vmatpush.bf16.xpose.msra.mxu0 0
      %329 = vmatpush.bf16.xpose.msra.mxu0 0
      %330 = vmatpush.bf16.xpose.msra.mxu0 0
      %331 = vmatpush.bf16.xpose.msra.mxu0 0
      %332 = vmatpush.bf16.xpose.msra.mxu0 %v323
      %333 = vmatmul.bf16.gmra.mxu0 %v320
      %v334 = vpop.f32.mrf.mxu0
      %v335 = vadd.f32 0.0, %v334
      %v336 = vpop.f32.mrf.mxu0
      %337 = vdwg.mxu0
      %v339 = vsel %vm299, %v269, 0
      %v342 = vsel %vm299, %v285, 0
      %344 = vmatpush.bf16.xpose.msra.mxu0 0
      %345 = vmatpush.bf16.xpose.msra.mxu0 0
      %346 = vmatpush.bf16.xpose.msra.mxu0 0
      %347 = vmatpush.bf16.xpose.msra.mxu0 0
      %348 = vmatpush.bf16.xpose.msra.mxu0 0
      %349 = vmatpush.bf16.xpose.msra.mxu0 0
      %350 = vmatpush.bf16.xpose.msra.mxu0 0
      %351 = vmatpush.bf16.xpose.msra.mxu0 %v342
      %352 = vmatmul.bf16.gmra.mxu0 %v339
      %v353 = vpop.f32.mrf.mxu0
      %v354 = vadd.f32 0.0, %v353
      %v355 = vpop.f32.mrf.mxu0
      %356 = vdwg.mxu0
      %v358 = vsel %vm299, %v270, 0
      %v361 = vsel %vm299, %v286, 0
      %363 = vmatpush.bf16.xpose.msra.mxu0 0
      %364 = vmatpush.bf16.xpose.msra.mxu0 0
      %365 = vmatpush.bf16.xpose.msra.mxu0 0
      %366 = vmatpush.bf16.xpose.msra.mxu0 0
      %367 = vmatpush.bf16.xpose.msra.mxu0 0
      %368 = vmatpush.bf16.xpose.msra.mxu0 0
      %369 = vmatpush.bf16.xpose.msra.mxu0 0
      %370 = vmatpush.bf16.xpose.msra.mxu0 %v361
      %371 = vmatmul.bf16.gmra.mxu0 %v358
      %v372 = vpop.f32.mrf.mxu0
      %v373 = vadd.f32 0.0, %v372
      %v374 = vpop.f32.mrf.mxu0
      %375 = vdwg.mxu0
      %v377 = vsel %vm299, %v271, 0
      %v380 = vsel %vm299, %v287, 0
      %382 = vmatpush.bf16.xpose.msra.mxu0 0
      %383 = vmatpush.bf16.xpose.msra.mxu0 0
      %384 = vmatpush.bf16.xpose.msra.mxu0 0
      %385 = vmatpush.bf16.xpose.msra.mxu0 0
      %386 = vmatpush.bf16.xpose.msra.mxu0 0
      %387 = vmatpush.bf16.xpose.msra.mxu0 0
      %388 = vmatpush.bf16.xpose.msra.mxu0 0
      %389 = vmatpush.bf16.xpose.msra.mxu0 %v380
      %390 = vmatmul.bf16.gmra.mxu0 %v377
      %v391 = vpop.f32.mrf.mxu0
      %v392 = vadd.f32 0.0, %v391
      %v393 = vpop.f32.mrf.mxu0
      %394 = vdwg.mxu0
      %v396 = vsel %vm299, %v272, 0
      %v399 = vsel %vm299, %v288, 0
      %401 = vmatpush.bf16.xpose.msra.mxu0 0
      %402 = vmatpush.bf16.xpose.msra.mxu0 0
      %403 = vmatpush.bf16.xpose.msra.mxu0 0
      %404 = vmatpush.bf16.xpose.msra.mxu0 0
      %405 = vmatpush.bf16.xpose.msra.mxu0 0
      %406 = vmatpush.bf16.xpose.msra.mxu0 0
      %407 = vmatpush.bf16.xpose.msra.mxu0 0
      %408 = vmatpush.bf16.xpose.msra.mxu0 %v399
      %409 = vmatmul.bf16.gmra.mxu0 %v396
      %v410 = vpop.f32.mrf.mxu0
      %v411 = vadd.f32 0.0, %v410
      %v412 = vpop.f32.mrf.mxu0
      %413 = vdwg.mxu0
      %v415 = vsel %vm299, %v273, 0
      %v418 = vsel %vm299, %v289, 0
      %420 = vmatpush.bf16.xpose.msra.mxu0 0
      %421 = vmatpush.bf16.xpose.msra.mxu0 0
      %422 = vmatpush.bf16.xpose.msra.mxu0 0
      %423 = vmatpush.bf16.xpose.msra.mxu0 0
      %424 = vmatpush.bf16.xpose.msra.mxu0 0
      %425 = vmatpush.bf16.xpose.msra.mxu0 0
      %426 = vmatpush.bf16.xpose.msra.mxu0 0
      %427 = vmatpush.bf16.xpose.msra.mxu0 %v418
      %428 = vmatmul.bf16.gmra.mxu0 %v415
      %v429 = vpop.f32.mrf.mxu0
      %v430 = vadd.f32 0.0, %v429
      %v431 = vpop.f32.mrf.mxu0
      %432 = vdwg.mxu0
      %v434 = vsel %vm299, %v274, 0
      %v437 = vsel %vm299, %v290, 0
      %439 = vmatpush.bf16.xpose.msra.mxu0 0
      %440 = vmatpush.bf16.xpose.msra.mxu0 0
      %441 = vmatpush.bf16.xpose.msra.mxu0 0
      %442 = vmatpush.bf16.xpose.msra.mxu0 0
      %443 = vmatpush.bf16.xpose.msra.mxu0 0
      %444 = vmatpush.bf16.xpose.msra.mxu0 0
      %445 = vmatpush.bf16.xpose.msra.mxu0 0
      %446 = vmatpush.bf16.xpose.msra.mxu0 %v437
      %447 = vmatmul.bf16.gmra.mxu0 %v434
      %v448 = vpop.f32.mrf.mxu0
      %v449 = vadd.f32 0.0, %v448
      %v450 = vpop.f32.mrf.mxu0
      %451 = vdwg.mxu0
      %v453 = vsel %vm299, %v275, 0
      %v456 = vsel %vm299, %v291, 0
      %458 = vmatpush.bf16.xpose.msra.mxu0 0
      %459 = vmatpush.bf16.xpose.msra.mxu0 0
      %460 = vmatpush.bf16.xpose.msra.mxu0 0
      %461 = vmatpush.bf16.xpose.msra.mxu0 0
      %462 = vmatpush.bf16.xpose.msra.mxu0 0
      %463 = vmatpush.bf16.xpose.msra.mxu0 0
      %464 = vmatpush.bf16.xpose.msra.mxu0 0
      %465 = vmatpush.bf16.xpose.msra.mxu0 %v456
      %466 = vmatmul.bf16.gmra.mxu0 %v453
      %v467 = vpop.f32.mrf.mxu0
      %v468 = vadd.f32 0.0, %v467
      %v469 = vpop.f32.mrf.mxu0
      %470 = vdwg.mxu0
      %v472 = vsel %vm299, %v276, 0
      %v475 = vsel %vm299, %v292, 0
      %477 = vmatpush.bf16.xpose.msra.mxu0 0
      %478 = vmatpush.bf16.xpose.msra.mxu0 0
      %479 = vmatpush.bf16.xpose.msra.mxu0 0
      %480 = vmatpush.bf16.xpose.msra.mxu0 0
      %481 = vmatpush.bf16.xpose.msra.mxu0 0
      %482 = vmatpush.bf16.xpose.msra.mxu0 0
      %483 = vmatpush.bf16.xpose.msra.mxu0 0
      %484 = vmatpush.bf16.xpose.msra.mxu0 %v475
      %485 = vmatmul.bf16.gmra.mxu0 %v472
      %v486 = vpop.f32.mrf.mxu0
      %v487 = vadd.f32 0.0, %v486
      %v488 = vpop.f32.mrf.mxu0
      %489 = vdwg.mxu0
      %v491 = vsel %vm299, %v277, 0
      %v494 = vsel %vm299, %v293, 0
      %496 = vmatpush.bf16.xpose.msra.mxu0 0
      %497 = vmatpush.bf16.xpose.msra.mxu0 0
      %498 = vmatpush.bf16.xpose.msra.mxu0 0
      %499 = vmatpush.bf16.xpose.msra.mxu0 0
      %500 = vmatpush.bf16.xpose.msra.mxu0 0
      %501 = vmatpush.bf16.xpose.msra.mxu0 0
      %502 = vmatpush.bf16.xpose.msra.mxu0 0
      %503 = vmatpush.bf16.xpose.msra.mxu0 %v494
      %504 = vmatmul.bf16.gmra.mxu0 %v491
      %v505 = vpop.f32.mrf.mxu0
      %v506 = vadd.f32 0.0, %v505
      %v507 = vpop.f32.mrf.mxu0
      %508 = vdwg.mxu0
      %v510 = vsel %vm299, %v278, 0
      %v513 = vsel %vm299, %v294, 0
      %515 = vmatpush.bf16.xpose.msra.mxu0 0
      %516 = vmatpush.bf16.xpose.msra.mxu0 0
      %517 = vmatpush.bf16.xpose.msra.mxu0 0
      %518 = vmatpush.bf16.xpose.msra.mxu0 0
      %519 = vmatpush.bf16.xpose.msra.mxu0 0
      %520 = vmatpush.bf16.xpose.msra.mxu0 0
      %521 = vmatpush.bf16.xpose.msra.mxu0 0
      %522 = vmatpush.bf16.xpose.msra.mxu0 %v513
      %523 = vmatmul.bf16.gmra.mxu0 %v510
      %v524 = vpop.f32.mrf.mxu0
      %v525 = vadd.f32 0.0, %v524
      %v526 = vpop.f32.mrf.mxu0
      %527 = vdwg.mxu0
      %v529 = vsel %vm299, %v279, 0
      %v532 = vsel %vm299, %v295, 0
      %534 = vmatpush.bf16.xpose.msra.mxu0 0
      %535 = vmatpush.bf16.xpose.msra.mxu0 0
      %536 = vmatpush.bf16.xpose.msra.mxu0 0
      %537 = vmatpush.bf16.xpose.msra.mxu0 0
      %538 = vmatpush.bf16.xpose.msra.mxu0 0
      %539 = vmatpush.bf16.xpose.msra.mxu0 0
      %540 = vmatpush.bf16.xpose.msra.mxu0 0
      %541 = vmatpush.bf16.xpose.msra.mxu0 %v532
      %542 = vmatmul.bf16.gmra.mxu0 %v529
      %v543 = vpop.f32.mrf.mxu0
      %v544 = vadd.f32 0.0, %v543
      %v545 = vpop.f32.mrf.mxu0
      %546 = vdwg.mxu0
      %v548 = vsel %vm299, %v280, 0
      %v551 = vsel %vm299, %v296, 0
      %553 = vmatpush.bf16.xpose.msra.mxu0 0
      %554 = vmatpush.bf16.xpose.msra.mxu0 0
      %555 = vmatpush.bf16.xpose.msra.mxu0 0
      %556 = vmatpush.bf16.xpose.msra.mxu0 0
      %557 = vmatpush.bf16.xpose.msra.mxu0 0
      %558 = vmatpush.bf16.xpose.msra.mxu0 0
      %559 = vmatpush.bf16.xpose.msra.mxu0 0
      %560 = vmatpush.bf16.xpose.msra.mxu0 %v551
      %561 = vmatmul.bf16.gmra.mxu0 %v548
      %v562 = vpop.f32.mrf.mxu0
      %v563 = vadd.f32 0.0, %v562
      %v564 = vpop.f32.mrf.mxu0
      %565 = vdwg.mxu0
      %v567 = vsel %vm299, %v281, 0
      %v570 = vsel %vm299, %v297, 0
      %572 = vmatpush.bf16.xpose.msra.mxu0 0
      %573 = vmatpush.bf16.xpose.msra.mxu0 0
      %574 = vmatpush.bf16.xpose.msra.mxu0 0
      %575 = vmatpush.bf16.xpose.msra.mxu0 0
      %576 = vmatpush.bf16.xpose.msra.mxu0 0
      %577 = vmatpush.bf16.xpose.msra.mxu0 0
      %578 = vmatpush.bf16.xpose.msra.mxu0 0
      %579 = vmatpush.bf16.xpose.msra.mxu0 %v570
      %580 = vmatmul.bf16.gmra.mxu0 %v567
      %v581 = vpop.f32.mrf.mxu0
      %v582 = vadd.f32 0.0, %v581
      %v583 = vpop.f32.mrf.mxu0
      %584 = vdwg.mxu0
      %v586 = vsel %vm299, %v282, 0
      %v589 = vsel %vm299, %v298, 0
      %591 = vmatpush.bf16.xpose.msra.mxu0 0
      %592 = vmatpush.bf16.xpose.msra.mxu0 0
      %593 = vmatpush.bf16.xpose.msra.mxu0 0
      %594 = vmatpush.bf16.xpose.msra.mxu0 0
      %595 = vmatpush.bf16.xpose.msra.mxu0 0
      %596 = vmatpush.bf16.xpose.msra.mxu0 0
      %597 = vmatpush.bf16.xpose.msra.mxu0 0
      %598 = vmatpush.bf16.xpose.msra.mxu0 %v589
      %599 = vmatmul.bf16.gmra.mxu0 %v586
      %v600 = vpop.f32.mrf.mxu0
      %v601 = vadd.f32 0.0, %v600
      %v602 = vpop.f32.mrf.mxu0
      %603 = vdwg.mxu0
      %vm604 = vcmask 9216
      %v605 = vsel %vm604, %v316, -inf
      %606 = vmax.xlane.f32.xlu0 %v605
      %v607 = vpop.xlane.xlu0 %606
      %v608 = vsel %vm604, %v335, -inf
      %609 = vmax.xlane.f32.xlu0 %v608
      %v610 = vpop.xlane.xlu0 %609
      %v611 = vsel %vm604, %v354, -inf
      %612 = vmax.xlane.f32.xlu0 %v611
      %v613 = vpop.xlane.xlu0 %612
      %v614 = vsel %vm604, %v373, -inf
      %615 = vmax.xlane.f32.xlu0 %v614
      %v616 = vpop.xlane.xlu0 %615
      %v617 = vsel %vm604, %v392, -inf
      %618 = vmax.xlane.f32.xlu0 %v617
      %v619 = vpop.xlane.xlu0 %618
      %v620 = vsel %vm604, %v411, -inf
      %621 = vmax.xlane.f32.xlu0 %v620
      %v622 = vpop.xlane.xlu0 %621
      %v623 = vsel %vm604, %v430, -inf
      %624 = vmax.xlane.f32.xlu0 %v623
      %v625 = vpop.xlane.xlu0 %624
      %v626 = vsel %vm604, %v449, -inf
      %627 = vmax.xlane.f32.xlu0 %v626
      %v628 = vpop.xlane.xlu0 %627
      %v629 = vsel %vm604, %v468, -inf
      %630 = vmax.xlane.f32.xlu0 %v629
      %v631 = vpop.xlane.xlu0 %630
      %v632 = vsel %vm604, %v487, -inf
      %633 = vmax.xlane.f32.xlu0 %v632
      %v634 = vpop.xlane.xlu0 %633
      %v635 = vsel %vm604, %v506, -inf
      %636 = vmax.xlane.f32.xlu0 %v635
      %v637 = vpop.xlane.xlu0 %636
      %v638 = vsel %vm604, %v525, -inf
      %639 = vmax.xlane.f32.xlu0 %v638
      %v640 = vpop.xlane.xlu0 %639
      %v641 = vsel %vm604, %v544, -inf
      %642 = vmax.xlane.f32.xlu0 %v641
      %v643 = vpop.xlane.xlu0 %642
      %v644 = vsel %vm604, %v563, -inf
      %645 = vmax.xlane.f32.xlu0 %v644
      %v646 = vpop.xlane.xlu0 %645
      %v647 = vsel %vm604, %v582, -inf
      %648 = vmax.xlane.f32.xlu0 %v647
      %v649 = vpop.xlane.xlu0 %648
      %v650 = vsel %vm604, %v601, -inf
      %651 = vmax.xlane.f32.xlu0 %v650
      %v652 = vpop.xlane.xlu0 %651
      %v653 = vsub.f32 %v316, %v607
      %v654 = vsub.f32 %v335, %v610
      %v655 = vsub.f32 %v354, %v613
      %v656 = vsub.f32 %v373, %v616
      %v657 = vsub.f32 %v392, %v619
      %v658 = vsub.f32 %v411, %v622
      %v659 = vsub.f32 %v430, %v625
      %v660 = vsub.f32 %v449, %v628
      %v661 = vsub.f32 %v468, %v631
      %v662 = vsub.f32 %v487, %v634
      %v663 = vsub.f32 %v506, %v637
      %v664 = vsub.f32 %v525, %v640
      %v665 = vsub.f32 %v544, %v643
      %v666 = vsub.f32 %v563, %v646
      %v667 = vsub.f32 %v582, %v649
      %v668 = vsub.f32 %v601, %v652
      %v669 = vmul.f32 %v653, 1.442695
      %v670 = vpow.pop %v669
      %v671 = vmul.f32 %v654, 1.442695
      %v672 = vpow.pop %v671
      %v673 = vmul.f32 %v655, 1.442695
      %v674 = vpow.pop %v673
      %v675 = vmul.f32 %v656, 1.442695
      %v676 = vpow.pop %v675
      %v677 = vmul.f32 %v657, 1.442695
      %v678 = vpow.pop %v677
      %v679 = vmul.f32 %v658, 1.442695
      %v680 = vpow.pop %v679
      %v681 = vmul.f32 %v659, 1.442695
      %v682 = vpow.pop %v681
      %v683 = vmul.f32 %v660, 1.442695
      %v684 = vpow.pop %v683
      %v685 = vmul.f32 %v661, 1.442695
      %v686 = vpow.pop %v685
      %v687 = vmul.f32 %v662, 1.442695
      %v688 = vpow.pop %v687
      %v689 = vmul.f32 %v663, 1.442695
      %v690 = vpow.pop %v689
      %v691 = vmul.f32 %v664, 1.442695
      %v692 = vpow.pop %v691
      %v693 = vmul.f32 %v665, 1.442695
      %v694 = vpow.pop %v693
      %v695 = vmul.f32 %v666, 1.442695
      %v696 = vpow.pop %v695
      %v697 = vmul.f32 %v667, 1.442695
      %v698 = vpow.pop %v697
      %v699 = vmul.f32 %v668, 1.442695
      %v700 = vpow.pop %v699
      %v701 = vsel %vm604, %v670, 0.0
      %702 = vadd.xlane.f32.xlu0 %v701
      %v703 = vpop.xlane.xlu0 %702
      %v704 = vsel %vm604, %v672, 0.0
      %705 = vadd.xlane.f32.xlu0 %v704
      %v706 = vpop.xlane.xlu0 %705
      %v707 = vsel %vm604, %v674, 0.0
      %708 = vadd.xlane.f32.xlu0 %v707
      %v709 = vpop.xlane.xlu0 %708
      %v710 = vsel %vm604, %v676, 0.0
      %711 = vadd.xlane.f32.xlu0 %v710
      %v712 = vpop.xlane.xlu0 %711
      %v713 = vsel %vm604, %v678, 0.0
      %714 = vadd.xlane.f32.xlu0 %v713
      %v715 = vpop.xlane.xlu0 %714
      %v716 = vsel %vm604, %v680, 0.0
      %717 = vadd.xlane.f32.xlu0 %v716
      %v718 = vpop.xlane.xlu0 %717
      %v719 = vsel %vm604, %v682, 0.0
      %720 = vadd.xlane.f32.xlu0 %v719
      %v721 = vpop.xlane.xlu0 %720
      %v722 = vsel %vm604, %v684, 0.0
      %723 = vadd.xlane.f32.xlu0 %v722
      %v724 = vpop.xlane.xlu0 %723
      %v725 = vsel %vm604, %v686, 0.0
      %726 = vadd.xlane.f32.xlu0 %v725
      %v727 = vpop.xlane.xlu0 %726
      %v728 = vsel %vm604, %v688, 0.0
      %729 = vadd.xlane.f32.xlu0 %v728
      %v730 = vpop.xlane.xlu0 %729
      %v731 = vsel %vm604, %v690, 0.0
      %732 = vadd.xlane.f32.xlu0 %v731
      %v733 = vpop.xlane.xlu0 %732
      %v734 = vsel %vm604, %v692, 0.0
      %735 = vadd.xlane.f32.xlu0 %v734
      %v736 = vpop.xlane.xlu0 %735
      %v737 = vsel %vm604, %v694, 0.0
      %738 = vadd.xlane.f32.xlu0 %v737
      %v739 = vpop.xlane.xlu0 %738
      %v740 = vsel %vm604, %v696, 0.0
      %741 = vadd.xlane.f32.xlu0 %v740
      %v742 = vpop.xlane.xlu0 %741
      %v743 = vsel %vm604, %v698, 0.0
      %744 = vadd.xlane.f32.xlu0 %v743
      %v745 = vpop.xlane.xlu0 %744
      %v746 = vsel %vm604, %v700, 0.0
      %747 = vadd.xlane.f32.xlu0 %v746
      %v748 = vpop.xlane.xlu0 %747
      %v749 = vrcp.pop %v703
      %v750 = vrcp.pop %v706
      %v751 = vrcp.pop %v709
      %v752 = vrcp.pop %v712
      %v753 = vrcp.pop %v715
      %v754 = vrcp.pop %v718
      %v755 = vrcp.pop %v721
      %v756 = vrcp.pop %v724
      %v757 = vrcp.pop %v727
      %v758 = vrcp.pop %v730
      %v759 = vrcp.pop %v733
      %v760 = vrcp.pop %v736
      %v761 = vrcp.pop %v739
      %v762 = vrcp.pop %v742
      %v763 = vrcp.pop %v745
      %v764 = vrcp.pop %v748
      %v765 = vmul.f32 %v670, %v749
      %v766 = vmul.f32 %v672, %v750
      %v767 = vmul.f32 %v674, %v751
      %v768 = vmul.f32 %v676, %v752
      %v769 = vmul.f32 %v678, %v753
      %v770 = vmul.f32 %v680, %v754
      %v771 = vmul.f32 %v682, %v755
      %v772 = vmul.f32 %v684, %v756
      %v773 = vmul.f32 %v686, %v757
      %v774 = vmul.f32 %v688, %v758
      %v775 = vmul.f32 %v690, %v759
      %v776 = vmul.f32 %v692, %v760
      %v777 = vmul.f32 %v694, %v761
      %v778 = vmul.f32 %v696, %v762
      %v779 = vmul.f32 %v698, %v763
      %v780 = vmul.f32 %v700, %v764
      %v781 = vpack.c.bf16 %v765, %v765
      %v782 = vpack.c.bf16 %v766, %v766
      %v783 = vpack.c.bf16 %v767, %v767
      %v784 = vpack.c.bf16 %v768, %v768
      %v785 = vpack.c.bf16 %v769, %v769
      %v786 = vpack.c.bf16 %v770, %v770
      %v787 = vpack.c.bf16 %v771, %v771
      %v788 = vpack.c.bf16 %v772, %v772
      %v789 = vpack.c.bf16 %v773, %v773
      %v790 = vpack.c.bf16 %v774, %v774
      %v791 = vpack.c.bf16 %v775, %v775
      %v792 = vpack.c.bf16 %v776, %v776
      %v793 = vpack.c.bf16 %v777, %v777
      %v794 = vpack.c.bf16 %v778, %v778
      %v795 = vpack.c.bf16 %v779, %v779
      %v796 = vpack.c.bf16 %v780, %v780
      %v797 = vpack.c.bf16 %v251, %v251
      %v798 = vpack.c.bf16 %v252, %v252
      %v799 = vpack.c.bf16 %v253, %v253
      %v800 = vpack.c.bf16 %v254, %v254
      %v801 = vpack.c.bf16 %v255, %v255
      %v802 = vpack.c.bf16 %v256, %v256
      %v803 = vpack.c.bf16 %v257, %v257
      %v804 = vpack.c.bf16 %v258, %v258
      %v805 = vpack.c.bf16 %v259, %v259
      %v806 = vpack.c.bf16 %v260, %v260
      %v807 = vpack.c.bf16 %v261, %v261
      %v808 = vpack.c.bf16 %v262, %v262
      %v809 = vpack.c.bf16 %v263, %v263
      %v810 = vpack.c.bf16 %v264, %v264
      %v811 = vpack.c.bf16 %v265, %v265
      %v812 = vpack.c.bf16 %v266, %v266
      %vm813 = vcmask 15360
      %v815 = vsel %vm813, %v781, 0
      %vm817 = vcmask 1040384
      %v819 = vsel %vm817, %v797, 0
      %821 = vmatpush.bf16.msra.mxu0 0
      %822 = vmatpush.bf16.msra.mxu0 0
      %823 = vmatpush.bf16.msra.mxu0 0
      %824 = vmatpush.bf16.msra.mxu0 0
      %825 = vmatpush.bf16.msra.mxu0 0
      %826 = vmatpush.bf16.msra.mxu0 0
      %827 = vmatpush.bf16.msra.mxu0 0
      %828 = vmatpush.bf16.msra.mxu0 %v819
      %829 = vmatmul.bf16.gmra.mxu0 %v815
      %v830 = vpop.f32.mrf.mxu0
      %v831 = vadd.f32 0.0, %v830
      %v832 = vpop.f32.mrf.mxu0
      %833 = vdwg.mxu0
      %v835 = vsel %vm813, %v782, 0
      %v838 = vsel %vm817, %v798, 0
      %840 = vmatpush.bf16.msra.mxu0 0
      %841 = vmatpush.bf16.msra.mxu0 0
      %842 = vmatpush.bf16.msra.mxu0 0
      %843 = vmatpush.bf16.msra.mxu0 0
      %844 = vmatpush.bf16.msra.mxu0 0
      %845 = vmatpush.bf16.msra.mxu0 0
      %846 = vmatpush.bf16.msra.mxu0 0
      %847 = vmatpush.bf16.msra.mxu0 %v838
      %848 = vmatmul.bf16.gmra.mxu0 %v835
      %v849 = vpop.f32.mrf.mxu0
      %v850 = vadd.f32 0.0, %v849
      %v851 = vpop.f32.mrf.mxu0
      %852 = vdwg.mxu0
      %v854 = vsel %vm813, %v783, 0
      %v857 = vsel %vm817, %v799, 0
      %859 = vmatpush.bf16.msra.mxu0 0
      %860 = vmatpush.bf16.msra.mxu0 0
      %861 = vmatpush.bf16.msra.mxu0 0
      %862 = vmatpush.bf16.msra.mxu0 0
      %863 = vmatpush.bf16.msra.mxu0 0
      %864 = vmatpush.bf16.msra.mxu0 0
      %865 = vmatpush.bf16.msra.mxu0 0
      %866 = vmatpush.bf16.msra.mxu0 %v857
      %867 = vmatmul.bf16.gmra.mxu0 %v854
      %v868 = vpop.f32.mrf.mxu0
      %v869 = vadd.f32 0.0, %v868
      %v870 = vpop.f32.mrf.mxu0
      %871 = vdwg.mxu0
      %v873 = vsel %vm813, %v784, 0
      %v876 = vsel %vm817, %v800, 0
      %878 = vmatpush.bf16.msra.mxu0 0
      %879 = vmatpush.bf16.msra.mxu0 0
      %880 = vmatpush.bf16.msra.mxu0 0
      %881 = vmatpush.bf16.msra.mxu0 0
      %882 = vmatpush.bf16.msra.mxu0 0
      %883 = vmatpush.bf16.msra.mxu0 0
      %884 = vmatpush.bf16.msra.mxu0 0
      %885 = vmatpush.bf16.msra.mxu0 %v876
      %886 = vmatmul.bf16.gmra.mxu0 %v873
      %v887 = vpop.f32.mrf.mxu0
      %v888 = vadd.f32 0.0, %v887
      %v889 = vpop.f32.mrf.mxu0
      %890 = vdwg.mxu0
      %v892 = vsel %vm813, %v785, 0
      %v895 = vsel %vm817, %v801, 0
      %897 = vmatpush.bf16.msra.mxu0 0
      %898 = vmatpush.bf16.msra.mxu0 0
      %899 = vmatpush.bf16.msra.mxu0 0
      %900 = vmatpush.bf16.msra.mxu0 0
      %901 = vmatpush.bf16.msra.mxu0 0
      %902 = vmatpush.bf16.msra.mxu0 0
      %903 = vmatpush.bf16.msra.mxu0 0
      %904 = vmatpush.bf16.msra.mxu0 %v895
      %905 = vmatmul.bf16.gmra.mxu0 %v892
      %v906 = vpop.f32.mrf.mxu0
      %v907 = vadd.f32 0.0, %v906
      %v908 = vpop.f32.mrf.mxu0
      %909 = vdwg.mxu0
      %v911 = vsel %vm813, %v786, 0
      %v914 = vsel %vm817, %v802, 0
      %916 = vmatpush.bf16.msra.mxu0 0
      %917 = vmatpush.bf16.msra.mxu0 0
      %918 = vmatpush.bf16.msra.mxu0 0
      %919 = vmatpush.bf16.msra.mxu0 0
      %920 = vmatpush.bf16.msra.mxu0 0
      %921 = vmatpush.bf16.msra.mxu0 0
      %922 = vmatpush.bf16.msra.mxu0 0
      %923 = vmatpush.bf16.msra.mxu0 %v914
      %924 = vmatmul.bf16.gmra.mxu0 %v911
      %v925 = vpop.f32.mrf.mxu0
      %v926 = vadd.f32 0.0, %v925
      %v927 = vpop.f32.mrf.mxu0
      %928 = vdwg.mxu0
      %v930 = vsel %vm813, %v787, 0
      %v933 = vsel %vm817, %v803, 0
      %935 = vmatpush.bf16.msra.mxu0 0
      %936 = vmatpush.bf16.msra.mxu0 0
      %937 = vmatpush.bf16.msra.mxu0 0
      %938 = vmatpush.bf16.msra.mxu0 0
      %939 = vmatpush.bf16.msra.mxu0 0
      %940 = vmatpush.bf16.msra.mxu0 0
      %941 = vmatpush.bf16.msra.mxu0 0
      %942 = vmatpush.bf16.msra.mxu0 %v933
      %943 = vmatmul.bf16.gmra.mxu0 %v930
      %v944 = vpop.f32.mrf.mxu0
      %v945 = vadd.f32 0.0, %v944
      %v946 = vpop.f32.mrf.mxu0
      %947 = vdwg.mxu0
      %v949 = vsel %vm813, %v788, 0
      %v952 = vsel %vm817, %v804, 0
      %954 = vmatpush.bf16.msra.mxu0 0
      %955 = vmatpush.bf16.msra.mxu0 0
      %956 = vmatpush.bf16.msra.mxu0 0
      %957 = vmatpush.bf16.msra.mxu0 0
      %958 = vmatpush.bf16.msra.mxu0 0
      %959 = vmatpush.bf16.msra.mxu0 0
      %960 = vmatpush.bf16.msra.mxu0 0
      %961 = vmatpush.bf16.msra.mxu0 %v952
      %962 = vmatmul.bf16.gmra.mxu0 %v949
      %v963 = vpop.f32.mrf.mxu0
      %v964 = vadd.f32 0.0, %v963
      %v965 = vpop.f32.mrf.mxu0
      %966 = vdwg.mxu0
      %v968 = vsel %vm813, %v789, 0
      %v971 = vsel %vm817, %v805, 0
      %973 = vmatpush.bf16.msra.mxu0 0
      %974 = vmatpush.bf16.msra.mxu0 0
      %975 = vmatpush.bf16.msra.mxu0 0
      %976 = vmatpush.bf16.msra.mxu0 0
      %977 = vmatpush.bf16.msra.mxu0 0
      %978 = vmatpush.bf16.msra.mxu0 0
      %979 = vmatpush.bf16.msra.mxu0 0
      %980 = vmatpush.bf16.msra.mxu0 %v971
      %981 = vmatmul.bf16.gmra.mxu0 %v968
      %v982 = vpop.f32.mrf.mxu0
      %v983 = vadd.f32 0.0, %v982
      %v984 = vpop.f32.mrf.mxu0
      %985 = vdwg.mxu0
      %v987 = vsel %vm813, %v790, 0
      %v990 = vsel %vm817, %v806, 0
      %992 = vmatpush.bf16.msra.mxu0 0
      %993 = vmatpush.bf16.msra.mxu0 0
      %994 = vmatpush.bf16.msra.mxu0 0
      %995 = vmatpush.bf16.msra.mxu0 0
      %996 = vmatpush.bf16.msra.mxu0 0
      %997 = vmatpush.bf16.msra.mxu0 0
      %998 = vmatpush.bf16.msra.mxu0 0
      %999 = vmatpush.bf16.msra.mxu0 %v990
      %1000 = vmatmul.bf16.gmra.mxu0 %v987
      %v1001 = vpop.f32.mrf.mxu0
      %v1002 = vadd.f32 0.0, %v1001
      %v1003 = vpop.f32.mrf.mxu0
      %1004 = vdwg.mxu0
      %v1006 = vsel %vm813, %v791, 0
      %v1009 = vsel %vm817, %v807, 0
      %1011 = vmatpush.bf16.msra.mxu0 0
      %1012 = vmatpush.bf16.msra.mxu0 0
      %1013 = vmatpush.bf16.msra.mxu0 0
      %1014 = vmatpush.bf16.msra.mxu0 0
      %1015 = vmatpush.bf16.msra.mxu0 0
      %1016 = vmatpush.bf16.msra.mxu0 0
      %1017 = vmatpush.bf16.msra.mxu0 0
      %1018 = vmatpush.bf16.msra.mxu0 %v1009
      %1019 = vmatmul.bf16.gmra.mxu0 %v1006
      %v1020 = vpop.f32.mrf.mxu0
      %v1021 = vadd.f32 0.0, %v1020
      %v1022 = vpop.f32.mrf.mxu0
      %1023 = vdwg.mxu0
      %v1025 = vsel %vm813, %v792, 0
      %v1028 = vsel %vm817, %v808, 0
      %1030 = vmatpush.bf16.msra.mxu0 0
      %1031 = vmatpush.bf16.msra.mxu0 0
      %1032 = vmatpush.bf16.msra.mxu0 0
      %1033 = vmatpush.bf16.msra.mxu0 0
      %1034 = vmatpush.bf16.msra.mxu0 0
      %1035 = vmatpush.bf16.msra.mxu0 0
      %1036 = vmatpush.bf16.msra.mxu0 0
      %1037 = vmatpush.bf16.msra.mxu0 %v1028
      %1038 = vmatmul.bf16.gmra.mxu0 %v1025
      %v1039 = vpop.f32.mrf.mxu0
      %v1040 = vadd.f32 0.0, %v1039
      %v1041 = vpop.f32.mrf.mxu0
      %1042 = vdwg.mxu0
      %v1044 = vsel %vm813, %v793, 0
      %v1047 = vsel %vm817, %v809, 0
      %1049 = vmatpush.bf16.msra.mxu0 0
      %1050 = vmatpush.bf16.msra.mxu0 0
      %1051 = vmatpush.bf16.msra.mxu0 0
      %1052 = vmatpush.bf16.msra.mxu0 0
      %1053 = vmatpush.bf16.msra.mxu0 0
      %1054 = vmatpush.bf16.msra.mxu0 0
      %1055 = vmatpush.bf16.msra.mxu0 0
      %1056 = vmatpush.bf16.msra.mxu0 %v1047
      %1057 = vmatmul.bf16.gmra.mxu0 %v1044
      %v1058 = vpop.f32.mrf.mxu0
      %v1059 = vadd.f32 0.0, %v1058
      %v1060 = vpop.f32.mrf.mxu0
      %1061 = vdwg.mxu0
      %v1063 = vsel %vm813, %v794, 0
      %v1066 = vsel %vm817, %v810, 0
      %1068 = vmatpush.bf16.msra.mxu0 0
      %1069 = vmatpush.bf16.msra.mxu0 0
      %1070 = vmatpush.bf16.msra.mxu0 0
      %1071 = vmatpush.bf16.msra.mxu0 0
      %1072 = vmatpush.bf16.msra.mxu0 0
      %1073 = vmatpush.bf16.msra.mxu0 0
      %1074 = vmatpush.bf16.msra.mxu0 0
      %1075 = vmatpush.bf16.msra.mxu0 %v1066
      %1076 = vmatmul.bf16.gmra.mxu0 %v1063
      %v1077 = vpop.f32.mrf.mxu0
      %v1078 = vadd.f32 0.0, %v1077
      %v1079 = vpop.f32.mrf.mxu0
      %1080 = vdwg.mxu0
      %v1082 = vsel %vm813, %v795, 0
      %v1085 = vsel %vm817, %v811, 0
      %1087 = vmatpush.bf16.msra.mxu0 0
      %1088 = vmatpush.bf16.msra.mxu0 0
      %1089 = vmatpush.bf16.msra.mxu0 0
      %1090 = vmatpush.bf16.msra.mxu0 0
      %1091 = vmatpush.bf16.msra.mxu0 0
      %1092 = vmatpush.bf16.msra.mxu0 0
      %1093 = vmatpush.bf16.msra.mxu0 0
      %1094 = vmatpush.bf16.msra.mxu0 %v1085
      %1095 = vmatmul.bf16.gmra.mxu0 %v1082
      %v1096 = vpop.f32.mrf.mxu0
      %v1097 = vadd.f32 0.0, %v1096
      %v1098 = vpop.f32.mrf.mxu0
      %1099 = vdwg.mxu0
      %v1101 = vsel %vm813, %v796, 0
      %v1104 = vsel %vm817, %v812, 0
      %1106 = vmatpush.bf16.msra.mxu0 0
      %1107 = vmatpush.bf16.msra.mxu0 0
      %1108 = vmatpush.bf16.msra.mxu0 0
      %1109 = vmatpush.bf16.msra.mxu0 0
      %1110 = vmatpush.bf16.msra.mxu0 0
      %1111 = vmatpush.bf16.msra.mxu0 0
      %1112 = vmatpush.bf16.msra.mxu0 0
      %1113 = vmatpush.bf16.msra.mxu0 %v1104
      %1114 = vmatmul.bf16.gmra.mxu0 %v1101
      %v1115 = vpop.f32.mrf.mxu0
      %v1116 = vadd.f32 0.0, %v1115
      %v1117 = vpop.f32.mrf.mxu0
      %1118 = vdwg.mxu0
      %vm1119 = vcmask 254976
      %1120 = vst.msk [vmem:[%s216] sm:$0x3] %vm1119, %v831
      %1121 = vst.msk [vmem:[%s216 + $0x2] sm:$0x3] %vm1119, %v850
      %1122 = vst.msk [vmem:[%s216 + $0x4] sm:$0x3] %vm1119, %v869
      %1123 = vst.msk [vmem:[%s216 + $0x6] sm:$0x3] %vm1119, %v888
      %1124 = vst.msk [vmem:[%s216 + $0x8] sm:$0x3] %vm1119, %v907
      %1125 = vst.msk [vmem:[%s216 + $0xa] sm:$0x3] %vm1119, %v926
      %1126 = vst.msk [vmem:[%s216 + $0xc] sm:$0x3] %vm1119, %v945
      %1127 = vst.msk [vmem:[%s216 + $0xe] sm:$0x3] %vm1119, %v964
      %1128 = vst.msk [vmem:[%s216 + $0x10] sm:$0x3] %vm1119, %v983
      %1129 = vst.msk [vmem:[%s216 + $0x12] sm:$0x3] %vm1119, %v1002
      %1130 = vst.msk [vmem:[%s216 + $0x14] sm:$0x3] %vm1119, %v1021
      %1131 = vst.msk [vmem:[%s216 + $0x16] sm:$0x3] %vm1119, %v1040
      %1132 = vst.msk [vmem:[%s216 + $0x18] sm:$0x3] %vm1119, %v1059
      %1133 = vst.msk [vmem:[%s216 + $0x1a] sm:$0x3] %vm1119, %v1078
      %1134 = vst.msk [vmem:[%s216 + $0x1c] sm:$0x3] %vm1119, %v1097
      %1135 = vst.msk [vmem:[%s216 + $0x1e] sm:$0x3] %vm1119, %v1116
      %s1136 = smul.u32 16, %s14
      %p1137 = scmp.lt.s32.totalorder %s1136, 63
      %s1138 = scalar_select %p1137, %s1136, 63
      %s1139 = smul.addr %s1138, 2
      %s1140 = scalar_lea.vmem %s3, %s1139
      // Predicated region
      $region33: #{transformer_decoder_model.20} parent=31 // pred_check
        %p1141 = pneg %p110
      $region34: #{transformer_decoder_model.20} parent=31 // pred_check_branch
        %1143 = sbr.rel (%p1141) target = $region36
      $region35: #{transformer_decoder_model.20} parent=31 // pred_region
        %s1144 = smul.u32 16, %s14
      $region36: #{transformer_decoder_model.20} parent=31 // pred_fallthru
        _
    $region32: #{transformer_decoder_model.20} parent=5 // pred_fallthru
      _
    %p1145 = scmp.le.s32.totalorder 2, %s9
    // Predicated region
    $region37: #{transformer_decoder_model.20} parent=5 // pred_check
      %p1146 = pneg %p1145
    $region38: #{transformer_decoder_model.20} parent=5 // pred_check_branch
      %1148 = sbr.rel (%p1146) target = $region40
    $region39: #{transformer_decoder_model.20} parent=5 // pred_region
      %s1149 = ssub.s32 %s9, 2
      // Predicated region
      $region41: #{transformer_decoder_model.20} parent=39 // pred_check
        %p1150 = pneg %p116
      $region42: #{transformer_decoder_model.20} parent=39 // pred_check_branch
        %1152 = sbr.rel (%p1150) target = $region44
      $region43: #{transformer_decoder_model.20} parent=39 // pred_region
        %s1153 = smul.u32 16, %s15
        %p1154 = scmp.lt.s32.totalorder %s1153, 63
        %s1155 = scalar_select %p1154, %s1153, 63
        %s1156 = smul.addr %s1155, 2
        %s1157 = scalar_lea.vmem %s3, %s1156
      $region44: #{transformer_decoder_model.20} parent=39 // pred_fallthru
        _
    $region40: #{transformer_decoder_model.20} parent=5 // pred_fallthru
      _
  $region6: #{transformer_decoder_model.20} parent=0 // loop_footer
    %s13 = sadd.s32 1, %s9
  $region7: #{transformer_decoder_model.20} parent=0 // loop_footer_branch
    %8 = sbr.rel target = $region3
  $region8: #{transformer_decoder_model.20} parent=0 // loop_exit
    _

// kernel: transformer_decoder_model.23
$region0: #{transformer_decoder_model.23}
  #allocation0 [shape = 'u32[]', space=smem, size = 0x4, offset = 0x4, fixed_abs, tag = 'smem constant byte address 0x4 - core index']
  #allocation1 [shape = 'u32[72,128]{1,0:T(1,128)}', space=vmem, size = 0x9000, scoped, tag = 'internal scratch']
  #allocation2 [shape = 'f32[32,256]{1,0:T(8,128)}', space=vmem, size = 0x8000, scoped, tag = 'scratch operand']
  %s0 = inlined_call_operand.vmem [shape: f32[32,128], index: 0, kind: input, shape index: {}]
  %s1 = inlined_call_operand.vmem [shape: f32[128,256], index: 1, kind: input, shape index: {}]
  %s2 = inlined_call_operand.vmem [shape: f32[1,256], index: 2, kind: input, shape index: {}]
  %s3 = inlined_call_operand.vmem [shape: f32[32,256], index: 3, kind: output, shape index: {}]
  %s4 = sld [smem:[#allocation0]]
  $region30: #{transformer_decoder_model.23} parent=0
    _
  %s6 = ssub.s32 1, %s4
  %s7 = scalar_select 0, %s6, %s4
  // Predicated region
  $region2: #{transformer_decoder_model.23} parent=0 // pred_check
    _
  $region3: #{transformer_decoder_model.23} parent=0 // pred_check_branch
    %9 = sbr.rel (0) target = $region5
  $region4: #{transformer_decoder_model.23} parent=0 // pred_region
    _
  $region5: #{transformer_decoder_model.23} parent=0 // pred_fallthru
    _
  // Predicated region
  $region6: #{transformer_decoder_model.23} parent=0 // pred_check
    _
  $region7: #{transformer_decoder_model.23} parent=0 // pred_check_branch
    %11 = sbr.rel (0) target = $region9
  $region8: #{transformer_decoder_model.23} parent=0 // pred_region
    _
  $region9: #{transformer_decoder_model.23} parent=0 // pred_fallthru
    _
  // Predicated region
  $region10: #{transformer_decoder_model.23} parent=0 // pred_check
    _
  $region11: #{transformer_decoder_model.23} parent=0 // pred_check_branch
    %13 = sbr.rel (0) target = $region13
  $region12: #{transformer_decoder_model.23} parent=0 // pred_region
    _
  $region13: #{transformer_decoder_model.23} parent=0 // pred_fallthru
    _
  %p14 = scmp.eq.s32.totalorder 0, 0
  // Predicated region
  $region14: #{transformer_decoder_model.23} parent=0 // pred_check
    %p15 = pneg %p14
  $region15: #{transformer_decoder_model.23} parent=0 // pred_check_branch
    %17 = sbr.rel (%p15) target = $region17
  $region16: #{transformer_decoder_model.23} parent=0 // pred_region
    %18 = vst [vmem:[#allocation2] sm:$0xff] 0.0
    %19 = vst [vmem:[#allocation2 + $0x8] sm:$0xff] 0.0
    %20 = vst [vmem:[#allocation2 + $0x10] sm:$0xff] 0.0
    %21 = vst [vmem:[#allocation2 + $0x18] sm:$0xff] 0.0
    %22 = vst [vmem:[#allocation2 + $0x20] sm:$0xff] 0.0
    %23 = vst [vmem:[#allocation2 + $0x28] sm:$0xff] 0.0
    %24 = vst [vmem:[#allocation2 + $0x30] sm:$0xff] 0.0
    %25 = vst [vmem:[#allocation2 + $0x38] sm:$0xff] 0.0
  $region17: #{transformer_decoder_model.23} parent=0 // pred_fallthru
    _
  %v26 = vld [vmem:[#allocation2] sm:$0xff]
  %v27 = vld [vmem:[#allocation2 + $0x8] sm:$0xff]
  %v28 = vld [vmem:[#allocation2 + $0x10] sm:$0xff]
  %v29 = vld [vmem:[#allocation2 + $0x18] sm:$0xff]
  %v30 = vld [vmem:[#allocation2 + $0x20] sm:$0xff]
  %v31 = vld [vmem:[#allocation2 + $0x28] sm:$0xff]
  %v32 = vld [vmem:[#allocation2 + $0x30] sm:$0xff]
  %v33 = vld [vmem:[#allocation2 + $0x38] sm:$0xff]
  %v34 = vld [vmem:[%s0] sm:$0xff]
  %v35 = vld [vmem:[%s0 + $0x8] sm:$0xff]
  %v36 = vld [vmem:[%s0 + $0x10] sm:$0xff]
  %v37 = vld [vmem:[%s0 + $0x18] sm:$0xff]
  %v38 = vpack.c.bf16 %v35, %v34
  %v39 = vpack.c.bf16 %v37, %v36
  %v40 = vld [vmem:[%s1] sm:$0xff]
  %v41 = vld [vmem:[%s1 + $0x8] sm:$0xff]
  %v42 = vld [vmem:[%s1 + $0x10] sm:$0xff]
  %v43 = vld [vmem:[%s1 + $0x18] sm:$0xff]
  %v44 = vld [vmem:[%s1 + $0x20] sm:$0xff]
  %v45 = vld [vmem:[%s1 + $0x28] sm:$0xff]
  %v46 = vld [vmem:[%s1 + $0x30] sm:$0xff]
  %v47 = vld [vmem:[%s1 + $0x38] sm:$0xff]
  %v48 = vld [vmem:[%s1 + $0x40] sm:$0xff]
  %v49 = vld [vmem:[%s1 + $0x48] sm:$0xff]
  %v50 = vld [vmem:[%s1 + $0x50] sm:$0xff]
  %v51 = vld [vmem:[%s1 + $0x58] sm:$0xff]
  %v52 = vld [vmem:[%s1 + $0x60] sm:$0xff]
  %v53 = vld [vmem:[%s1 + $0x68] sm:$0xff]
  %v54 = vld [vmem:[%s1 + $0x70] sm:$0xff]
  %v55 = vld [vmem:[%s1 + $0x78] sm:$0xff]
  %v56 = vld [vmem:[%s1 + $0x80] sm:$0xff]
  %v57 = vld [vmem:[%s1 + $0x88] sm:$0xff]
  %v58 = vld [vmem:[%s1 + $0x90] sm:$0xff]
  %v59 = vld [vmem:[%s1 + $0x98] sm:$0xff]
  %v60 = vld [vmem:[%s1 + $0xa0] sm:$0xff]
  %v61 = vld [vmem:[%s1 + $0xa8] sm:$0xff]
  %v62 = vld [vmem:[%s1 + $0xb0] sm:$0xff]
  %v63 = vld [vmem:[%s1 + $0xb8] sm:$0xff]
  %v64 = vld [vmem:[%s1 + $0xc0] sm:$0xff]
  %v65 = vld [vmem:[%s1 + $0xc8] sm:$0xff]
  %v66 = vld [vmem:[%s1 + $0xd0] sm:$0xff]
  %v67 = vld [vmem:[%s1 + $0xd8] sm:$0xff]
  %v68 = vld [vmem:[%s1 + $0xe0] sm:$0xff]
  %v69 = vld [vmem:[%s1 + $0xe8] sm:$0xff]
  %v70 = vld [vmem:[%s1 + $0xf0] sm:$0xff]
  %v71 = vld [vmem:[%s1 + $0xf8] sm:$0xff]
  %v72 = vpack.c.bf16 %v42, %v40
  %v73 = vpack.c.bf16 %v43, %v41
  %v74 = vpack.c.bf16 %v46, %v44
  %v75 = vpack.c.bf16 %v47, %v45
  %v76 = vpack.c.bf16 %v50, %v48
  %v77 = vpack.c.bf16 %v51, %v49
  %v78 = vpack.c.bf16 %v54, %v52
  %v79 = vpack.c.bf16 %v55, %v53
  %v80 = vpack.c.bf16 %v58, %v56
  %v81 = vpack.c.bf16 %v59, %v57
  %v82 = vpack.c.bf16 %v62, %v60
  %v83 = vpack.c.bf16 %v63, %v61
  %v84 = vpack.c.bf16 %v66, %v64
  %v85 = vpack.c.bf16 %v67, %v65
  %v86 = vpack.c.bf16 %v70, %v68
  %v87 = vpack.c.bf16 %v71, %v69
  %88 = vmatpush.bf16.msra.mxu0 %v86
  %89 = vmatpush.bf16.msra.mxu0 %v84
  %90 = vmatpush.bf16.msra.mxu0 %v82
  %91 = vmatpush.bf16.msra.mxu0 %v80
  %92 = vmatpush.bf16.msra.mxu0 %v78
  %93 = vmatpush.bf16.msra.mxu0 %v76
  %94 = vmatpush.bf16.msra.mxu0 %v74
  %95 = vmatpush.bf16.msra.mxu0 %v72
  %96 = vmatmul.bf16.gmra.mxu0 %v38
  %v97 = vpop.f32.mrf.mxu0
  %v98 = vadd.f32 0.0, %v97
  %v99 = vpop.f32.mrf.mxu0
  %v100 = vadd.f32 0.0, %v99
  %101 = vmatmul.bf16.gmra.mxu0 %v39
  %v102 = vpop.f32.mrf.mxu0
  %v103 = vadd.f32 0.0, %v102
  %v104 = vpop.f32.mrf.mxu0
  %v105 = vadd.f32 0.0, %v104
  %106 = vdwg.mxu0
  %107 = vmatpush.bf16.msra.mxu0 %v87
  %108 = vmatpush.bf16.msra.mxu0 %v85
  %109 = vmatpush.bf16.msra.mxu0 %v83
  %110 = vmatpush.bf16.msra.mxu0 %v81
  %111 = vmatpush.bf16.msra.mxu0 %v79
  %112 = vmatpush.bf16.msra.mxu0 %v77
  %113 = vmatpush.bf16.msra.mxu0 %v75
  %114 = vmatpush.bf16.msra.mxu0 %v73
  %115 = vmatmul.bf16.gmra.mxu0 %v38
  %v116 = vpop.f32.mrf.mxu0
  %v117 = vadd.f32 0.0, %v116
  %v118 = vpop.f32.mrf.mxu0
  %v119 = vadd.f32 0.0, %v118
  %120 = vmatmul.bf16.gmra.mxu0 %v39
  %v121 = vpop.f32.mrf.mxu0
  %v122 = vadd.f32 0.0, %v121
  %v123 = vpop.f32.mrf.mxu0
  %v124 = vadd.f32 0.0, %v123
  %125 = vdwg.mxu0
  %v126 = vadd.f32 %v26, %v98
  %v127 = vadd.f32 %v27, %v117
  %v128 = vadd.f32 %v28, %v100
  %v129 = vadd.f32 %v29, %v119
  %v130 = vadd.f32 %v30, %v103
  %v131 = vadd.f32 %v31, %v122
  %v132 = vadd.f32 %v32, %v105
  %v133 = vadd.f32 %v33, %v124
  %134 = vst [vmem:[#allocation2] sm:$0xff] %v126
  %135 = vst [vmem:[#allocation2 + $0x8] sm:$0xff] %v127
  %136 = vst [vmem:[#allocation2 + $0x10] sm:$0xff] %v128
  %137 = vst [vmem:[#allocation2 + $0x18] sm:$0xff] %v129
  %138 = vst [vmem:[#allocation2 + $0x20] sm:$0xff] %v130
  %139 = vst [vmem:[#allocation2 + $0x28] sm:$0xff] %v131
  %140 = vst [vmem:[#allocation2 + $0x30] sm:$0xff] %v132
  %141 = vst [vmem:[#allocation2 + $0x38] sm:$0xff] %v133
  // Predicated region
  $region18: #{transformer_decoder_model.23} parent=0 // pred_check
    %p142 = pneg %p14
  $region19: #{transformer_decoder_model.23} parent=0 // pred_check_branch
    %144 = sbr.rel (%p142) target = $region21
  $region20: #{transformer_decoder_model.23} parent=0 // pred_region
    %v145 = vld [vmem:[#allocation2] sm:$0xff]
    %v146 = vld [vmem:[#allocation2 + $0x8] sm:$0xff]
    %v147 = vld [vmem:[#allocation2 + $0x10] sm:$0xff]
    %v148 = vld [vmem:[#allocation2 + $0x18] sm:$0xff]
    %v149 = vld [vmem:[#allocation2 + $0x20] sm:$0xff]
    %v150 = vld [vmem:[#allocation2 + $0x28] sm:$0xff]
    %v151 = vld [vmem:[#allocation2 + $0x30] sm:$0xff]
    %v152 = vld [vmem:[#allocation2 + $0x38] sm:$0xff]
    %v153 = vld [vmem:[%s2] sm:$0x3]
    %v155 = vperm.slane %v153, 0
    %v156 = vperm.slane %v153, 1
    %v159 = vadd.f32 %v145, %v155
    %v160 = vadd.f32 %v146, %v156
    %v161 = vadd.f32 %v147, %v155
    %v162 = vadd.f32 %v148, %v156
    %v163 = vadd.f32 %v149, %v155
    %v164 = vadd.f32 %v150, %v156
    %v165 = vadd.f32 %v151, %v155
    %v166 = vadd.f32 %v152, %v156
    %167 = vst [vmem:[%s3] sm:$0xff] %v159
    %168 = vst [vmem:[%s3 + $0x8] sm:$0xff] %v160
    %169 = vst [vmem:[%s3 + $0x10] sm:$0xff] %v161
    %170 = vst [vmem:[%s3 + $0x18] sm:$0xff] %v162
    %171 = vst [vmem:[%s3 + $0x20] sm:$0xff] %v163
    %172 = vst [vmem:[%s3 + $0x28] sm:$0xff] %v164
    %173 = vst [vmem:[%s3 + $0x30] sm:$0xff] %v165
    %174 = vst [vmem:[%s3 + $0x38] sm:$0xff] %v166
  $region21: #{transformer_decoder_model.23} parent=0 // pred_fallthru
    _
  // Predicated region
  $region22: #{transformer_decoder_model.23} parent=0 // pred_check
    _
  $region23: #{transformer_decoder_model.23} parent=0 // pred_check_branch
    %176 = sbr.rel (0) target = $region25
  $region24: #{transformer_decoder_model.23} parent=0 // pred_region
    _
  $region25: #{transformer_decoder_model.23} parent=0 // pred_fallthru
    _
  // Predicated region
  $region26: #{transformer_decoder_model.23} parent=0 // pred_check
    _
  $region27: #{transformer_decoder_model.23} parent=0 // pred_check_branch
    %178 = sbr.rel (0) target = $region29
  $region28: #{transformer_decoder_model.23} parent=0 // pred_region
    _
  $region29: #{transformer_decoder_model.23} parent=0 // pred_fallthru
    _

// kernel: transformer_decoder_model.22
$region0: #{transformer_decoder_model.22}
  #allocation0 [shape = 'u32[]', space=smem, size = 0x4, offset = 0x4, fixed_abs, tag = 'smem constant byte address 0x4 - core index']
  #allocation1 [shape = 'u32[72,128]{1,0:T(1,128)}', space=vmem, size = 0x9000, scoped, tag = 'internal scratch']
  #allocation2 [shape = 'f32[32,128]{1,0:T(8,128)}', space=vmem, size = 0x4000, scoped, tag = 'scratch operand']
  %s0 = inlined_call_operand.vmem [shape: f32[32,128], index: 0, kind: input, shape index: {}]
  %s1 = inlined_call_operand.vmem [shape: f32[128,128], index: 1, kind: input, shape index: {}]
  %s2 = inlined_call_operand.vmem [shape: f32[1,128], index: 2, kind: input, shape index: {}]
  %s3 = inlined_call_operand.vmem [shape: f32[32,128], index: 3, kind: output, shape index: {}]
  %s4 = sld [smem:[#allocation0]]
  $region30: #{transformer_decoder_model.22} parent=0
    _
  %s6 = ssub.s32 1, %s4
  %s7 = scalar_select 0, %s6, %s4
  // Predicated region
  $region2: #{transformer_decoder_model.22} parent=0 // pred_check
    _
  $region3: #{transformer_decoder_model.22} parent=0 // pred_check_branch
    %9 = sbr.rel (0) target = $region5
  $region4: #{transformer_decoder_model.22} parent=0 // pred_region
    _
  $region5: #{transformer_decoder_model.22} parent=0 // pred_fallthru
    _
  // Predicated region
  $region6: #{transformer_decoder_model.22} parent=0 // pred_check
    _
  $region7: #{transformer_decoder_model.22} parent=0 // pred_check_branch
    %11 = sbr.rel (0) target = $region9
  $region8: #{transformer_decoder_model.22} parent=0 // pred_region
    _
  $region9: #{transformer_decoder_model.22} parent=0 // pred_fallthru
    _
  // Predicated region
  $region10: #{transformer_decoder_model.22} parent=0 // pred_check
    _
  $region11: #{transformer_decoder_model.22} parent=0 // pred_check_branch
    %13 = sbr.rel (0) target = $region13
  $region12: #{transformer_decoder_model.22} parent=0 // pred_region
    _
  $region13: #{transformer_decoder_model.22} parent=0 // pred_fallthru
    _
  %p14 = scmp.eq.s32.totalorder 0, 0
  // Predicated region
  $region14: #{transformer_decoder_model.22} parent=0 // pred_check
    %p15 = pneg %p14
  $region15: #{transformer_decoder_model.22} parent=0 // pred_check_branch
    %17 = sbr.rel (%p15) target = $region17
  $region16: #{transformer_decoder_model.22} parent=0 // pred_region
    %18 = vst [vmem:[#allocation2] sm:$0xff] 0.0
    %19 = vst [vmem:[#allocation2 + $0x8] sm:$0xff] 0.0
    %20 = vst [vmem:[#allocation2 + $0x10] sm:$0xff] 0.0
    %21 = vst [vmem:[#allocation2 + $0x18] sm:$0xff] 0.0
  $region17: #{transformer_decoder_model.22} parent=0 // pred_fallthru
    _
  %v22 = vld [vmem:[#allocation2] sm:$0xff]
  %v23 = vld [vmem:[#allocation2 + $0x8] sm:$0xff]
  %v24 = vld [vmem:[#allocation2 + $0x10] sm:$0xff]
  %v25 = vld [vmem:[#allocation2 + $0x18] sm:$0xff]
  %v26 = vld [vmem:[%s0] sm:$0xff]
  %v27 = vld [vmem:[%s0 + $0x8] sm:$0xff]
  %v28 = vld [vmem:[%s0 + $0x10] sm:$0xff]
  %v29 = vld [vmem:[%s0 + $0x18] sm:$0xff]
  %v30 = vpack.c.bf16 %v27, %v26
  %v31 = vpack.c.bf16 %v29, %v28
  %v32 = vld [vmem:[%s1] sm:$0xff]
  %v33 = vld [vmem:[%s1 + $0x8] sm:$0xff]
  %v34 = vld [vmem:[%s1 + $0x10] sm:$0xff]
  %v35 = vld [vmem:[%s1 + $0x18] sm:$0xff]
  %v36 = vld [vmem:[%s1 + $0x20] sm:$0xff]
  %v37 = vld [vmem:[%s1 + $0x28] sm:$0xff]
  %v38 = vld [vmem:[%s1 + $0x30] sm:$0xff]
  %v39 = vld [vmem:[%s1 + $0x38] sm:$0xff]
  %v40 = vld [vmem:[%s1 + $0x40] sm:$0xff]
  %v41 = vld [vmem:[%s1 + $0x48] sm:$0xff]
  %v42 = vld [vmem:[%s1 + $0x50] sm:$0xff]
  %v43 = vld [vmem:[%s1 + $0x58] sm:$0xff]
  %v44 = vld [vmem:[%s1 + $0x60] sm:$0xff]
  %v45 = vld [vmem:[%s1 + $0x68] sm:$0xff]
  %v46 = vld [vmem:[%s1 + $0x70] sm:$0xff]
  %v47 = vld [vmem:[%s1 + $0x78] sm:$0xff]
  %v48 = vpack.c.bf16 %v33, %v32
  %v49 = vpack.c.bf16 %v35, %v34
  %v50 = vpack.c.bf16 %v37, %v36
  %v51 = vpack.c.bf16 %v39, %v38
  %v52 = vpack.c.bf16 %v41, %v40
  %v53 = vpack.c.bf16 %v43, %v42
  %v54 = vpack.c.bf16 %v45, %v44
  %v55 = vpack.c.bf16 %v47, %v46
  %56 = vmatpush.bf16.msra.mxu0 %v55
  %57 = vmatpush.bf16.msra.mxu0 %v54
  %58 = vmatpush.bf16.msra.mxu0 %v53
  %59 = vmatpush.bf16.msra.mxu0 %v52
  %60 = vmatpush.bf16.msra.mxu0 %v51
  %61 = vmatpush.bf16.msra.mxu0 %v50
  %62 = vmatpush.bf16.msra.mxu0 %v49
  %63 = vmatpush.bf16.msra.mxu0 %v48
  %64 = vmatmul.bf16.gmra.mxu0 %v30
  %v65 = vpop.f32.mrf.mxu0
  %v66 = vadd.f32 0.0, %v65
  %v67 = vpop.f32.mrf.mxu0
  %v68 = vadd.f32 0.0, %v67
  %69 = vmatmul.bf16.gmra.mxu0 %v31
  %v70 = vpop.f32.mrf.mxu0
  %v71 = vadd.f32 0.0, %v70
  %v72 = vpop.f32.mrf.mxu0
  %v73 = vadd.f32 0.0, %v72
  %74 = vdwg.mxu0
  %v75 = vadd.f32 %v22, %v66
  %v76 = vadd.f32 %v23, %v68
  %v77 = vadd.f32 %v24, %v71
  %v78 = vadd.f32 %v25, %v73
  %79 = vst [vmem:[#allocation2] sm:$0xff] %v75
  %80 = vst [vmem:[#allocation2 + $0x8] sm:$0xff] %v76
  %81 = vst [vmem:[#allocation2 + $0x10] sm:$0xff] %v77
  %82 = vst [vmem:[#allocation2 + $0x18] sm:$0xff] %v78
  // Predicated region
  $region18: #{transformer_decoder_model.22} parent=0 // pred_check
    %p83 = pneg %p14
  $region19: #{transformer_decoder_model.22} parent=0 // pred_check_branch
    %85 = sbr.rel (%p83) target = $region21
  $region20: #{transformer_decoder_model.22} parent=0 // pred_region
    %v86 = vld [vmem:[#allocation2] sm:$0xff]
    %v87 = vld [vmem:[#allocation2 + $0x8] sm:$0xff]
    %v88 = vld [vmem:[#allocation2 + $0x10] sm:$0xff]
    %v89 = vld [vmem:[#allocation2 + $0x18] sm:$0xff]
    %v90 = vld [vmem:[%s2] sm:$0x1]
    %v92 = vperm.slane %v90, 0
    %v94 = vadd.f32 %v86, %v92
    %v95 = vadd.f32 %v87, %v92
    %v96 = vadd.f32 %v88, %v92
    %v97 = vadd.f32 %v89, %v92
    %98 = vst [vmem:[%s3] sm:$0xff] %v94
    %99 = vst [vmem:[%s3 + $0x8] sm:$0xff] %v95
    %100 = vst [vmem:[%s3 + $0x10] sm:$0xff] %v96
    %101 = vst [vmem:[%s3 + $0x18] sm:$0xff] %v97
  $region21: #{transformer_decoder_model.22} parent=0 // pred_fallthru
    _
  // Predicated region
  $region22: #{transformer_decoder_model.22} parent=0 // pred_check
    _
  $region23: #{transformer_decoder_model.22} parent=0 // pred_check_branch
    %103 = sbr.rel (0) target = $region25
  $region24: #{transformer_decoder_model.22} parent=0 // pred_region
    _
  $region25: #{transformer_decoder_model.22} parent=0 // pred_fallthru
    _
  // Predicated region
  $region26: #{transformer_decoder_model.22} parent=0 // pred_check
    _
  $region27: #{transformer_decoder_model.22} parent=0 // pred_check_branch
    %105 = sbr.rel (0) target = $region29
  $region28: #{transformer_decoder_model.22} parent=0 // pred_region
    _
  $region29: #{transformer_decoder_model.22} parent=0 // pred_fallthru
    _

// kernel: transformer_decoder_model.26
$region0: #{transformer_decoder_model.26}
  #allocation0 [shape = 'u32[]', space=smem, size = 0x4, offset = 0x4, fixed_abs, tag = 'smem constant byte address 0x4 - core index']
  #allocation1 [shape = 'u32[72,128]{1,0:T(1,128)}', space=vmem, size = 0x9000, scoped, tag = 'internal scratch']
  %s0 = inlined_call_operand.vmem [shape: f32[32,128], index: 0, kind: input, shape index: {}]
  %s1 = inlined_call_operand.vmem [shape: f32[128,256], index: 1, kind: input, shape index: {}]
  %s2 = inlined_call_operand.vmem [shape: f32[1,256], index: 2, kind: input, shape index: {}]
  %s3 = inlined_call_operand.vmem [shape: f32[256,128], index: 3, kind: input, shape index: {}]
  %s4 = inlined_call_operand.vmem [shape: f32[1,128], index: 4, kind: input, shape index: {}]
  %s5 = inlined_call_operand.vmem [shape: f32[1,128], index: 5, kind: input, shape index: {}]
  %s6 = inlined_call_operand.vmem [shape: f32[1,128], index: 6, kind: input, shape index: {}]
  %s7 = inlined_call_operand.vmem [shape: f32[32,128], index: 7, kind: output, shape index: {}]
  %s8 = sld [smem:[#allocation0]]
  $region38: #{transformer_decoder_model.26} parent=0
    _
  %s10 = ssub.s32 1, %s8
  %s11 = scalar_select 0, %s10, %s8
  // Predicated region
  $region2: #{transformer_decoder_model.26} parent=0 // pred_check
    _
  $region3: #{transformer_decoder_model.26} parent=0 // pred_check_branch
    %13 = sbr.rel (0) target = $region5
  $region4: #{transformer_decoder_model.26} parent=0 // pred_region
    _
  $region5: #{transformer_decoder_model.26} parent=0 // pred_fallthru
    _
  // Predicated region
  $region6: #{transformer_decoder_model.26} parent=0 // pred_check
    _
  $region7: #{transformer_decoder_model.26} parent=0 // pred_check_branch
    %15 = sbr.rel (0) target = $region9
  $region8: #{transformer_decoder_model.26} parent=0 // pred_region
    _
  $region9: #{transformer_decoder_model.26} parent=0 // pred_fallthru
    _
  // Predicated region
  $region10: #{transformer_decoder_model.26} parent=0 // pred_check
    _
  $region11: #{transformer_decoder_model.26} parent=0 // pred_check_branch
    %17 = sbr.rel (0) target = $region13
  $region12: #{transformer_decoder_model.26} parent=0 // pred_region
    _
  $region13: #{transformer_decoder_model.26} parent=0 // pred_fallthru
    _
  // Predicated region
  $region14: #{transformer_decoder_model.26} parent=0 // pred_check
    _
  $region15: #{transformer_decoder_model.26} parent=0 // pred_check_branch
    %19 = sbr.rel (0) target = $region17
  $region16: #{transformer_decoder_model.26} parent=0 // pred_region
    _
  $region17: #{transformer_decoder_model.26} parent=0 // pred_fallthru
    _
  // Predicated region
  $region18: #{transformer_decoder_model.26} parent=0 // pred_check
    _
  $region19: #{transformer_decoder_model.26} parent=0 // pred_check_branch
    %21 = sbr.rel (0) target = $region21
  $region20: #{transformer_decoder_model.26} parent=0 // pred_region
    _
  $region21: #{transformer_decoder_model.26} parent=0 // pred_fallthru
    _
  // Predicated region
  $region22: #{transformer_decoder_model.26} parent=0 // pred_check
    _
  $region23: #{transformer_decoder_model.26} parent=0 // pred_check_branch
    %23 = sbr.rel (0) target = $region25
  $region24: #{transformer_decoder_model.26} parent=0 // pred_region
    _
  $region25: #{transformer_decoder_model.26} parent=0 // pred_fallthru
    _
  // Predicated region
  $region26: #{transformer_decoder_model.26} parent=0 // pred_check
    _
  $region27: #{transformer_decoder_model.26} parent=0 // pred_check_branch
    %25 = sbr.rel (0) target = $region29
  $region28: #{transformer_decoder_model.26} parent=0 // pred_region
    _
  $region29: #{transformer_decoder_model.26} parent=0 // pred_fallthru
    _
  %v26 = vld [vmem:[%s0] sm:$0xff]
  %v27 = vld [vmem:[%s0 + $0x8] sm:$0xff]
  %v28 = vld [vmem:[%s0 + $0x10] sm:$0xff]
  %v29 = vld [vmem:[%s0 + $0x18] sm:$0xff]
  %v30 = vpack.c.bf16 %v27, %v26
  %v31 = vpack.c.bf16 %v29, %v28
  %v32 = vld [vmem:[%s1] sm:$0xff]
  %v33 = vld [vmem:[%s1 + $0x8] sm:$0xff]
  %v34 = vld [vmem:[%s1 + $0x10] sm:$0xff]
  %v35 = vld [vmem:[%s1 + $0x18] sm:$0xff]
  %v36 = vld [vmem:[%s1 + $0x20] sm:$0xff]
  %v37 = vld [vmem:[%s1 + $0x28] sm:$0xff]
  %v38 = vld [vmem:[%s1 + $0x30] sm:$0xff]
  %v39 = vld [vmem:[%s1 + $0x38] sm:$0xff]
  %v40 = vld [vmem:[%s1 + $0x40] sm:$0xff]
  %v41 = vld [vmem:[%s1 + $0x48] sm:$0xff]
  %v42 = vld [vmem:[%s1 + $0x50] sm:$0xff]
  %v43 = vld [vmem:[%s1 + $0x58] sm:$0xff]
  %v44 = vld [vmem:[%s1 + $0x60] sm:$0xff]
  %v45 = vld [vmem:[%s1 + $0x68] sm:$0xff]
  %v46 = vld [vmem:[%s1 + $0x70] sm:$0xff]
  %v47 = vld [vmem:[%s1 + $0x78] sm:$0xff]
  %v48 = vld [vmem:[%s1 + $0x80] sm:$0xff]
  %v49 = vld [vmem:[%s1 + $0x88] sm:$0xff]
  %v50 = vld [vmem:[%s1 + $0x90] sm:$0xff]
  %v51 = vld [vmem:[%s1 + $0x98] sm:$0xff]
  %v52 = vld [vmem:[%s1 + $0xa0] sm:$0xff]
  %v53 = vld [vmem:[%s1 + $0xa8] sm:$0xff]
  %v54 = vld [vmem:[%s1 + $0xb0] sm:$0xff]
  %v55 = vld [vmem:[%s1 + $0xb8] sm:$0xff]
  %v56 = vld [vmem:[%s1 + $0xc0] sm:$0xff]
  %v57 = vld [vmem:[%s1 + $0xc8] sm:$0xff]
  %v58 = vld [vmem:[%s1 + $0xd0] sm:$0xff]
  %v59 = vld [vmem:[%s1 + $0xd8] sm:$0xff]
  %v60 = vld [vmem:[%s1 + $0xe0] sm:$0xff]
  %v61 = vld [vmem:[%s1 + $0xe8] sm:$0xff]
  %v62 = vld [vmem:[%s1 + $0xf0] sm:$0xff]
  %v63 = vld [vmem:[%s1 + $0xf8] sm:$0xff]
  %v64 = vpack.c.bf16 %v34, %v32
  %v65 = vpack.c.bf16 %v35, %v33
  %v66 = vpack.c.bf16 %v38, %v36
  %v67 = vpack.c.bf16 %v39, %v37
  %v68 = vpack.c.bf16 %v42, %v40
  %v69 = vpack.c.bf16 %v43, %v41
  %v70 = vpack.c.bf16 %v46, %v44
  %v71 = vpack.c.bf16 %v47, %v45
  %v72 = vpack.c.bf16 %v50, %v48
  %v73 = vpack.c.bf16 %v51, %v49
  %v74 = vpack.c.bf16 %v54, %v52
  %v75 = vpack.c.bf16 %v55, %v53
  %v76 = vpack.c.bf16 %v58, %v56
  %v77 = vpack.c.bf16 %v59, %v57
  %v78 = vpack.c.bf16 %v62, %v60
  %v79 = vpack.c.bf16 %v63, %v61
  %v80 = vld [vmem:[%s2] sm:$0x3]
  %v82 = vperm.slane %v80, 0
  %v83 = vperm.slane %v80, 1
  %86 = vmatpush.bf16.msra.mxu0 %v78
  %87 = vmatpush.bf16.msra.mxu0 %v76
  %88 = vmatpush.bf16.msra.mxu0 %v74
  %89 = vmatpush.bf16.msra.mxu0 %v72
  %90 = vmatpush.bf16.msra.mxu0 %v70
  %91 = vmatpush.bf16.msra.mxu0 %v68
  %92 = vmatpush.bf16.msra.mxu0 %v66
  %93 = vmatpush.bf16.msra.mxu0 %v64
  %94 = vmatmul.bf16.gmra.mxu0 %v30
  %v95 = vpop.f32.mrf.mxu0
  %v96 = vadd.f32 %v82, %v95
  %v97 = vpop.f32.mrf.mxu0
  %v98 = vadd.f32 %v82, %v97
  %99 = vmatmul.bf16.gmra.mxu0 %v31
  %v100 = vpop.f32.mrf.mxu0
  %v101 = vadd.f32 %v82, %v100
  %v102 = vpop.f32.mrf.mxu0
  %v103 = vadd.f32 %v82, %v102
  %104 = vdwg.mxu0
  %105 = vmatpush.bf16.msra.mxu0 %v79
  %106 = vmatpush.bf16.msra.mxu0 %v77
  %107 = vmatpush.bf16.msra.mxu0 %v75
  %108 = vmatpush.bf16.msra.mxu0 %v73
  %109 = vmatpush.bf16.msra.mxu0 %v71
  %110 = vmatpush.bf16.msra.mxu0 %v69
  %111 = vmatpush.bf16.msra.mxu0 %v67
  %112 = vmatpush.bf16.msra.mxu0 %v65
  %113 = vmatmul.bf16.gmra.mxu0 %v30
  %v114 = vpop.f32.mrf.mxu0
  %v115 = vadd.f32 %v83, %v114
  %v116 = vpop.f32.mrf.mxu0
  %v117 = vadd.f32 %v83, %v116
  %118 = vmatmul.bf16.gmra.mxu0 %v31
  %v119 = vpop.f32.mrf.mxu0
  %v120 = vadd.f32 %v83, %v119
  %v121 = vpop.f32.mrf.mxu0
  %v122 = vadd.f32 %v83, %v121
  %123 = vdwg.mxu0
  %v124 = vmax.f32 %v96, 0.0
  %v125 = vmax.f32 %v115, 0.0
  %v126 = vmax.f32 %v98, 0.0
  %v127 = vmax.f32 %v117, 0.0
  %v128 = vmax.f32 %v101, 0.0
  %v129 = vmax.f32 %v120, 0.0
  %v130 = vmax.f32 %v103, 0.0
  %v131 = vmax.f32 %v122, 0.0
  %v132 = vpack.c.bf16 %v126, %v124
  %v133 = vpack.c.bf16 %v127, %v125
  %v134 = vpack.c.bf16 %v130, %v128
  %v135 = vpack.c.bf16 %v131, %v129
  %v136 = vld [vmem:[%s3] sm:$0xff]
  %v137 = vld [vmem:[%s3 + $0x8] sm:$0xff]
  %v138 = vld [vmem:[%s3 + $0x10] sm:$0xff]
  %v139 = vld [vmem:[%s3 + $0x18] sm:$0xff]
  %v140 = vld [vmem:[%s3 + $0x20] sm:$0xff]
  %v141 = vld [vmem:[%s3 + $0x28] sm:$0xff]
  %v142 = vld [vmem:[%s3 + $0x30] sm:$0xff]
  %v143 = vld [vmem:[%s3 + $0x38] sm:$0xff]
  %v144 = vld [vmem:[%s3 + $0x40] sm:$0xff]
  %v145 = vld [vmem:[%s3 + $0x48] sm:$0xff]
  %v146 = vld [vmem:[%s3 + $0x50] sm:$0xff]
  %v147 = vld [vmem:[%s3 + $0x58] sm:$0xff]
  %v148 = vld [vmem:[%s3 + $0x60] sm:$0xff]
  %v149 = vld [vmem:[%s3 + $0x68] sm:$0xff]
  %v150 = vld [vmem:[%s3 + $0x70] sm:$0xff]
  %v151 = vld [vmem:[%s3 + $0x78] sm:$0xff]
  %v152 = vld [vmem:[%s3 + $0x80] sm:$0xff]
  %v153 = vld [vmem:[%s3 + $0x88] sm:$0xff]
  %v154 = vld [vmem:[%s3 + $0x90] sm:$0xff]
  %v155 = vld [vmem:[%s3 + $0x98] sm:$0xff]
  %v156 = vld [vmem:[%s3 + $0xa0] sm:$0xff]
  %v157 = vld [vmem:[%s3 + $0xa8] sm:$0xff]
  %v158 = vld [vmem:[%s3 + $0xb0] sm:$0xff]
  %v159 = vld [vmem:[%s3 + $0xb8] sm:$0xff]
  %v160 = vld [vmem:[%s3 + $0xc0] sm:$0xff]
  %v161 = vld [vmem:[%s3 + $0xc8] sm:$0xff]
  %v162 = vld [vmem:[%s3 + $0xd0] sm:$0xff]
  %v163 = vld [vmem:[%s3 + $0xd8] sm:$0xff]
  %v164 = vld [vmem:[%s3 + $0xe0] sm:$0xff]
  %v165 = vld [vmem:[%s3 + $0xe8] sm:$0xff]
  %v166 = vld [vmem:[%s3 + $0xf0] sm:$0xff]
  %v167 = vld [vmem:[%s3 + $0xf8] sm:$0xff]
  %v168 = vpack.c.bf16 %v137, %v136
  %v169 = vpack.c.bf16 %v139, %v138
  %v170 = vpack.c.bf16 %v141, %v140
  %v171 = vpack.c.bf16 %v143, %v142
  %v172 = vpack.c.bf16 %v145, %v144
  %v173 = vpack.c.bf16 %v147, %v146
  %v174 = vpack.c.bf16 %v149, %v148
  %v175 = vpack.c.bf16 %v151, %v150
  %v176 = vpack.c.bf16 %v153, %v152
  %v177 = vpack.c.bf16 %v155, %v154
  %v178 = vpack.c.bf16 %v157, %v156
  %v179 = vpack.c.bf16 %v159, %v158
  %v180 = vpack.c.bf16 %v161, %v160
  %v181 = vpack.c.bf16 %v163, %v162
  %v182 = vpack.c.bf16 %v165, %v164
  %v183 = vpack.c.bf16 %v167, %v166
  %v184 = vld [vmem:[%s4] sm:$0x1]
  %v186 = vperm.slane %v184, 0
  %188 = vmatpush.bf16.msra.mxu0 %v175
  %189 = vmatpush.bf16.msra.mxu0 %v174
  %190 = vmatpush.bf16.msra.mxu0 %v173
  %191 = vmatpush.bf16.msra.mxu0 %v172
  %192 = vmatpush.bf16.msra.mxu0 %v171
  %193 = vmatpush.bf16.msra.mxu0 %v170
  %194 = vmatpush.bf16.msra.mxu0 %v169
  %195 = vmatpush.bf16.msra.mxu0 %v168
  %196 = vmatmul.bf16.gmra.mxu0 %v132
  %v197 = vpop.f32.mrf.mxu0
  %v198 = vadd.f32 %v186, %v197
  %v199 = vpop.f32.mrf.mxu0
  %v200 = vadd.f32 %v186, %v199
  %201 = vmatmul.bf16.gmra.mxu0 %v134
  %v202 = vpop.f32.mrf.mxu0
  %v203 = vadd.f32 %v186, %v202
  %v204 = vpop.f32.mrf.mxu0
  %v205 = vadd.f32 %v186, %v204
  %206 = vdwg.mxu0
  %207 = vmatpush.bf16.msra.mxu0 %v183
  %208 = vmatpush.bf16.msra.mxu0 %v182
  %209 = vmatpush.bf16.msra.mxu0 %v181
  %210 = vmatpush.bf16.msra.mxu0 %v180
  %211 = vmatpush.bf16.msra.mxu0 %v179
  %212 = vmatpush.bf16.msra.mxu0 %v178
  %213 = vmatpush.bf16.msra.mxu0 %v177
  %214 = vmatpush.bf16.msra.mxu0 %v176
  %215 = vmatmul.bf16.gmra.mxu0 %v133
  %v216 = vpop.f32.mrf.mxu0
  %v217 = vadd.f32 %v198, %v216
  %v218 = vpop.f32.mrf.mxu0
  %v219 = vadd.f32 %v200, %v218
  %220 = vmatmul.bf16.gmra.mxu0 %v135
  %v221 = vpop.f32.mrf.mxu0
  %v222 = vadd.f32 %v203, %v221
  %v223 = vpop.f32.mrf.mxu0
  %v224 = vadd.f32 %v205, %v223
  %225 = vdwg.mxu0
  %v226 = vadd.f32 %v26, %v217
  %v227 = vadd.f32 %v27, %v219
  %v228 = vadd.f32 %v28, %v222
  %v229 = vadd.f32 %v29, %v224
  %v230 = vld [vmem:[%s5] sm:$0x1]
  %v231 = vld [vmem:[%s6] sm:$0x1]
  %232 = vadd.xlane.f32.xlu0 %v226
  %v233 = vpop.xlane.xlu0 %232
  %234 = vadd.xlane.f32.xlu0 %v227
  %v235 = vpop.xlane.xlu0 %234
  %236 = vadd.xlane.f32.xlu0 %v228
  %v237 = vpop.xlane.xlu0 %236
  %238 = vadd.xlane.f32.xlu0 %v229
  %v239 = vpop.xlane.xlu0 %238
  %v240 = vrcp.pop 128.0
  %v241 = vmul.f32 128.0, %v240
  %v242 = vsub.f32 1.0, %v241
  %v243 = vmul.f32 %v240, %v242
  %v244 = vadd.f32 %v240, %v243
  %vm245 = vweird.f32 %v240
  %v246 = vsel %vm245, %v240, %v244
  %v247 = vmul.f32 %v233, %v246
  %v248 = vmul.f32 %v235, %v246
  %v249 = vmul.f32 %v237, %v246
  %v250 = vmul.f32 %v239, %v246
  %v251 = vsub.f32 %v226, %v247
  %v252 = vsub.f32 %v227, %v248
  %v253 = vsub.f32 %v228, %v249
  %v254 = vsub.f32 %v229, %v250
  %v255 = vmul.f32 %v251, %v251
  %v256 = vmul.f32 %v252, %v252
  %v257 = vmul.f32 %v253, %v253
  %v258 = vmul.f32 %v254, %v254
  %259 = vadd.xlane.f32.xlu0 %v255
  %v260 = vpop.xlane.xlu0 %259
  %261 = vadd.xlane.f32.xlu0 %v256
  %v262 = vpop.xlane.xlu0 %261
  %263 = vadd.xlane.f32.xlu0 %v257
  %v264 = vpop.xlane.xlu0 %263
  %265 = vadd.xlane.f32.xlu0 %v258
  %v266 = vpop.xlane.xlu0 %265
  %v267 = vmul.f32 %v260, %v246
  %v268 = vmul.f32 %v262, %v246
  %v269 = vmul.f32 %v264, %v246
  %v270 = vmul.f32 %v266, %v246
  %v271 = vadd.f32 %v267, 1e-05
  %v272 = vadd.f32 %v268, 1e-05
  %v273 = vadd.f32 %v269, 1e-05
  %v274 = vadd.f32 %v270, 1e-05
  %v275 = vrsqrt.pop %v271
  %v276 = vmul.f32 %v275, %v271
  %v277 = vmul.f32 %v276, %v275
  %v278 = vmul.f32 0.5, %v277
  %v279 = vsub.f32 1.5, %v278
  %v280 = vmul.f32 %v275, %v279
  %vm281 = vweird.f32 %v271
  %vm282 = vweird.f32 %v275
  %vm283 = vmor %vm281, %vm282
  %v284 = vsel %vm283, %v275, %v280
  %v285 = vrsqrt.pop %v272
  %v286 = vmul.f32 %v285, %v272
  %v287 = vmul.f32 %v286, %v285
  %v288 = vmul.f32 0.5, %v287
  %v289 = vsub.f32 1.5, %v288
  %v290 = vmul.f32 %v285, %v289
  %vm291 = vweird.f32 %v272
  %vm292 = vweird.f32 %v285
  %vm293 = vmor %vm291, %vm292
  %v294 = vsel %vm293, %v285, %v290
  %v295 = vrsqrt.pop %v273
  %v296 = vmul.f32 %v295, %v273
  %v297 = vmul.f32 %v296, %v295
  %v298 = vmul.f32 0.5, %v297
  %v299 = vsub.f32 1.5, %v298
  %v300 = vmul.f32 %v295, %v299
  %vm301 = vweird.f32 %v273
  %vm302 = vweird.f32 %v295
  %vm303 = vmor %vm301, %vm302
  %v304 = vsel %vm303, %v295, %v300
  %v305 = vrsqrt.pop %v274
  %v306 = vmul.f32 %v305, %v274
  %v307 = vmul.f32 %v306, %v305
  %v308 = vmul.f32 0.5, %v307
  %v309 = vsub.f32 1.5, %v308
  %v310 = vmul.f32 %v305, %v309
  %vm311 = vweird.f32 %v274
  %vm312 = vweird.f32 %v305
  %vm313 = vmor %vm311, %vm312
  %v314 = vsel %vm313, %v305, %v310
  %v315 = vmul.f32 %v251, %v284
  %v316 = vmul.f32 %v252, %v294
  %v317 = vmul.f32 %v253, %v304
  %v318 = vmul.f32 %v254, %v314
  %v320 = vperm.slane %v230, 0
  %v322 = vmul.f32 %v315, %v320
  %v323 = vmul.f32 %v316, %v320
  %v324 = vmul.f32 %v317, %v320
  %v325 = vmul.f32 %v318, %v320
  %v327 = vperm.slane %v231, 0
  %v329 = vadd.f32 %v322, %v327
  %v330 = vadd.f32 %v323, %v327
  %v331 = vadd.f32 %v324, %v327
  %v332 = vadd.f32 %v325, %v327
  %333 = vst [vmem:[%s7] sm:$0xff] %v329
  %334 = vst [vmem:[%s7 + $0x8] sm:$0xff] %v330
  %335 = vst [vmem:[%s7 + $0x10] sm:$0xff] %v331
  %336 = vst [vmem:[%s7 + $0x18] sm:$0xff] %v332
  // Predicated region
  $region30: #{transformer_decoder_model.26} parent=0 // pred_check
    _
  $region31: #{transformer_decoder_model.26} parent=0 // pred_check_branch
    %338 = sbr.rel (0) target = $region33
  $region32: #{transformer_decoder_model.26} parent=0 // pred_region
    _
  $region33: #{transformer_decoder_model.26} parent=0 // pred_fallthru
    _
  // Predicated region
  $region34: #{transformer_decoder_model.26} parent=0 // pred_check
    _
  $region35: #{transformer_decoder_model.26} parent=0 // pred_check_branch
    %340 = sbr.rel (0) target = $region37
  $region36: #{transformer_decoder_model.26} parent=0 // pred_region
    _
  $region37: #{transformer_decoder_model.26} parent=0 // pred_fallthru
    _

// kernel: transformer_decoder_model.27
$region0: #{transformer_decoder_model.27}
  #allocation0 [shape = 'u32[]', space=smem, size = 0x4, offset = 0x4, fixed_abs, tag = 'smem constant byte address 0x4 - core index']
  #allocation1 [shape = 'u32[72,128]{1,0:T(1,128)}', space=vmem, size = 0x9000, scoped, tag = 'internal scratch']
  #allocation2 [shape = 'f32[32,384]{1,0:T(8,128)}', space=vmem, size = 0xc000, scoped, tag = 'scratch operand']
  %s0 = inlined_call_operand.vmem [shape: f32[32,128], index: 0, kind: input, shape index: {}]
  %s1 = inlined_call_operand.vmem [shape: f32[128,384], index: 1, kind: input, shape index: {}]
  %s2 = inlined_call_operand.vmem [shape: f32[1,384], index: 2, kind: input, shape index: {}]
  %s3 = inlined_call_operand.vmem [shape: f32[32,384], index: 3, kind: output, shape index: {}]
  %s4 = sld [smem:[#allocation0]]
  $region30: #{transformer_decoder_model.27} parent=0
    _
  %s6 = ssub.s32 1, %s4
  %s7 = scalar_select 0, %s6, %s4
  // Predicated region
  $region2: #{transformer_decoder_model.27} parent=0 // pred_check
    _
  $region3: #{transformer_decoder_model.27} parent=0 // pred_check_branch
    %9 = sbr.rel (0) target = $region5
  $region4: #{transformer_decoder_model.27} parent=0 // pred_region
    _
  $region5: #{transformer_decoder_model.27} parent=0 // pred_fallthru
    _
  // Predicated region
  $region6: #{transformer_decoder_model.27} parent=0 // pred_check
    _
  $region7: #{transformer_decoder_model.27} parent=0 // pred_check_branch
    %11 = sbr.rel (0) target = $region9
  $region8: #{transformer_decoder_model.27} parent=0 // pred_region
    _
  $region9: #{transformer_decoder_model.27} parent=0 // pred_fallthru
    _
  // Predicated region
  $region10: #{transformer_decoder_model.27} parent=0 // pred_check
    _
  $region11: #{transformer_decoder_model.27} parent=0 // pred_check_branch
    %13 = sbr.rel (0) target = $region13
  $region12: #{transformer_decoder_model.27} parent=0 // pred_region
    _
  $region13: #{transformer_decoder_model.27} parent=0 // pred_fallthru
    _
  %p14 = scmp.eq.s32.totalorder 0, 0
  // Predicated region
  $region14: #{transformer_decoder_model.27} parent=0 // pred_check
    %p15 = pneg %p14
  $region15: #{transformer_decoder_model.27} parent=0 // pred_check_branch
    %17 = sbr.rel (%p15) target = $region17
  $region16: #{transformer_decoder_model.27} parent=0 // pred_region
    %18 = vst [vmem:[#allocation2] sm:$0xff] 0.0
    %19 = vst [vmem:[#allocation2 + $0x8] sm:$0xff] 0.0
    %20 = vst [vmem:[#allocation2 + $0x10] sm:$0xff] 0.0
    %21 = vst [vmem:[#allocation2 + $0x18] sm:$0xff] 0.0
    %22 = vst [vmem:[#allocation2 + $0x20] sm:$0xff] 0.0
    %23 = vst [vmem:[#allocation2 + $0x28] sm:$0xff] 0.0
    %24 = vst [vmem:[#allocation2 + $0x30] sm:$0xff] 0.0
    %25 = vst [vmem:[#allocation2 + $0x38] sm:$0xff] 0.0
    %26 = vst [vmem:[#allocation2 + $0x40] sm:$0xff] 0.0
    %27 = vst [vmem:[#allocation2 + $0x48] sm:$0xff] 0.0
    %28 = vst [vmem:[#allocation2 + $0x50] sm:$0xff] 0.0
    %29 = vst [vmem:[#allocation2 + $0x58] sm:$0xff] 0.0
  $region17: #{transformer_decoder_model.27} parent=0 // pred_fallthru
    _
  %v30 = vld [vmem:[#allocation2] sm:$0xff]
  %v31 = vld [vmem:[#allocation2 + $0x8] sm:$0xff]
  %v32 = vld [vmem:[#allocation2 + $0x10] sm:$0xff]
  %v33 = vld [vmem:[#allocation2 + $0x18] sm:$0xff]
  %v34 = vld [vmem:[#allocation2 + $0x20] sm:$0xff]
  %v35 = vld [vmem:[#allocation2 + $0x28] sm:$0xff]
  %v36 = vld [vmem:[#allocation2 + $0x30] sm:$0xff]
  %v37 = vld [vmem:[#allocation2 + $0x38] sm:$0xff]
  %v38 = vld [vmem:[#allocation2 + $0x40] sm:$0xff]
  %v39 = vld [vmem:[#allocation2 + $0x48] sm:$0xff]
  %v40 = vld [vmem:[#allocation2 + $0x50] sm:$0xff]
  %v41 = vld [vmem:[#allocation2 + $0x58] sm:$0xff]
  %v42 = vld [vmem:[%s0] sm:$0xff]
  %v43 = vld [vmem:[%s0 + $0x8] sm:$0xff]
  %v44 = vld [vmem:[%s0 + $0x10] sm:$0xff]
  %v45 = vld [vmem:[%s0 + $0x18] sm:$0xff]
  %v46 = vpack.c.bf16 %v43, %v42
  %v47 = vpack.c.bf16 %v45, %v44
  %v48 = vld [vmem:[%s1] sm:$0xff]
  %v49 = vld [vmem:[%s1 + $0x8] sm:$0xff]
  %v50 = vld [vmem:[%s1 + $0x10] sm:$0xff]
  %v51 = vld [vmem:[%s1 + $0x18] sm:$0xff]
  %v52 = vld [vmem:[%s1 + $0x20] sm:$0xff]
  %v53 = vld [vmem:[%s1 + $0x28] sm:$0xff]
  %v54 = vld [vmem:[%s1 + $0x30] sm:$0xff]
  %v55 = vld [vmem:[%s1 + $0x38] sm:$0xff]
  %v56 = vld [vmem:[%s1 + $0x40] sm:$0xff]
  %v57 = vld [vmem:[%s1 + $0x48] sm:$0xff]
  %v58 = vld [vmem:[%s1 + $0x50] sm:$0xff]
  %v59 = vld [vmem:[%s1 + $0x58] sm:$0xff]
  %v60 = vld [vmem:[%s1 + $0x60] sm:$0xff]
  %v61 = vld [vmem:[%s1 + $0x68] sm:$0xff]
  %v62 = vld [vmem:[%s1 + $0x70] sm:$0xff]
  %v63 = vld [vmem:[%s1 + $0x78] sm:$0xff]
  %v64 = vld [vmem:[%s1 + $0x80] sm:$0xff]
  %v65 = vld [vmem:[%s1 + $0x88] sm:$0xff]
  %v66 = vld [vmem:[%s1 + $0x90] sm:$0xff]
  %v67 = vld [vmem:[%s1 + $0x98] sm:$0xff]
  %v68 = vld [vmem:[%s1 + $0xa0] sm:$0xff]
  %v69 = vld [vmem:[%s1 + $0xa8] sm:$0xff]
  %v70 = vld [vmem:[%s1 + $0xb0] sm:$0xff]
  %v71 = vld [vmem:[%s1 + $0xb8] sm:$0xff]
  %v72 = vld [vmem:[%s1 + $0xc0] sm:$0xff]
  %v73 = vld [vmem:[%s1 + $0xc8] sm:$0xff]
  %v74 = vld [vmem:[%s1 + $0xd0] sm:$0xff]
  %v75 = vld [vmem:[%s1 + $0xd8] sm:$0xff]
  %v76 = vld [vmem:[%s1 + $0xe0] sm:$0xff]
  %v77 = vld [vmem:[%s1 + $0xe8] sm:$0xff]
  %v78 = vld [vmem:[%s1 + $0xf0] sm:$0xff]
  %v79 = vld [vmem:[%s1 + $0xf8] sm:$0xff]
  %v80 = vld [vmem:[%s1 + $0x100] sm:$0xff]
  %v81 = vld [vmem:[%s1 + $0x108] sm:$0xff]
  %v82 = vld [vmem:[%s1 + $0x110] sm:$0xff]
  %v83 = vld [vmem:[%s1 + $0x118] sm:$0xff]
  %v84 = vld [vmem:[%s1 + $0x120] sm:$0xff]
  %v85 = vld [vmem:[%s1 + $0x128] sm:$0xff]
  %v86 = vld [vmem:[%s1 + $0x130] sm:$0xff]
  %v87 = vld [vmem:[%s1 + $0x138] sm:$0xff]
  %v88 = vld [vmem:[%s1 + $0x140] sm:$0xff]
  %v89 = vld [vmem:[%s1 + $0x148] sm:$0xff]
  %v90 = vld [vmem:[%s1 + $0x150] sm:$0xff]
  %v91 = vld [vmem:[%s1 + $0x158] sm:$0xff]
  %v92 = vld [vmem:[%s1 + $0x160] sm:$0xff]
  %v93 = vld [vmem:[%s1 + $0x168] sm:$0xff]
  %v94 = vld [vmem:[%s1 + $0x170] sm:$0xff]
  %v95 = vld [vmem:[%s1 + $0x178] sm:$0xff]
  %v96 = vpack.c.bf16 %v51, %v48
  %v97 = vpack.c.bf16 %v52, %v49
  %v98 = vpack.c.bf16 %v53, %v50
  %v99 = vpack.c.bf16 %v57, %v54
  %v100 = vpack.c.bf16 %v58, %v55
  %v101 = vpack.c.bf16 %v59, %v56
  %v102 = vpack.c.bf16 %v63, %v60
  %v103 = vpack.c.bf16 %v64, %v61
  %v104 = vpack.c.bf16 %v65, %v62
  %v105 = vpack.c.bf16 %v69, %v66
  %v106 = vpack.c.bf16 %v70, %v67
  %v107 = vpack.c.bf16 %v71, %v68
  %v108 = vpack.c.bf16 %v75, %v72
  %v109 = vpack.c.bf16 %v76, %v73
  %v110 = vpack.c.bf16 %v77, %v74
  %v111 = vpack.c.bf16 %v81, %v78
  %v112 = vpack.c.bf16 %v82, %v79
  %v113 = vpack.c.bf16 %v83, %v80
  %v114 = vpack.c.bf16 %v87, %v84
  %v115 = vpack.c.bf16 %v88, %v85
  %v116 = vpack.c.bf16 %v89, %v86
  %v117 = vpack.c.bf16 %v93, %v90
  %v118 = vpack.c.bf16 %v94, %v91
  %v119 = vpack.c.bf16 %v95, %v92
  %120 = vmatpush.bf16.msra.mxu0 %v117
  %121 = vmatpush.bf16.msra.mxu0 %v114
  %122 = vmatpush.bf16.msra.mxu0 %v111
  %123 = vmatpush.bf16.msra.mxu0 %v108
  %124 = vmatpush.bf16.msra.mxu0 %v105
  %125 = vmatpush.bf16.msra.mxu0 %v102
  %126 = vmatpush.bf16.msra.mxu0 %v99
  %127 = vmatpush.bf16.msra.mxu0 %v96
  %128 = vmatmul.bf16.gmra.mxu0 %v46
  %v129 = vpop.f32.mrf.mxu0
  %v130 = vadd.f32 0.0, %v129
  %v131 = vpop.f32.mrf.mxu0
  %v132 = vadd.f32 0.0, %v131
  %133 = vmatmul.bf16.gmra.mxu0 %v47
  %v134 = vpop.f32.mrf.mxu0
  %v135 = vadd.f32 0.0, %v134
  %v136 = vpop.f32.mrf.mxu0
  %v137 = vadd.f32 0.0, %v136
  %138 = vdwg.mxu0
  %139 = vmatpush.bf16.msra.mxu0 %v118
  %140 = vmatpush.bf16.msra.mxu0 %v115
  %141 = vmatpush.bf16.msra.mxu0 %v112
  %142 = vmatpush.bf16.msra.mxu0 %v109
  %143 = vmatpush.bf16.msra.mxu0 %v106
  %144 = vmatpush.bf16.msra.mxu0 %v103
  %145 = vmatpush.bf16.msra.mxu0 %v100
  %146 = vmatpush.bf16.msra.mxu0 %v97
  %147 = vmatmul.bf16.gmra.mxu0 %v46
  %v148 = vpop.f32.mrf.mxu0
  %v149 = vadd.f32 0.0, %v148
  %v150 = vpop.f32.mrf.mxu0
  %v151 = vadd.f32 0.0, %v150
  %152 = vmatmul.bf16.gmra.mxu0 %v47
  %v153 = vpop.f32.mrf.mxu0
  %v154 = vadd.f32 0.0, %v153
  %v155 = vpop.f32.mrf.mxu0
  %v156 = vadd.f32 0.0, %v155
  %157 = vdwg.mxu0
  %158 = vmatpush.bf16.msra.mxu0 %v119
  %159 = vmatpush.bf16.msra.mxu0 %v116
  %160 = vmatpush.bf16.msra.mxu0 %v113
  %161 = vmatpush.bf16.msra.mxu0 %v110
  %162 = vmatpush.bf16.msra.mxu0 %v107
  %163 = vmatpush.bf16.msra.mxu0 %v104
  %164 = vmatpush.bf16.msra.mxu0 %v101
  %165 = vmatpush.bf16.msra.mxu0 %v98
  %166 = vmatmul.bf16.gmra.mxu0 %v46
  %v167 = vpop.f32.mrf.mxu0
  %v168 = vadd.f32 0.0, %v167
  %v169 = vpop.f32.mrf.mxu0
  %v170 = vadd.f32 0.0, %v169
  %171 = vmatmul.bf16.gmra.mxu0 %v47
  %v172 = vpop.f32.mrf.mxu0
  %v173 = vadd.f32 0.0, %v172
  %v174 = vpop.f32.mrf.mxu0
  %v175 = vadd.f32 0.0, %v174
  %176 = vdwg.mxu0
  %v177 = vadd.f32 %v30, %v130
  %v178 = vadd.f32 %v31, %v149
  %v179 = vadd.f32 %v32, %v168
  %v180 = vadd.f32 %v33, %v132
  %v181 = vadd.f32 %v34, %v151
  %v182 = vadd.f32 %v35, %v170
  %v183 = vadd.f32 %v36, %v135
  %v184 = vadd.f32 %v37, %v154
  %v185 = vadd.f32 %v38, %v173
  %v186 = vadd.f32 %v39, %v137
  %v187 = vadd.f32 %v40, %v156
  %v188 = vadd.f32 %v41, %v175
  %189 = vst [vmem:[#allocation2] sm:$0xff] %v177
  %190 = vst [vmem:[#allocation2 + $0x8] sm:$0xff] %v178
  %191 = vst [vmem:[#allocation2 + $0x10] sm:$0xff] %v179
  %192 = vst [vmem:[#allocation2 + $0x18] sm:$0xff] %v180
  %193 = vst [vmem:[#allocation2 + $0x20] sm:$0xff] %v181
  %194 = vst [vmem:[#allocation2 + $0x28] sm:$0xff] %v182
  %195 = vst [vmem:[#allocation2 + $0x30] sm:$0xff] %v183
  %196 = vst [vmem:[#allocation2 + $0x38] sm:$0xff] %v184
  %197 = vst [vmem:[#allocation2 + $0x40] sm:$0xff] %v185
  %198 = vst [vmem:[#allocation2 + $0x48] sm:$0xff] %v186
  %199 = vst [vmem:[#allocation2 + $0x50] sm:$0xff] %v187
  %200 = vst [vmem:[#allocation2 + $0x58] sm:$0xff] %v188
  // Predicated region
  $region18: #{transformer_decoder_model.27} parent=0 // pred_check
    %p201 = pneg %p14
  $region19: #{transformer_decoder_model.27} parent=0 // pred_check_branch
    %203 = sbr.rel (%p201) target = $region21
  $region20: #{transformer_decoder_model.27} parent=0 // pred_region
    %v204 = vld [vmem:[#allocation2] sm:$0xff]
    %v205 = vld [vmem:[#allocation2 + $0x8] sm:$0xff]
    %v206 = vld [vmem:[#allocation2 + $0x10] sm:$0xff]
    %v207 = vld [vmem:[#allocation2 + $0x18] sm:$0xff]
    %v208 = vld [vmem:[#allocation2 + $0x20] sm:$0xff]
    %v209 = vld [vmem:[#allocation2 + $0x28] sm:$0xff]
    %v210 = vld [vmem:[#allocation2 + $0x30] sm:$0xff]
    %v211 = vld [vmem:[#allocation2 + $0x38] sm:$0xff]
    %v212 = vld [vmem:[#allocation2 + $0x40] sm:$0xff]
    %v213 = vld [vmem:[#allocation2 + $0x48] sm:$0xff]
    %v214 = vld [vmem:[#allocation2 + $0x50] sm:$0xff]
    %v215 = vld [vmem:[#allocation2 + $0x58] sm:$0xff]
    %v216 = vld [vmem:[%s2] sm:$0x7]
    %v218 = vperm.slane %v216, 0
    %v219 = vperm.slane %v216, 1
    %v220 = vperm.slane %v216, 2
    %v224 = vadd.f32 %v204, %v218
    %v225 = vadd.f32 %v205, %v219
    %v226 = vadd.f32 %v206, %v220
    %v227 = vadd.f32 %v207, %v218
    %v228 = vadd.f32 %v208, %v219
    %v229 = vadd.f32 %v209, %v220
    %v230 = vadd.f32 %v210, %v218
    %v231 = vadd.f32 %v211, %v219
    %v232 = vadd.f32 %v212, %v220
    %v233 = vadd.f32 %v213, %v218
    %v234 = vadd.f32 %v214, %v219
    %v235 = vadd.f32 %v215, %v220
    %236 = vst [vmem:[%s3] sm:$0xff] %v224
    %237 = vst [vmem:[%s3 + $0x8] sm:$0xff] %v225
    %238 = vst [vmem:[%s3 + $0x10] sm:$0xff] %v226
    %239 = vst [vmem:[%s3 + $0x18] sm:$0xff] %v227
    %240 = vst [vmem:[%s3 + $0x20] sm:$0xff] %v228
    %241 = vst [vmem:[%s3 + $0x28] sm:$0xff] %v229
    %242 = vst [vmem:[%s3 + $0x30] sm:$0xff] %v230
    %243 = vst [vmem:[%s3 + $0x38] sm:$0xff] %v231
    %244 = vst [vmem:[%s3 + $0x40] sm:$0xff] %v232
    %245 = vst [vmem:[%s3 + $0x48] sm:$0xff] %v233
    %246 = vst [vmem:[%s3 + $0x50] sm:$0xff] %v234
    %247 = vst [vmem:[%s3 + $0x58] sm:$0xff] %v235
  $region21: #{transformer_decoder_model.27} parent=0 // pred_fallthru
    _
  // Predicated region
  $region22: #{transformer_decoder_model.27} parent=0 // pred_check
    _
  $region23: #{transformer_decoder_model.27} parent=0 // pred_check_branch
    %249 = sbr.rel (0) target = $region25
  $region24: #{transformer_decoder_model.27} parent=0 // pred_region
    _
  $region25: #{transformer_decoder_model.27} parent=0 // pred_fallthru
    _
  // Predicated region
  $region26: #{transformer_decoder_model.27} parent=0 // pred_check
    _
  $region27: #{transformer_decoder_model.27} parent=0 // pred_check_branch
    %251 = sbr.rel (0) target = $region29
  $region28: #{transformer_decoder_model.27} parent=0 // pred_region
    _
  $region29: #{transformer_decoder_model.27} parent=0 // pred_fallthru
    _

// kernel: transformer_decoder_model.35
$region0: #{transformer_decoder_model.35}
  #allocation0 [shape = 'u32[]', space=smem, size = 0x4, offset = 0x4, fixed_abs, tag = 'smem constant byte address 0x4 - core index']
  #allocation1 [shape = 'u32[72,128]{1,0:T(1,128)}', space=vmem, size = 0x9000, scoped, tag = 'internal scratch']
  #allocation2 [shape = 'f32[32,512]{1,0:T(8,128)}', space=vmem, size = 0x10000, scoped, tag = 'scratch operand']
  %s0 = inlined_call_operand.vmem [shape: f32[32,128], index: 0, kind: input, shape index: {}]
  %s1 = inlined_call_operand.vmem [shape: f32[128,512], index: 1, kind: input, shape index: {}]
  %s2 = inlined_call_operand.vmem [shape: f32[1,512], index: 2, kind: input, shape index: {}]
  %s3 = inlined_call_operand.hbm [shape: f32[32,512], index: 3, kind: output, shape index: {}]
  %s4 = sld [smem:[#allocation0]]
  $region30: #{transformer_decoder_model.35} parent=0
    _
  %s6 = ssub.s32 1, %s4
  %s7 = scalar_select 0, %s6, %s4
  $region1: #{transformer_decoder_model.35} parent=0
    #allocation3 [shape = 'u8[65536]{0}', space=vmem, size = 0x10000, scoped, tag = 'output window, operand 0, single buffered']
    #allocation4 [shape = 's32[1]{0}', space=sflag, size = 0x4, scoped, tag = 'scoped memory for transformer_decoder_model.35']
    %8 = vsyncpa [#allocation4], 0
    // Predicated region
    $region2: #{transformer_decoder_model.35} parent=1 // pred_check
      _
    $region3: #{transformer_decoder_model.35} parent=1 // pred_check_branch
      %10 = sbr.rel (0) target = $region5
    $region4: #{transformer_decoder_model.35} parent=1 // pred_region
      _
    $region5: #{transformer_decoder_model.35} parent=1 // pred_fallthru
      _
    // Predicated region
    $region6: #{transformer_decoder_model.35} parent=1 // pred_check
      _
    $region7: #{transformer_decoder_model.35} parent=1 // pred_check_branch
      %12 = sbr.rel (0) target = $region9
    $region8: #{transformer_decoder_model.35} parent=1 // pred_region
      _
    $region9: #{transformer_decoder_model.35} parent=1 // pred_fallthru
      _
    // Predicated region
    $region10: #{transformer_decoder_model.35} parent=1 // pred_check
      _
    $region11: #{transformer_decoder_model.35} parent=1 // pred_check_branch
      %14 = sbr.rel (0) target = $region13
    $region12: #{transformer_decoder_model.35} parent=1 // pred_region
      _
    $region13: #{transformer_decoder_model.35} parent=1 // pred_fallthru
      _
    %p15 = scmp.eq.s32.totalorder 0, 0
    // Predicated region
    $region14: #{transformer_decoder_model.35} parent=1 // pred_check
      %p16 = pneg %p15
    $region15: #{transformer_decoder_model.35} parent=1 // pred_check_branch
      %18 = sbr.rel (%p16) target = $region17
    $region16: #{transformer_decoder_model.35} parent=1 // pred_region
      %19 = vst [vmem:[#allocation2] sm:$0xff] 0.0
      %20 = vst [vmem:[#allocation2 + $0x8] sm:$0xff] 0.0
      %21 = vst [vmem:[#allocation2 + $0x10] sm:$0xff] 0.0
      %22 = vst [vmem:[#allocation2 + $0x18] sm:$0xff] 0.0
      %23 = vst [vmem:[#allocation2 + $0x20] sm:$0xff] 0.0
      %24 = vst [vmem:[#allocation2 + $0x28] sm:$0xff] 0.0
      %25 = vst [vmem:[#allocation2 + $0x30] sm:$0xff] 0.0
      %26 = vst [vmem:[#allocation2 + $0x38] sm:$0xff] 0.0
      %27 = vst [vmem:[#allocation2 + $0x40] sm:$0xff] 0.0
      %28 = vst [vmem:[#allocation2 + $0x48] sm:$0xff] 0.0
      %29 = vst [vmem:[#allocation2 + $0x50] sm:$0xff] 0.0
      %30 = vst [vmem:[#allocation2 + $0x58] sm:$0xff] 0.0
      %31 = vst [vmem:[#allocation2 + $0x60] sm:$0xff] 0.0
      %32 = vst [vmem:[#allocation2 + $0x68] sm:$0xff] 0.0
      %33 = vst [vmem:[#allocation2 + $0x70] sm:$0xff] 0.0
      %34 = vst [vmem:[#allocation2 + $0x78] sm:$0xff] 0.0
    $region17: #{transformer_decoder_model.35} parent=1 // pred_fallthru
      _
    %v35 = vld [vmem:[#allocation2] sm:$0xff]
    %v36 = vld [vmem:[#allocation2 + $0x8] sm:$0xff]
    %v37 = vld [vmem:[#allocation2 + $0x10] sm:$0xff]
    %v38 = vld [vmem:[#allocation2 + $0x18] sm:$0xff]
    %v39 = vld [vmem:[#allocation2 + $0x20] sm:$0xff]
    %v40 = vld [vmem:[#allocation2 + $0x28] sm:$0xff]
    %v41 = vld [vmem:[#allocation2 + $0x30] sm:$0xff]
    %v42 = vld [vmem:[#allocation2 + $0x38] sm:$0xff]
    %v43 = vld [vmem:[#allocation2 + $0x40] sm:$0xff]
    %v44 = vld [vmem:[#allocation2 + $0x48] sm:$0xff]
    %v45 = vld [vmem:[#allocation2 + $0x50] sm:$0xff]
    %v46 = vld [vmem:[#allocation2 + $0x58] sm:$0xff]
    %v47 = vld [vmem:[#allocation2 + $0x60] sm:$0xff]
    %v48 = vld [vmem:[#allocation2 + $0x68] sm:$0xff]
    %v49 = vld [vmem:[#allocation2 + $0x70] sm:$0xff]
    %v50 = vld [vmem:[#allocation2 + $0x78] sm:$0xff]
    %v51 = vld [vmem:[%s0] sm:$0xff]
    %v52 = vld [vmem:[%s0 + $0x8] sm:$0xff]
    %v53 = vld [vmem:[%s0 + $0x10] sm:$0xff]
    %v54 = vld [vmem:[%s0 + $0x18] sm:$0xff]
    %v55 = vpack.c.bf16 %v52, %v51
    %v56 = vpack.c.bf16 %v54, %v53
    %v57 = vld [vmem:[%s1] sm:$0xff]
    %v58 = vld [vmem:[%s1 + $0x8] sm:$0xff]
    %v59 = vld [vmem:[%s1 + $0x10] sm:$0xff]
    %v60 = vld [vmem:[%s1 + $0x18] sm:$0xff]
    %v61 = vld [vmem:[%s1 + $0x20] sm:$0xff]
    %v62 = vld [vmem:[%s1 + $0x28] sm:$0xff]
    %v63 = vld [vmem:[%s1 + $0x30] sm:$0xff]
    %v64 = vld [vmem:[%s1 + $0x38] sm:$0xff]
    %v65 = vld [vmem:[%s1 + $0x40] sm:$0xff]
    %v66 = vld [vmem:[%s1 + $0x48] sm:$0xff]
    %v67 = vld [vmem:[%s1 + $0x50] sm:$0xff]
    %v68 = vld [vmem:[%s1 + $0x58] sm:$0xff]
    %v69 = vld [vmem:[%s1 + $0x60] sm:$0xff]
    %v70 = vld [vmem:[%s1 + $0x68] sm:$0xff]
    %v71 = vld [vmem:[%s1 + $0x70] sm:$0xff]
    %v72 = vld [vmem:[%s1 + $0x78] sm:$0xff]
    %v73 = vld [vmem:[%s1 + $0x80] sm:$0xff]
    %v74 = vld [vmem:[%s1 + $0x88] sm:$0xff]
    %v75 = vld [vmem:[%s1 + $0x90] sm:$0xff]
    %v76 = vld [vmem:[%s1 + $0x98] sm:$0xff]
    %v77 = vld [vmem:[%s1 + $0xa0] sm:$0xff]
    %v78 = vld [vmem:[%s1 + $0xa8] sm:$0xff]
    %v79 = vld [vmem:[%s1 + $0xb0] sm:$0xff]
    %v80 = vld [vmem:[%s1 + $0xb8] sm:$0xff]
    %v81 = vld [vmem:[%s1 + $0xc0] sm:$0xff]
    %v82 = vld [vmem:[%s1 + $0xc8] sm:$0xff]
    %v83 = vld [vmem:[%s1 + $0xd0] sm:$0xff]
    %v84 = vld [vmem:[%s1 + $0xd8] sm:$0xff]
    %v85 = vld [vmem:[%s1 + $0xe0] sm:$0xff]
    %v86 = vld [vmem:[%s1 + $0xe8] sm:$0xff]
    %v87 = vld [vmem:[%s1 + $0xf0] sm:$0xff]
    %v88 = vld [vmem:[%s1 + $0xf8] sm:$0xff]
    %v89 = vld [vmem:[%s1 + $0x100] sm:$0xff]
    %v90 = vld [vmem:[%s1 + $0x108] sm:$0xff]
    %v91 = vld [vmem:[%s1 + $0x110] sm:$0xff]
    %v92 = vld [vmem:[%s1 + $0x118] sm:$0xff]
    %v93 = vld [vmem:[%s1 + $0x120] sm:$0xff]
    %v94 = vld [vmem:[%s1 + $0x128] sm:$0xff]
    %v95 = vld [vmem:[%s1 + $0x130] sm:$0xff]
    %v96 = vld [vmem:[%s1 + $0x138] sm:$0xff]
    %v97 = vld [vmem:[%s1 + $0x140] sm:$0xff]
    %v98 = vld [vmem:[%s1 + $0x148] sm:$0xff]
    %v99 = vld [vmem:[%s1 + $0x150] sm:$0xff]
    %v100 = vld [vmem:[%s1 + $0x158] sm:$0xff]
    %v101 = vld [vmem:[%s1 + $0x160] sm:$0xff]
    %v102 = vld [vmem:[%s1 + $0x168] sm:$0xff]
    %v103 = vld [vmem:[%s1 + $0x170] sm:$0xff]
    %v104 = vld [vmem:[%s1 + $0x178] sm:$0xff]
    %v105 = vld [vmem:[%s1 + $0x180] sm:$0xff]
    %v106 = vld [vmem:[%s1 + $0x188] sm:$0xff]
    %v107 = vld [vmem:[%s1 + $0x190] sm:$0xff]
    %v108 = vld [vmem:[%s1 + $0x198] sm:$0xff]
    %v109 = vld [vmem:[%s1 + $0x1a0] sm:$0xff]
    %v110 = vld [vmem:[%s1 + $0x1a8] sm:$0xff]
    %v111 = vld [vmem:[%s1 + $0x1b0] sm:$0xff]
    %v112 = vld [vmem:[%s1 + $0x1b8] sm:$0xff]
    %v113 = vld [vmem:[%s1 + $0x1c0] sm:$0xff]
    %v114 = vld [vmem:[%s1 + $0x1c8] sm:$0xff]
    %v115 = vld [vmem:[%s1 + $0x1d0] sm:$0xff]
    %v116 = vld [vmem:[%s1 + $0x1d8] sm:$0xff]
    %v117 = vld [vmem:[%s1 + $0x1e0] sm:$0xff]
    %v118 = vld [vmem:[%s1 + $0x1e8] sm:$0xff]
    %v119 = vld [vmem:[%s1 + $0x1f0] sm:$0xff]
    %v120 = vld [vmem:[%s1 + $0x1f8] sm:$0xff]
    %v121 = vpack.c.bf16 %v61, %v57
    %v122 = vpack.c.bf16 %v62, %v58
    %v123 = vpack.c.bf16 %v63, %v59
    %v124 = vpack.c.bf16 %v64, %v60
    %v125 = vpack.c.bf16 %v69, %v65
    %v126 = vpack.c.bf16 %v70, %v66
    %v127 = vpack.c.bf16 %v71, %v67
    %v128 = vpack.c.bf16 %v72, %v68
    %v129 = vpack.c.bf16 %v77, %v73
    %v130 = vpack.c.bf16 %v78, %v74
    %v131 = vpack.c.bf16 %v79, %v75
    %v132 = vpack.c.bf16 %v80, %v76
    %v133 = vpack.c.bf16 %v85, %v81
    %v134 = vpack.c.bf16 %v86, %v82
    %v135 = vpack.c.bf16 %v87, %v83
    %v136 = vpack.c.bf16 %v88, %v84
    %v137 = vpack.c.bf16 %v93, %v89
    %v138 = vpack.c.bf16 %v94, %v90
    %v139 = vpack.c.bf16 %v95, %v91
    %v140 = vpack.c.bf16 %v96, %v92
    %v141 = vpack.c.bf16 %v101, %v97
    %v142 = vpack.c.bf16 %v102, %v98
    %v143 = vpack.c.bf16 %v103, %v99
    %v144 = vpack.c.bf16 %v104, %v100
    %v145 = vpack.c.bf16 %v109, %v105
    %v146 = vpack.c.bf16 %v110, %v106
    %v147 = vpack.c.bf16 %v111, %v107
    %v148 = vpack.c.bf16 %v112, %v108
    %v149 = vpack.c.bf16 %v117, %v113
    %v150 = vpack.c.bf16 %v118, %v114
    %v151 = vpack.c.bf16 %v119, %v115
    %v152 = vpack.c.bf16 %v120, %v116
    %153 = vmatpush.bf16.msra.mxu0 %v149
    %154 = vmatpush.bf16.msra.mxu0 %v145
    %155 = vmatpush.bf16.msra.mxu0 %v141
    %156 = vmatpush.bf16.msra.mxu0 %v137
    %157 = vmatpush.bf16.msra.mxu0 %v133
    %158 = vmatpush.bf16.msra.mxu0 %v129
    %159 = vmatpush.bf16.msra.mxu0 %v125
    %160 = vmatpush.bf16.msra.mxu0 %v121
    %161 = vmatmul.bf16.gmra.mxu0 %v55
    %v162 = vpop.f32.mrf.mxu0
    %v163 = vadd.f32 0.0, %v162
    %v164 = vpop.f32.mrf.mxu0
    %v165 = vadd.f32 0.0, %v164
    %166 = vmatmul.bf16.gmra.mxu0 %v56
    %v167 = vpop.f32.mrf.mxu0
    %v168 = vadd.f32 0.0, %v167
    %v169 = vpop.f32.mrf.mxu0
    %v170 = vadd.f32 0.0, %v169
    %171 = vdwg.mxu0
    %172 = vmatpush.bf16.msra.mxu0 %v150
    %173 = vmatpush.bf16.msra.mxu0 %v146
    %174 = vmatpush.bf16.msra.mxu0 %v142
    %175 = vmatpush.bf16.msra.mxu0 %v138
    %176 = vmatpush.bf16.msra.mxu0 %v134
    %177 = vmatpush.bf16.msra.mxu0 %v130
    %178 = vmatpush.bf16.msra.mxu0 %v126
    %179 = vmatpush.bf16.msra.mxu0 %v122
    %180 = vmatmul.bf16.gmra.mxu0 %v55
    %v181 = vpop.f32.mrf.mxu0
    %v182 = vadd.f32 0.0, %v181
    %v183 = vpop.f32.mrf.mxu0
    %v184 = vadd.f32 0.0, %v183
    %185 = vmatmul.bf16.gmra.mxu0 %v56
    %v186 = vpop.f32.mrf.mxu0
    %v187 = vadd.f32 0.0, %v186
    %v188 = vpop.f32.mrf.mxu0
    %v189 = vadd.f32 0.0, %v188
    %190 = vdwg.mxu0
    %191 = vmatpush.bf16.msra.mxu0 %v151
    %192 = vmatpush.bf16.msra.mxu0 %v147
    %193 = vmatpush.bf16.msra.mxu0 %v143
    %194 = vmatpush.bf16.msra.mxu0 %v139
    %195 = vmatpush.bf16.msra.mxu0 %v135
    %196 = vmatpush.bf16.msra.mxu0 %v131
    %197 = vmatpush.bf16.msra.mxu0 %v127
    %198 = vmatpush.bf16.msra.mxu0 %v123
    %199 = vmatmul.bf16.gmra.mxu0 %v55
    %v200 = vpop.f32.mrf.mxu0
    %v201 = vadd.f32 0.0, %v200
    %v202 = vpop.f32.mrf.mxu0
    %v203 = vadd.f32 0.0, %v202
    %204 = vmatmul.bf16.gmra.mxu0 %v56
    %v205 = vpop.f32.mrf.mxu0
    %v206 = vadd.f32 0.0, %v205
    %v207 = vpop.f32.mrf.mxu0
    %v208 = vadd.f32 0.0, %v207
    %209 = vdwg.mxu0
    %210 = vmatpush.bf16.msra.mxu0 %v152
    %211 = vmatpush.bf16.msra.mxu0 %v148
    %212 = vmatpush.bf16.msra.mxu0 %v144
    %213 = vmatpush.bf16.msra.mxu0 %v140
    %214 = vmatpush.bf16.msra.mxu0 %v136
    %215 = vmatpush.bf16.msra.mxu0 %v132
    %216 = vmatpush.bf16.msra.mxu0 %v128
    %217 = vmatpush.bf16.msra.mxu0 %v124
    %218 = vmatmul.bf16.gmra.mxu0 %v55
    %v219 = vpop.f32.mrf.mxu0
    %v220 = vadd.f32 0.0, %v219
    %v221 = vpop.f32.mrf.mxu0
    %v222 = vadd.f32 0.0, %v221
    %223 = vmatmul.bf16.gmra.mxu0 %v56
    %v224 = vpop.f32.mrf.mxu0
    %v225 = vadd.f32 0.0, %v224
    %v226 = vpop.f32.mrf.mxu0
    %v227 = vadd.f32 0.0, %v226
    %228 = vdwg.mxu0
    %v229 = vadd.f32 %v35, %v163
    %v230 = vadd.f32 %v36, %v182
    %v231 = vadd.f32 %v37, %v201
    %v232 = vadd.f32 %v38, %v220
    %v233 = vadd.f32 %v39, %v165
    %v234 = vadd.f32 %v40, %v184
    %v235 = vadd.f32 %v41, %v203
    %v236 = vadd.f32 %v42, %v222
    %v237 = vadd.f32 %v43, %v168
    %v238 = vadd.f32 %v44, %v187
    %v239 = vadd.f32 %v45, %v206
    %v240 = vadd.f32 %v46, %v225
    %v241 = vadd.f32 %v47, %v170
    %v242 = vadd.f32 %v48, %v189
    %v243 = vadd.f32 %v49, %v208
    %v244 = vadd.f32 %v50, %v227
    %245 = vst [vmem:[#allocation2] sm:$0xff] %v229
    %246 = vst [vmem:[#allocation2 + $0x8] sm:$0xff] %v230
    %247 = vst [vmem:[#allocation2 + $0x10] sm:$0xff] %v231
    %248 = vst [vmem:[#allocation2 + $0x18] sm:$0xff] %v232
    %249 = vst [vmem:[#allocation2 + $0x20] sm:$0xff] %v233
    %250 = vst [vmem:[#allocation2 + $0x28] sm:$0xff] %v234
    %251 = vst [vmem:[#allocation2 + $0x30] sm:$0xff] %v235
    %252 = vst [vmem:[#allocation2 + $0x38] sm:$0xff] %v236
    %253 = vst [vmem:[#allocation2 + $0x40] sm:$0xff] %v237
    %254 = vst [vmem:[#allocation2 + $0x48] sm:$0xff] %v238
    %255 = vst [vmem:[#allocation2 + $0x50] sm:$0xff] %v239
    %256 = vst [vmem:[#allocation2 + $0x58] sm:$0xff] %v240
    %257 = vst [vmem:[#allocation2 + $0x60] sm:$0xff] %v241
    %258 = vst [vmem:[#allocation2 + $0x68] sm:$0xff] %v242
    %259 = vst [vmem:[#allocation2 + $0x70] sm:$0xff] %v243
    %260 = vst [vmem:[#allocation2 + $0x78] sm:$0xff] %v244
    // Predicated region
    $region18: #{transformer_decoder_model.35} parent=1 // pred_check
      %p261 = pneg %p15
    $region19: #{transformer_decoder_model.35} parent=1 // pred_check_branch
      %263 = sbr.rel (%p261) target = $region21
    $region20: #{transformer_decoder_model.35} parent=1 // pred_region
      %v264 = vld [vmem:[#allocation2] sm:$0xff]
      %v265 = vld [vmem:[#allocation2 + $0x8] sm:$0xff]
      %v266 = vld [vmem:[#allocation2 + $0x10] sm:$0xff]
      %v267 = vld [vmem:[#allocation2 + $0x18] sm:$0xff]
      %v268 = vld [vmem:[#allocation2 + $0x20] sm:$0xff]
      %v269 = vld [vmem:[#allocation2 + $0x28] sm:$0xff]
      %v270 = vld [vmem:[#allocation2 + $0x30] sm:$0xff]
      %v271 = vld [vmem:[#allocation2 + $0x38] sm:$0xff]
      %v272 = vld [vmem:[#allocation2 + $0x40] sm:$0xff]
      %v273 = vld [vmem:[#allocation2 + $0x48] sm:$0xff]
      %v274 = vld [vmem:[#allocation2 + $0x50] sm:$0xff]
      %v275 = vld [vmem:[#allocation2 + $0x58] sm:$0xff]
      %v276 = vld [vmem:[#allocation2 + $0x60] sm:$0xff]
      %v277 = vld [vmem:[#allocation2 + $0x68] sm:$0xff]
      %v278 = vld [vmem:[#allocation2 + $0x70] sm:$0xff]
      %v279 = vld [vmem:[#allocation2 + $0x78] sm:$0xff]
      %v280 = vld [vmem:[%s2] sm:$0xf]
      %v282 = vperm.slane %v280, 0
      %v283 = vperm.slane %v280, 1
      %v284 = vperm.slane %v280, 2
      %v285 = vperm.slane %v280, 3
      %v290 = vadd.f32 %v264, %v282
      %v291 = vadd.f32 %v265, %v283
      %v292 = vadd.f32 %v266, %v284
      %v293 = vadd.f32 %v267, %v285
      %v294 = vadd.f32 %v268, %v282
      %v295 = vadd.f32 %v269, %v283
      %v296 = vadd.f32 %v270, %v284
      %v297 = vadd.f32 %v271, %v285
      %v298 = vadd.f32 %v272, %v282
      %v299 = vadd.f32 %v273, %v283
      %v300 = vadd.f32 %v274, %v284
      %v301 = vadd.f32 %v275, %v285
      %v302 = vadd.f32 %v276, %v282
      %v303 = vadd.f32 %v277, %v283
      %v304 = vadd.f32 %v278, %v284
      %v305 = vadd.f32 %v279, %v285
      %306 = vst [vmem:[#allocation3] sm:$0xff] %v290
      %307 = vst [vmem:[#allocation3 + $0x8] sm:$0xff] %v291
      %308 = vst [vmem:[#allocation3 + $0x10] sm:$0xff] %v292
      %309 = vst [vmem:[#allocation3 + $0x18] sm:$0xff] %v293
      %310 = vst [vmem:[#allocation3 + $0x20] sm:$0xff] %v294
      %311 = vst [vmem:[#allocation3 + $0x28] sm:$0xff] %v295
      %312 = vst [vmem:[#allocation3 + $0x30] sm:$0xff] %v296
      %313 = vst [vmem:[#allocation3 + $0x38] sm:$0xff] %v297
      %314 = vst [vmem:[#allocation3 + $0x40] sm:$0xff] %v298
      %315 = vst [vmem:[#allocation3 + $0x48] sm:$0xff] %v299
      %316 = vst [vmem:[#allocation3 + $0x50] sm:$0xff] %v300
      %317 = vst [vmem:[#allocation3 + $0x58] sm:$0xff] %v301
      %318 = vst [vmem:[#allocation3 + $0x60] sm:$0xff] %v302
      %319 = vst [vmem:[#allocation3 + $0x68] sm:$0xff] %v303
      %320 = vst [vmem:[#allocation3 + $0x70] sm:$0xff] %v304
      %321 = vst [vmem:[#allocation3 + $0x78] sm:$0xff] %v305
    $region21: #{transformer_decoder_model.35} parent=1 // pred_fallthru
      _
    // Predicated region
    $region22: #{transformer_decoder_model.35} parent=1 // pred_check
      _
    $region23: #{transformer_decoder_model.35} parent=1 // pred_check_branch
      %323 = sbr.rel (0) target = $region25
    $region24: #{transformer_decoder_model.35} parent=1 // pred_region
      %325 = vsyncadd [#allocation4], 0
      %s326 = sshll.u32 [#allocation3], 4
      %s327 = int_to_ptr.vmem [resolvable:$true] %s326
      %s328 = sshll.u32 %s3, 4
      %s329 = int_to_ptr.hbm [resolvable:$true] %s328
      %334 = dma.vmem_to_hbm [thread:$0]  %s327, 2048, %s329, [#allocation4], 512, 512, 32
    $region25: #{transformer_decoder_model.35} parent=1 // pred_fallthru
      _
    // Predicated region
    $region26: #{transformer_decoder_model.35} parent=1 // pred_check
      _
    $region27: #{transformer_decoder_model.35} parent=1 // pred_check_branch
      %336 = sbr.rel (0) target = $region29
    $region28: #{transformer_decoder_model.35} parent=1 // pred_region
      %338 = dma.done [#allocation4], 2048
    $region29: #{transformer_decoder_model.35} parent=1 // pred_fallthru
      _
    %339 = vsyncpa [#allocation4], 1

</llo_original>
